<compile_context>
chip_gen: v7x
topology: tpu7x:2x2x1
jax: 0.10.0
libtpu: 0.0.40
codegen_flags: <defaults>
</compile_context>

<pallas_src>
import functools

import jax
import jax.numpy as jnp
from jax.experimental import pallas as pl
from jax.experimental.pallas import tpu as pltpu


def _round_up(x, m):
    return ((x + m - 1) // m) * m


# ----------------------------------------------------------------------------
# Pallas kernels: out = post_act(A @ B + bias), bf16 operands, f32 accumulation
# ----------------------------------------------------------------------------
def _mm_kernel_single(a_ref, b_ref, bias_ref, o_ref, *, post_act):
    # Single K block: no scratch accumulator, fused bias (+ sigmoid) epilogue.
    out = jnp.dot(a_ref[...], b_ref[...], preferred_element_type=jnp.float32)
    out = out + bias_ref[...]
    if post_act == "sigmoid":
        out = jax.nn.sigmoid(out)
    o_ref[...] = out.astype(o_ref.dtype)


def _mm_kernel_multi(a_ref, b_ref, bias_ref, o_ref, acc_ref, *, post_act):
    # Fallback for large K (not hit at this config): K grid axis + f32 accumulator.
    @pl.when(pl.program_id(2) == 0)
    def _():
        acc_ref[...] = jnp.zeros_like(acc_ref)

    acc_ref[...] += jnp.dot(a_ref[...], b_ref[...], preferred_element_type=jnp.float32)

    @pl.when(pl.program_id(2) == pl.num_programs(2) - 1)
    def _():
        out = acc_ref[...] + bias_ref[...]
        if post_act == "sigmoid":
            out = jax.nn.sigmoid(out)
        o_ref[...] = out.astype(o_ref.dtype)


_MAX_SINGLE_K = 2048   # collapse K into one block below this (all layers here)


def grouped_matmul_bias_act(a, b, bias, post_act=None):
    """out[g] = post_act(a[g] @ b[g] + bias) for all groups g.

    a: (G, M, K) f32, b: (G, K, N) f32, bias: (N,) f32 -> (G, M, N) f32.
    Operands are cast to bf16 for the MXU; accumulation/epilogue stay f32.
    Cout is small in this network, so N is always a single 128-wide tile.
    """
    G, M, K = a.shape
    N = b.shape[2]

    # ---- per-layer tile selection -------------------------------------------
    Np = _round_up(N, 128)
    tn = Np                               # single N tile (Cout <= a few hundred)
    if M <= 128:
        Mp = _round_up(M, 16)             # 16: bf16 sublane packing
        tm = Mp
    else:
        Mp = _round_up(M, 128)
        tm = 128
    Kp = _round_up(K, 128)
    if Kp <= _MAX_SINGLE_K:
        tk = Kp
    else:
        tk = 1024
        Kp = _round_up(K, tk)
    nk = Kp // tk

    a_p = jnp.pad(a.astype(jnp.bfloat16), ((0, 0), (0, Mp - M), (0, Kp - K)))
    b_p = jnp.pad(b.astype(jnp.bfloat16), ((0, 0), (0, Kp - K), (0, Np - N)))
    bias_p = jnp.pad(bias.astype(jnp.float32), (0, Np - N)).reshape(1, Np)

    if nk == 1:
        kernel = functools.partial(_mm_kernel_single, post_act=post_act)
        grid = (G, Mp // tm)
        in_specs = [
            pl.BlockSpec((None, tm, tk), lambda g, i: (g, i, 0)),
            pl.BlockSpec((None, tk, tn), lambda g, i: (g, 0, 0)),
            pl.BlockSpec((1, tn), lambda g, i: (0, 0)),
        ]
        out_specs = pl.BlockSpec((None, tm, tn), lambda g, i: (g, i, 0))
        scratch = []
        semantics = ("parallel", "parallel")
    else:
        kernel = functools.partial(_mm_kernel_multi, post_act=post_act)
        grid = (G, Mp // tm, nk)
        in_specs = [
            pl.BlockSpec((None, tm, tk), lambda g, i, k: (g, i, k)),
            pl.BlockSpec((None, tk, tn), lambda g, i, k: (g, k, 0)),
            pl.BlockSpec((1, tn), lambda g, i, k: (0, 0)),
        ]
        out_specs = pl.BlockSpec((None, tm, tn), lambda g, i, k: (g, i, 0))
        scratch = [pltpu.VMEM((tm, tn), jnp.float32)]
        semantics = ("parallel", "parallel", "arbitrary")

    out = pl.pallas_call(
        kernel,
        out_shape=jax.ShapeDtypeStruct((G, Mp, Np), jnp.float32),
        grid_spec=pltpu.PrefetchScalarGridSpec(
            num_scalar_prefetch=0,
            grid=grid,
            in_specs=in_specs,
            out_specs=out_specs,
            scratch_shapes=scratch,
        ),
        compiler_params=pltpu.CompilerParams(dimension_semantics=semantics),
    )(a_p, b_p, bias_p)
    return out[:, :M, :N]


# ----------------------------------------------------------------------------
# Conv / ConvTranspose lowering (NHWC, plain-JAX glue; the matmul is the hot path)
# ----------------------------------------------------------------------------
def _leaky_relu(x):
    return jnp.where(x >= 0, x, 0.2 * x)


def _relu(x):
    return jnp.maximum(x, 0.0)


def _im2col_nhwc(x, k, s, p):
    """x: (N, H, W, C) -> (N*Ho*Wo, k*k*C) with column order (kh, kw, C)."""
    n, h, w, c = x.shape
    xp = jnp.pad(x, ((0, 0), (p, p), (p, p), (0, 0)))
    ho = (h + 2 * p - k) // s + 1
    wo = (w + 2 * p - k) // s + 1
    cols = []
    for i in range(k):
        for j in range(k):
            cols.append(xp[:, i::s, j::s, :][:, :ho, :wo, :])
    patches = jnp.concatenate(cols, axis=-1)                  # (N, Ho, Wo, k*k*C)
    return patches.reshape(n * ho * wo, k * k * c), ho, wo


def down_conv(x, w, b):
    """nn.Conv2d(Cin, Cout, 4, stride=2, padding=1, bias=True) on NHWC input.
    w: (Cout, Cin, 4, 4) (PyTorch layout), b: (Cout,)."""
    n = x.shape[0]
    cout = w.shape[0]
    patches, ho, wo = _im2col_nhwc(x, k=4, s=2, p=1)
    wf = w.transpose(2, 3, 1, 0).reshape(-1, cout)            # (16*Cin, Cout), (kh,kw,ci) order
    out = grouped_matmul_bias_act(patches[None], wf[None], b)
    return out[0].reshape(n, ho, wo, cout)


def up_conv(x, w_t, b, post_act=None):
    """nn.ConvTranspose2d(Cin, Cout, 4, stride=2, padding=1, bias=True) on NHWC.
    w_t: (Cin, Cout, 4, 4) (PyTorch layout), b: (Cout,).

    Sub-pixel (phase) decomposition: output phase (py, px) is a 2x2 conv of the
    input with the matching 2x2 weight subset; the 4 phases are batched into a
    single grouped pallas_call, then interleaved into the 2H x 2W output."""
    n, h, w, cin = x.shape
    cout = w_t.shape[1]
    xp = jnp.pad(x, ((0, 0), (1, 1), (1, 1), (0, 0)))
    a_list, b_list = [], []
    for py in range(2):
        for px in range(2):
            cols, wrows = [], []
            for dy in range(2):
                for dx in range(2):
                    cols.append(xp[:, py + dy:py + dy + h, px + dx:px + dx + w, :])
                    kh = 3 - py - 2 * dy
                    kw = 3 - px - 2 * dx
                    wrows.append(w_t[:, :, kh, kw])           # (Cin, Cout)
            a_list.append(jnp.concatenate(cols, axis=-1).reshape(n * h * w, 4 * cin))
            b_list.append(jnp.concatenate(wrows, axis=0))     # (4*Cin, Cout)
    a = jnp.stack(a_list, axis=0)                             # (4, M, 4*Cin)
    bmat = jnp.stack(b_list, axis=0)                          # (4, 4*Cin, Cout)
    out = grouped_matmul_bias_act(a, bmat, b, post_act=post_act)  # (4, M, Cout)
    out = out.reshape(2, 2, n, h, w, cout).transpose(2, 3, 0, 4, 1, 5)
    return out.reshape(n, 2 * h, 2 * w, cout)


# ----------------------------------------------------------------------------
# U-Net parameter construction + forward (norm_type='none', sigmoid output)
# ----------------------------------------------------------------------------
def build_params(key, input_nc, output_nc, num_downs, nhf):
    # Block configs from outermost to innermost, mirroring UnetGenerator.__init__.
    cfgs = [dict(input=input_nc, inner=nhf, outer=output_nc, up_in=2 * nhf,
                 outermost=True, innermost=False)]
    cfgs.append(dict(input=nhf, inner=2 * nhf, outer=nhf, up_in=4 * nhf,
                     outermost=False, innermost=False))
    cfgs.append(dict(input=2 * nhf, inner=4 * nhf, outer=2 * nhf, up_in=8 * nhf,
                     outermost=False, innermost=False))
    cfgs.append(dict(input=4 * nhf, inner=8 * nhf, outer=4 * nhf, up_in=16 * nhf,
                     outermost=False, innermost=False))
    for _ in range(num_downs - 5):
        cfgs.append(dict(input=8 * nhf, inner=8 * nhf, outer=8 * nhf, up_in=16 * nhf,
                         outermost=False, innermost=False))
    cfgs.append(dict(input=8 * nhf, inner=8 * nhf, outer=8 * nhf, up_in=8 * nhf,
                     outermost=False, innermost=True))

    params = []
    for c in cfgs:
        key, k1, k2, k3, k4 = jax.random.split(key, 5)
        params.append(dict(
            dw=0.05 * jax.random.normal(k1, (c["inner"], c["input"], 4, 4), jnp.float32),
            db=0.05 * jax.random.normal(k2, (c["inner"],), jnp.float32),
            uw=0.05 * jax.random.normal(k3, (c["up_in"], c["outer"], 4, 4), jnp.float32),
            ub=0.05 * jax.random.normal(k4, (c["outer"],), jnp.float32),
            outermost=c["outermost"],
            innermost=c["innermost"],
        ))
    return params


def unet_block_forward(x, params, idx):
    p = params[idx]
    if p["outermost"]:
        h = down_conv(x, p["dw"], p["db"])                          # Conv only
        h = unet_block_forward(h, params, idx + 1)
        return up_conv(_relu(h), p["uw"], p["ub"], post_act="sigmoid")
    elif p["innermost"]:
        h = down_conv(_leaky_relu(x), p["dw"], p["db"])             # LeakyReLU + Conv
        y = up_conv(_relu(h), p["uw"], p["ub"])                     # ReLU + ConvT (+ Identity norm)
        return jnp.concatenate([x, y], axis=-1)
    else:
        h = down_conv(_leaky_relu(x), p["dw"], p["db"])             # LeakyReLU + Conv + Identity
        h = unet_block_forward(h, params, idx + 1)
        y = up_conv(_relu(h), p["uw"], p["ub"])                     # ReLU + ConvT + Identity
        # Dropout(0.5): identity in eval mode.
        return jnp.concatenate([x, y], axis=-1)


def unet_generator_forward(x_nchw, params, factor=1.0):
    x = x_nchw.transpose(0, 2, 3, 1)                 # NCHW -> NHWC at the boundary only
    y = unet_block_forward(x, params, 0)
    return factor * y.transpose(0, 3, 1, 2)          # back to NCHW


if __name__ == "__main__":
    # Small config: input_nc=3, output_nc=3, num_downs=5, nhf=8, norm='none', sigmoid.
    key = jax.random.PRNGKey(0)
    key, pkey, xkey = jax.random.split(key, 3)

    input_nc, output_nc, num_downs, nhf = 3, 3, 5, 8
    params = build_params(pkey, input_nc, output_nc, num_downs, nhf)

    # batch=2, channels=3, spatial=32 (5 downsamplings -> 1x1 bottleneck)
    x = jax.random.normal(xkey, (2, input_nc, 32, 32), jnp.float32)

    fwd = jax.jit(lambda inp: unet_generator_forward(inp, params))
    out = jax.block_until_ready(fwd(x))
    assert out.shape == (2, output_nc, 32, 32), out.shape
    assert bool(jnp.all(jnp.isfinite(out)))
    print("KERNEL_OK")
</pallas_src>

<mosaic_0001>
module attributes {stable_mosaic.version = 11 : i64} {
  func.func @_mm_kernel_single(%arg0: i32, %arg1: i32, %arg2: memref<1x128x128xbf16, #tpu.memory_space<vmem>>, %arg3: memref<1x128x128xbf16, #tpu.memory_space<vmem>>, %arg4: memref<1x128xf32, #tpu.memory_space<vmem>>, %arg5: memref<1x128x128xf32, #tpu.memory_space<vmem>>) attributes {dimension_semantics = [#tpu.dimension_semantics<parallel>, #tpu.dimension_semantics<parallel>], iteration_bounds = array<i64: 1, 4>, scalar_prefetch = 0 : i64, scratch_operands = 0 : i64, tpu.core_type = #tpu.core_type<tc>, window_params = [{transform_indices = @transform_0, window_bounds = array<i64: 1, 128, 128>}, {transform_indices = @transform_1, window_bounds = array<i64: 1, 128, 128>}, {pipeline_mode = #tpu.pipeline_mode<synchronous>, transform_indices = @transform_2, window_bounds = array<i64: 1, 128>}, {transform_indices = @transform_3, window_bounds = array<i64: 1, 128, 128>}]} {
    %c0 = arith.constant 0 : index
    %c0_0 = arith.constant 0 : index
    %c0_1 = arith.constant 0 : index
    %0 = vector.load %arg2[%c0, %c0_0, %c0_1] : memref<1x128x128xbf16, #tpu.memory_space<vmem>>, vector<1x128x128xbf16>
    %1 = vector.shape_cast %0 : vector<1x128x128xbf16> to vector<128x128xbf16>
    %c0_2 = arith.constant 0 : index
    %c0_3 = arith.constant 0 : index
    %c0_4 = arith.constant 0 : index
    %2 = vector.load %arg3[%c0_2, %c0_3, %c0_4] : memref<1x128x128xbf16, #tpu.memory_space<vmem>>, vector<1x128x128xbf16>
    %3 = vector.shape_cast %2 : vector<1x128x128xbf16> to vector<128x128xbf16>
    %cst = arith.constant dense<0.000000e+00> : vector<128x128xf32>
    %4 = tpu.matmul %1, %3, %cst {dimension_numbers = #tpu.dot_dimension_numbers<[1], [0], [0], [1], [0, 0, 1, 1], [], []>} : vector<128x128xbf16>, vector<128x128xbf16>, vector<128x128xf32> -> vector<128x128xf32>
    %c0_5 = arith.constant 0 : index
    %c0_6 = arith.constant 0 : index
    %5 = vector.load %arg4[%c0_5, %c0_6] : memref<1x128xf32, #tpu.memory_space<vmem>>, vector<1x128xf32>
    %6 = vector.broadcast %5 : vector<1x128xf32> to vector<128x128xf32>
    %7 = arith.addf %4, %6 : vector<128x128xf32>
    %c0_7 = arith.constant 0 : index
    %c0_8 = arith.constant 0 : index
    %c0_9 = arith.constant 0 : index
    %8 = vector.load %arg5[%c0_7, %c0_8, %c0_9] : memref<1x128x128xf32, #tpu.memory_space<vmem>>, vector<1x128x128xf32>
    %9 = vector.shape_cast %8 : vector<1x128x128xf32> to vector<128x128xf32>
    %10 = vector.shape_cast %7 : vector<128x128xf32> to vector<1x128x128xf32>
    tpu.vector_store %arg5[%c0_7, %c0_8, %c0_9], %10 {strides = array<i32>} : memref<1x128x128xf32, #tpu.memory_space<vmem>>, vector<1x128x128xf32>,
    return
  }
  func.func @transform_0(%arg0: i32, %arg1: i32) -> (i32, i32, i32) {
    %c0_i32 = arith.constant 0 : i32
    %c0_i32_0 = arith.constant 0 : i32
    return %arg0, %arg1, %c0_i32 : i32, i32, i32
  }
  func.func @transform_1(%arg0: i32, %arg1: i32) -> (i32, i32, i32) {
    %c0_i32 = arith.constant 0 : i32
    %c0_i32_0 = arith.constant 0 : i32
    %c0_i32_1 = arith.constant 0 : i32
    return %arg0, %c0_i32, %c0_i32_0 : i32, i32, i32
  }
  func.func @transform_2(%arg0: i32, %arg1: i32) -> (i32, i32) {
    %c0_i32 = arith.constant 0 : i32
    %c0_i32_0 = arith.constant 0 : i32
    %c0_i32_1 = arith.constant 0 : i32
    return %c0_i32, %c0_i32_0 : i32, i32
  }
  func.func @transform_3(%arg0: i32, %arg1: i32) -> (i32, i32, i32) {
    %c0_i32 = arith.constant 0 : i32
    %c0_i32_0 = arith.constant 0 : i32
    return %arg0, %arg1, %c0_i32 : i32, i32, i32
  }
}

module attributes {stable_mosaic.version = 11 : i64} {
  func.func @_mm_kernel_single(%arg0: i32, %arg1: i32, %arg2: memref<1x128x128xbf16, #tpu.memory_space<vmem>>, %arg3: memref<1x128x128xbf16, #tpu.memory_space<vmem>>, %arg4: memref<1x128xf32, #tpu.memory_space<vmem>>, %arg5: memref<1x128x128xf32, #tpu.memory_space<vmem>>) attributes {dimension_semantics = [#tpu.dimension_semantics<parallel>, #tpu.dimension_semantics<parallel>], iteration_bounds = array<i64: 1, 1>, scalar_prefetch = 0 : i64, scratch_operands = 0 : i64, tpu.core_type = #tpu.core_type<tc>, window_params = [{transform_indices = @transform_0, window_bounds = array<i64: 1, 128, 128>}, {transform_indices = @transform_1, window_bounds = array<i64: 1, 128, 128>}, {pipeline_mode = #tpu.pipeline_mode<synchronous>, transform_indices = @transform_2, window_bounds = array<i64: 1, 128>}, {transform_indices = @transform_3, window_bounds = array<i64: 1, 128, 128>}]} {
    %c0 = arith.constant 0 : index
    %c0_0 = arith.constant 0 : index
    %c0_1 = arith.constant 0 : index
    %0 = vector.load %arg2[%c0, %c0_0, %c0_1] : memref<1x128x128xbf16, #tpu.memory_space<vmem>>, vector<1x128x128xbf16>
    %1 = vector.shape_cast %0 : vector<1x128x128xbf16> to vector<128x128xbf16>
    %c0_2 = arith.constant 0 : index
    %c0_3 = arith.constant 0 : index
    %c0_4 = arith.constant 0 : index
    %2 = vector.load %arg3[%c0_2, %c0_3, %c0_4] : memref<1x128x128xbf16, #tpu.memory_space<vmem>>, vector<1x128x128xbf16>
    %3 = vector.shape_cast %2 : vector<1x128x128xbf16> to vector<128x128xbf16>
    %cst = arith.constant dense<0.000000e+00> : vector<128x128xf32>
    %4 = tpu.matmul %1, %3, %cst {dimension_numbers = #tpu.dot_dimension_numbers<[1], [0], [0], [1], [0, 0, 1, 1], [], []>} : vector<128x128xbf16>, vector<128x128xbf16>, vector<128x128xf32> -> vector<128x128xf32>
    %c0_5 = arith.constant 0 : index
    %c0_6 = arith.constant 0 : index
    %5 = vector.load %arg4[%c0_5, %c0_6] : memref<1x128xf32, #tpu.memory_space<vmem>>, vector<1x128xf32>
    %6 = vector.broadcast %5 : vector<1x128xf32> to vector<128x128xf32>
    %7 = arith.addf %4, %6 : vector<128x128xf32>
    %c0_7 = arith.constant 0 : index
    %c0_8 = arith.constant 0 : index
    %c0_9 = arith.constant 0 : index
    %8 = vector.load %arg5[%c0_7, %c0_8, %c0_9] : memref<1x128x128xf32, #tpu.memory_space<vmem>>, vector<1x128x128xf32>
    %9 = vector.shape_cast %8 : vector<1x128x128xf32> to vector<128x128xf32>
    %10 = vector.shape_cast %7 : vector<128x128xf32> to vector<1x128x128xf32>
    tpu.vector_store %arg5[%c0_7, %c0_8, %c0_9], %10 {strides = array<i32>} : memref<1x128x128xf32, #tpu.memory_space<vmem>>, vector<1x128x128xf32>,
    return
  }
  func.func @transform_0(%arg0: i32, %arg1: i32) -> (i32, i32, i32) {
    %c0_i32 = arith.constant 0 : i32
    %c0_i32_0 = arith.constant 0 : i32
    return %arg0, %arg1, %c0_i32 : i32, i32, i32
  }
  func.func @transform_1(%arg0: i32, %arg1: i32) -> (i32, i32, i32) {
    %c0_i32 = arith.constant 0 : i32
    %c0_i32_0 = arith.constant 0 : i32
    %c0_i32_1 = arith.constant 0 : i32
    return %arg0, %c0_i32, %c0_i32_0 : i32, i32, i32
  }
  func.func @transform_2(%arg0: i32, %arg1: i32) -> (i32, i32) {
    %c0_i32 = arith.constant 0 : i32
    %c0_i32_0 = arith.constant 0 : i32
    %c0_i32_1 = arith.constant 0 : i32
    return %c0_i32, %c0_i32_0 : i32, i32
  }
  func.func @transform_3(%arg0: i32, %arg1: i32) -> (i32, i32, i32) {
    %c0_i32 = arith.constant 0 : i32
    %c0_i32_0 = arith.constant 0 : i32
    return %arg0, %arg1, %c0_i32 : i32, i32, i32
  }
}

module attributes {stable_mosaic.version = 11 : i64} {
  func.func @_mm_kernel_single(%arg0: i32, %arg1: i32, %arg2: memref<1x32x256xbf16, #tpu.memory_space<vmem>>, %arg3: memref<1x256x128xbf16, #tpu.memory_space<vmem>>, %arg4: memref<1x128xf32, #tpu.memory_space<vmem>>, %arg5: memref<1x32x128xf32, #tpu.memory_space<vmem>>) attributes {dimension_semantics = [#tpu.dimension_semantics<parallel>, #tpu.dimension_semantics<parallel>], iteration_bounds = array<i64: 1, 1>, scalar_prefetch = 0 : i64, scratch_operands = 0 : i64, tpu.core_type = #tpu.core_type<tc>, window_params = [{transform_indices = @transform_0, window_bounds = array<i64: 1, 32, 256>}, {transform_indices = @transform_1, window_bounds = array<i64: 1, 256, 128>}, {pipeline_mode = #tpu.pipeline_mode<synchronous>, transform_indices = @transform_2, window_bounds = array<i64: 1, 128>}, {transform_indices = @transform_3, window_bounds = array<i64: 1, 32, 128>}]} {
    %c0 = arith.constant 0 : index
    %c0_0 = arith.constant 0 : index
    %c0_1 = arith.constant 0 : index
    %0 = vector.load %arg2[%c0, %c0_0, %c0_1] : memref<1x32x256xbf16, #tpu.memory_space<vmem>>, vector<1x32x256xbf16>
    %1 = vector.shape_cast %0 : vector<1x32x256xbf16> to vector<32x256xbf16>
    %c0_2 = arith.constant 0 : index
    %c0_3 = arith.constant 0 : index
    %c0_4 = arith.constant 0 : index
    %2 = vector.load %arg3[%c0_2, %c0_3, %c0_4] : memref<1x256x128xbf16, #tpu.memory_space<vmem>>, vector<1x256x128xbf16>
    %3 = vector.shape_cast %2 : vector<1x256x128xbf16> to vector<256x128xbf16>
    %cst = arith.constant dense<0.000000e+00> : vector<32x128xf32>
    %4 = tpu.matmul %1, %3, %cst {dimension_numbers = #tpu.dot_dimension_numbers<[1], [0], [0], [1], [0, 0, 1, 1], [], []>} : vector<32x256xbf16>, vector<256x128xbf16>, vector<32x128xf32> -> vector<32x128xf32>
    %c0_5 = arith.constant 0 : index
    %c0_6 = arith.constant 0 : index
    %5 = vector.load %arg4[%c0_5, %c0_6] : memref<1x128xf32, #tpu.memory_space<vmem>>, vector<1x128xf32>
    %6 = vector.broadcast %5 : vector<1x128xf32> to vector<32x128xf32>
    %7 = arith.addf %4, %6 : vector<32x128xf32>
    %c0_7 = arith.constant 0 : index
    %c0_8 = arith.constant 0 : index
    %c0_9 = arith.constant 0 : index
    %8 = vector.load %arg5[%c0_7, %c0_8, %c0_9] : memref<1x32x128xf32, #tpu.memory_space<vmem>>, vector<1x32x128xf32>
    %9 = vector.shape_cast %8 : vector<1x32x128xf32> to vector<32x128xf32>
    %10 = vector.shape_cast %7 : vector<32x128xf32> to vector<1x32x128xf32>
    tpu.vector_store %arg5[%c0_7, %c0_8, %c0_9], %10 {strides = array<i32>} : memref<1x32x128xf32, #tpu.memory_space<vmem>>, vector<1x32x128xf32>,
    return
  }
  func.func @transform_0(%arg0: i32, %arg1: i32) -> (i32, i32, i32) {
    %c0_i32 = arith.constant 0 : i32
    %c0_i32_0 = arith.constant 0 : i32
    return %arg0, %arg1, %c0_i32 : i32, i32, i32
  }
  func.func @transform_1(%arg0: i32, %arg1: i32) -> (i32, i32, i32) {
    %c0_i32 = arith.constant 0 : i32
    %c0_i32_0 = arith.constant 0 : i32
    %c0_i32_1 = arith.constant 0 : i32
    return %arg0, %c0_i32, %c0_i32_0 : i32, i32, i32
  }
  func.func @transform_2(%arg0: i32, %arg1: i32) -> (i32, i32) {
    %c0_i32 = arith.constant 0 : i32
    %c0_i32_0 = arith.constant 0 : i32
    %c0_i32_1 = arith.constant 0 : i32
    return %c0_i32, %c0_i32_0 : i32, i32
  }
  func.func @transform_3(%arg0: i32, %arg1: i32) -> (i32, i32, i32) {
    %c0_i32 = arith.constant 0 : i32
    %c0_i32_0 = arith.constant 0 : i32
    return %arg0, %arg1, %c0_i32 : i32, i32, i32
  }
}

module attributes {stable_mosaic.version = 11 : i64} {
  func.func @_mm_kernel_single(%arg0: i32, %arg1: i32, %arg2: memref<1x16x1024xbf16, #tpu.memory_space<vmem>>, %arg3: memref<1x1024x128xbf16, #tpu.memory_space<vmem>>, %arg4: memref<1x128xf32, #tpu.memory_space<vmem>>, %arg5: memref<1x16x128xf32, #tpu.memory_space<vmem>>) attributes {dimension_semantics = [#tpu.dimension_semantics<parallel>, #tpu.dimension_semantics<parallel>], iteration_bounds = array<i64: 1, 1>, scalar_prefetch = 0 : i64, scratch_operands = 0 : i64, tpu.core_type = #tpu.core_type<tc>, window_params = [{transform_indices = @transform_0, window_bounds = array<i64: 1, 16, 1024>}, {transform_indices = @transform_1, window_bounds = array<i64: 1, 1024, 128>}, {pipeline_mode = #tpu.pipeline_mode<synchronous>, transform_indices = @transform_2, window_bounds = array<i64: 1, 128>}, {transform_indices = @transform_3, window_bounds = array<i64: 1, 16, 128>}]} {
    %c0 = arith.constant 0 : index
    %c0_0 = arith.constant 0 : index
    %c0_1 = arith.constant 0 : index
    %0 = vector.load %arg2[%c0, %c0_0, %c0_1] : memref<1x16x1024xbf16, #tpu.memory_space<vmem>>, vector<1x16x1024xbf16>
    %1 = vector.shape_cast %0 : vector<1x16x1024xbf16> to vector<16x1024xbf16>
    %c0_2 = arith.constant 0 : index
    %c0_3 = arith.constant 0 : index
    %c0_4 = arith.constant 0 : index
    %2 = vector.load %arg3[%c0_2, %c0_3, %c0_4] : memref<1x1024x128xbf16, #tpu.memory_space<vmem>>, vector<1x1024x128xbf16>
    %3 = vector.shape_cast %2 : vector<1x1024x128xbf16> to vector<1024x128xbf16>
    %cst = arith.constant dense<0.000000e+00> : vector<16x128xf32>
    %4 = tpu.matmul %1, %3, %cst {dimension_numbers = #tpu.dot_dimension_numbers<[1], [0], [0], [1], [0, 0, 1, 1], [], []>} : vector<16x1024xbf16>, vector<1024x128xbf16>, vector<16x128xf32> -> vector<16x128xf32>
    %c0_5 = arith.constant 0 : index
    %c0_6 = arith.constant 0 : index
    %5 = vector.load %arg4[%c0_5, %c0_6] : memref<1x128xf32, #tpu.memory_space<vmem>>, vector<1x128xf32>
    %6 = vector.broadcast %5 : vector<1x128xf32> to vector<16x128xf32>
    %7 = arith.addf %4, %6 : vector<16x128xf32>
    %c0_7 = arith.constant 0 : index
    %c0_8 = arith.constant 0 : index
    %c0_9 = arith.constant 0 : index
    %8 = vector.load %arg5[%c0_7, %c0_8, %c0_9] : memref<1x16x128xf32, #tpu.memory_space<vmem>>, vector<1x16x128xf32>
    %9 = vector.shape_cast %8 : vector<1x16x128xf32> to vector<16x128xf32>
    %10 = vector.shape_cast %7 : vector<16x128xf32> to vector<1x16x128xf32>
    tpu.vector_store %arg5[%c0_7, %c0_8, %c0_9], %10 {strides = array<i32>} : memref<1x16x128xf32, #tpu.memory_space<vmem>>, vector<1x16x128xf32>,
    return
  }
  func.func @transform_0(%arg0: i32, %arg1: i32) -> (i32, i32, i32) {
    %c0_i32 = arith.constant 0 : i32
    %c0_i32_0 = arith.constant 0 : i32
    return %arg0, %arg1, %c0_i32 : i32, i32, i32
  }
  func.func @transform_1(%arg0: i32, %arg1: i32) -> (i32, i32, i32) {
    %c0_i32 = arith.constant 0 : i32
    %c0_i32_0 = arith.constant 0 : i32
    %c0_i32_1 = arith.constant 0 : i32
    return %arg0, %c0_i32, %c0_i32_0 : i32, i32, i32
  }
  func.func @transform_2(%arg0: i32, %arg1: i32) -> (i32, i32) {
    %c0_i32 = arith.constant 0 : i32
    %c0_i32_0 = arith.constant 0 : i32
    %c0_i32_1 = arith.constant 0 : i32
    return %c0_i32, %c0_i32_0 : i32, i32
  }
  func.func @transform_3(%arg0: i32, %arg1: i32) -> (i32, i32, i32) {
    %c0_i32 = arith.constant 0 : i32
    %c0_i32_0 = arith.constant 0 : i32
    return %arg0, %arg1, %c0_i32 : i32, i32, i32
  }
}

module attributes {stable_mosaic.version = 11 : i64} {
  func.func @_mm_kernel_single(%arg0: i32, %arg1: i32, %arg2: memref<1x16x256xbf16, #tpu.memory_space<vmem>>, %arg3: memref<1x256x128xbf16, #tpu.memory_space<vmem>>, %arg4: memref<1x128xf32, #tpu.memory_space<vmem>>, %arg5: memref<1x16x128xf32, #tpu.memory_space<vmem>>) attributes {dimension_semantics = [#tpu.dimension_semantics<parallel>, #tpu.dimension_semantics<parallel>], iteration_bounds = array<i64: 4, 1>, scalar_prefetch = 0 : i64, scratch_operands = 0 : i64, tpu.core_type = #tpu.core_type<tc>, window_params = [{transform_indices = @transform_0, window_bounds = array<i64: 1, 16, 256>}, {transform_indices = @transform_1, window_bounds = array<i64: 1, 256, 128>}, {pipeline_mode = #tpu.pipeline_mode<synchronous>, transform_indices = @transform_2, window_bounds = array<i64: 1, 128>}, {transform_indices = @transform_3, window_bounds = array<i64: 1, 16, 128>}]} {
    %c0 = arith.constant 0 : index
    %c0_0 = arith.constant 0 : index
    %c0_1 = arith.constant 0 : index
    %0 = vector.load %arg2[%c0, %c0_0, %c0_1] : memref<1x16x256xbf16, #tpu.memory_space<vmem>>, vector<1x16x256xbf16>
    %1 = vector.shape_cast %0 : vector<1x16x256xbf16> to vector<16x256xbf16>
    %c0_2 = arith.constant 0 : index
    %c0_3 = arith.constant 0 : index
    %c0_4 = arith.constant 0 : index
    %2 = vector.load %arg3[%c0_2, %c0_3, %c0_4] : memref<1x256x128xbf16, #tpu.memory_space<vmem>>, vector<1x256x128xbf16>
    %3 = vector.shape_cast %2 : vector<1x256x128xbf16> to vector<256x128xbf16>
    %cst = arith.constant dense<0.000000e+00> : vector<16x128xf32>
    %4 = tpu.matmul %1, %3, %cst {dimension_numbers = #tpu.dot_dimension_numbers<[1], [0], [0], [1], [0, 0, 1, 1], [], []>} : vector<16x256xbf16>, vector<256x128xbf16>, vector<16x128xf32> -> vector<16x128xf32>
    %c0_5 = arith.constant 0 : index
    %c0_6 = arith.constant 0 : index
    %5 = vector.load %arg4[%c0_5, %c0_6] : memref<1x128xf32, #tpu.memory_space<vmem>>, vector<1x128xf32>
    %6 = vector.broadcast %5 : vector<1x128xf32> to vector<16x128xf32>
    %7 = arith.addf %4, %6 : vector<16x128xf32>
    %c0_7 = arith.constant 0 : index
    %c0_8 = arith.constant 0 : index
    %c0_9 = arith.constant 0 : index
    %8 = vector.load %arg5[%c0_7, %c0_8, %c0_9] : memref<1x16x128xf32, #tpu.memory_space<vmem>>, vector<1x16x128xf32>
    %9 = vector.shape_cast %8 : vector<1x16x128xf32> to vector<16x128xf32>
    %10 = vector.shape_cast %7 : vector<16x128xf32> to vector<1x16x128xf32>
    tpu.vector_store %arg5[%c0_7, %c0_8, %c0_9], %10 {strides = array<i32>} : memref<1x16x128xf32, #tpu.memory_space<vmem>>, vector<1x16x128xf32>,
    return
  }
  func.func @transform_0(%arg0: i32, %arg1: i32) -> (i32, i32, i32) {
    %c0_i32 = arith.constant 0 : i32
    %c0_i32_0 = arith.constant 0 : i32
    return %arg0, %arg1, %c0_i32 : i32, i32, i32
  }
  func.func @transform_1(%arg0: i32, %arg1: i32) -> (i32, i32, i32) {
    %c0_i32 = arith.constant 0 : i32
    %c0_i32_0 = arith.constant 0 : i32
    %c0_i32_1 = arith.constant 0 : i32
    return %arg0, %c0_i32, %c0_i32_0 : i32, i32, i32
  }
  func.func @transform_2(%arg0: i32, %arg1: i32) -> (i32, i32) {
    %c0_i32 = arith.constant 0 : i32
    %c0_i32_0 = arith.constant 0 : i32
    %c0_i32_1 = arith.constant 0 : i32
    return %c0_i32, %c0_i32_0 : i32, i32
  }
  func.func @transform_3(%arg0: i32, %arg1: i32) -> (i32, i32, i32) {
    %c0_i32 = arith.constant 0 : i32
    %c0_i32_0 = arith.constant 0 : i32
    return %arg0, %arg1, %c0_i32 : i32, i32, i32
  }
}

module attributes {stable_mosaic.version = 11 : i64} {
  func.func @_mm_kernel_single(%arg0: i32, %arg1: i32, %arg2: memref<1x16x512xbf16, #tpu.memory_space<vmem>>, %arg3: memref<1x512x128xbf16, #tpu.memory_space<vmem>>, %arg4: memref<1x128xf32, #tpu.memory_space<vmem>>, %arg5: memref<1x16x128xf32, #tpu.memory_space<vmem>>) attributes {dimension_semantics = [#tpu.dimension_semantics<parallel>, #tpu.dimension_semantics<parallel>], iteration_bounds = array<i64: 1, 1>, scalar_prefetch = 0 : i64, scratch_operands = 0 : i64, tpu.core_type = #tpu.core_type<tc>, window_params = [{transform_indices = @transform_0, window_bounds = array<i64: 1, 16, 512>}, {transform_indices = @transform_1, window_bounds = array<i64: 1, 512, 128>}, {pipeline_mode = #tpu.pipeline_mode<synchronous>, transform_indices = @transform_2, window_bounds = array<i64: 1, 128>}, {transform_indices = @transform_3, window_bounds = array<i64: 1, 16, 128>}]} {
    %c0 = arith.constant 0 : index
    %c0_0 = arith.constant 0 : index
    %c0_1 = arith.constant 0 : index
    %0 = vector.load %arg2[%c0, %c0_0, %c0_1] : memref<1x16x512xbf16, #tpu.memory_space<vmem>>, vector<1x16x512xbf16>
    %1 = vector.shape_cast %0 : vector<1x16x512xbf16> to vector<16x512xbf16>
    %c0_2 = arith.constant 0 : index
    %c0_3 = arith.constant 0 : index
    %c0_4 = arith.constant 0 : index
    %2 = vector.load %arg3[%c0_2, %c0_3, %c0_4] : memref<1x512x128xbf16, #tpu.memory_space<vmem>>, vector<1x512x128xbf16>
    %3 = vector.shape_cast %2 : vector<1x512x128xbf16> to vector<512x128xbf16>
    %cst = arith.constant dense<0.000000e+00> : vector<16x128xf32>
    %4 = tpu.matmul %1, %3, %cst {dimension_numbers = #tpu.dot_dimension_numbers<[1], [0], [0], [1], [0, 0, 1, 1], [], []>} : vector<16x512xbf16>, vector<512x128xbf16>, vector<16x128xf32> -> vector<16x128xf32>
    %c0_5 = arith.constant 0 : index
    %c0_6 = arith.constant 0 : index
    %5 = vector.load %arg4[%c0_5, %c0_6] : memref<1x128xf32, #tpu.memory_space<vmem>>, vector<1x128xf32>
    %6 = vector.broadcast %5 : vector<1x128xf32> to vector<16x128xf32>
    %7 = arith.addf %4, %6 : vector<16x128xf32>
    %c0_7 = arith.constant 0 : index
    %c0_8 = arith.constant 0 : index
    %c0_9 = arith.constant 0 : index
    %8 = vector.load %arg5[%c0_7, %c0_8, %c0_9] : memref<1x16x128xf32, #tpu.memory_space<vmem>>, vector<1x16x128xf32>
    %9 = vector.shape_cast %8 : vector<1x16x128xf32> to vector<16x128xf32>
    %10 = vector.shape_cast %7 : vector<16x128xf32> to vector<1x16x128xf32>
    tpu.vector_store %arg5[%c0_7, %c0_8, %c0_9], %10 {strides = array<i32>} : memref<1x16x128xf32, #tpu.memory_space<vmem>>, vector<1x16x128xf32>,
    return
  }
  func.func @transform_0(%arg0: i32, %arg1: i32) -> (i32, i32, i32) {
    %c0_i32 = arith.constant 0 : i32
    %c0_i32_0 = arith.constant 0 : i32
    return %arg0, %arg1, %c0_i32 : i32, i32, i32
  }
  func.func @transform_1(%arg0: i32, %arg1: i32) -> (i32, i32, i32) {
    %c0_i32 = arith.constant 0 : i32
    %c0_i32_0 = arith.constant 0 : i32
    %c0_i32_1 = arith.constant 0 : i32
    return %arg0, %c0_i32, %c0_i32_0 : i32, i32, i32
  }
  func.func @transform_2(%arg0: i32, %arg1: i32) -> (i32, i32) {
    %c0_i32 = arith.constant 0 : i32
    %c0_i32_0 = arith.constant 0 : i32
    %c0_i32_1 = arith.constant 0 : i32
    return %c0_i32, %c0_i32_0 : i32, i32
  }
  func.func @transform_3(%arg0: i32, %arg1: i32) -> (i32, i32, i32) {
    %c0_i32 = arith.constant 0 : i32
    %c0_i32_0 = arith.constant 0 : i32
    return %arg0, %arg1, %c0_i32 : i32, i32, i32
  }
}

module attributes {stable_mosaic.version = 11 : i64} {
  func.func @_mm_kernel_single(%arg0: i32, %arg1: i32, %arg2: memref<1x16x512xbf16, #tpu.memory_space<vmem>>, %arg3: memref<1x512x128xbf16, #tpu.memory_space<vmem>>, %arg4: memref<1x128xf32, #tpu.memory_space<vmem>>, %arg5: memref<1x16x128xf32, #tpu.memory_space<vmem>>) attributes {dimension_semantics = [#tpu.dimension_semantics<parallel>, #tpu.dimension_semantics<parallel>], iteration_bounds = array<i64: 4, 1>, scalar_prefetch = 0 : i64, scratch_operands = 0 : i64, tpu.core_type = #tpu.core_type<tc>, window_params = [{transform_indices = @transform_0, window_bounds = array<i64: 1, 16, 512>}, {transform_indices = @transform_1, window_bounds = array<i64: 1, 512, 128>}, {pipeline_mode = #tpu.pipeline_mode<synchronous>, transform_indices = @transform_2, window_bounds = array<i64: 1, 128>}, {transform_indices = @transform_3, window_bounds = array<i64: 1, 16, 128>}]} {
    %c0 = arith.constant 0 : index
    %c0_0 = arith.constant 0 : index
    %c0_1 = arith.constant 0 : index
    %0 = vector.load %arg2[%c0, %c0_0, %c0_1] : memref<1x16x512xbf16, #tpu.memory_space<vmem>>, vector<1x16x512xbf16>
    %1 = vector.shape_cast %0 : vector<1x16x512xbf16> to vector<16x512xbf16>
    %c0_2 = arith.constant 0 : index
    %c0_3 = arith.constant 0 : index
    %c0_4 = arith.constant 0 : index
    %2 = vector.load %arg3[%c0_2, %c0_3, %c0_4] : memref<1x512x128xbf16, #tpu.memory_space<vmem>>, vector<1x512x128xbf16>
    %3 = vector.shape_cast %2 : vector<1x512x128xbf16> to vector<512x128xbf16>
    %cst = arith.constant dense<0.000000e+00> : vector<16x128xf32>
    %4 = tpu.matmul %1, %3, %cst {dimension_numbers = #tpu.dot_dimension_numbers<[1], [0], [0], [1], [0, 0, 1, 1], [], []>} : vector<16x512xbf16>, vector<512x128xbf16>, vector<16x128xf32> -> vector<16x128xf32>
    %c0_5 = arith.constant 0 : index
    %c0_6 = arith.constant 0 : index
    %5 = vector.load %arg4[%c0_5, %c0_6] : memref<1x128xf32, #tpu.memory_space<vmem>>, vector<1x128xf32>
    %6 = vector.broadcast %5 : vector<1x128xf32> to vector<16x128xf32>
    %7 = arith.addf %4, %6 : vector<16x128xf32>
    %c0_7 = arith.constant 0 : index
    %c0_8 = arith.constant 0 : index
    %c0_9 = arith.constant 0 : index
    %8 = vector.load %arg5[%c0_7, %c0_8, %c0_9] : memref<1x16x128xf32, #tpu.memory_space<vmem>>, vector<1x16x128xf32>
    %9 = vector.shape_cast %8 : vector<1x16x128xf32> to vector<16x128xf32>
    %10 = vector.shape_cast %7 : vector<16x128xf32> to vector<1x16x128xf32>
    tpu.vector_store %arg5[%c0_7, %c0_8, %c0_9], %10 {strides = array<i32>} : memref<1x16x128xf32, #tpu.memory_space<vmem>>, vector<1x16x128xf32>,
    return
  }
  func.func @transform_0(%arg0: i32, %arg1: i32) -> (i32, i32, i32) {
    %c0_i32 = arith.constant 0 : i32
    %c0_i32_0 = arith.constant 0 : i32
    return %arg0, %arg1, %c0_i32 : i32, i32, i32
  }
  func.func @transform_1(%arg0: i32, %arg1: i32) -> (i32, i32, i32) {
    %c0_i32 = arith.constant 0 : i32
    %c0_i32_0 = arith.constant 0 : i32
    %c0_i32_1 = arith.constant 0 : i32
    return %arg0, %c0_i32, %c0_i32_0 : i32, i32, i32
  }
  func.func @transform_2(%arg0: i32, %arg1: i32) -> (i32, i32) {
    %c0_i32 = arith.constant 0 : i32
    %c0_i32_0 = arith.constant 0 : i32
    %c0_i32_1 = arith.constant 0 : i32
    return %c0_i32, %c0_i32_0 : i32, i32
  }
  func.func @transform_3(%arg0: i32, %arg1: i32) -> (i32, i32, i32) {
    %c0_i32 = arith.constant 0 : i32
    %c0_i32_0 = arith.constant 0 : i32
    return %arg0, %arg1, %c0_i32 : i32, i32, i32
  }
}

module attributes {stable_mosaic.version = 11 : i64} {
  func.func @_mm_kernel_single(%arg0: i32, %arg1: i32, %arg2: memref<1x32x256xbf16, #tpu.memory_space<vmem>>, %arg3: memref<1x256x128xbf16, #tpu.memory_space<vmem>>, %arg4: memref<1x128xf32, #tpu.memory_space<vmem>>, %arg5: memref<1x32x128xf32, #tpu.memory_space<vmem>>) attributes {dimension_semantics = [#tpu.dimension_semantics<parallel>, #tpu.dimension_semantics<parallel>], iteration_bounds = array<i64: 4, 1>, scalar_prefetch = 0 : i64, scratch_operands = 0 : i64, tpu.core_type = #tpu.core_type<tc>, window_params = [{transform_indices = @transform_0, window_bounds = array<i64: 1, 32, 256>}, {transform_indices = @transform_1, window_bounds = array<i64: 1, 256, 128>}, {pipeline_mode = #tpu.pipeline_mode<synchronous>, transform_indices = @transform_2, window_bounds = array<i64: 1, 128>}, {transform_indices = @transform_3, window_bounds = array<i64: 1, 32, 128>}]} {
    %c0 = arith.constant 0 : index
    %c0_0 = arith.constant 0 : index
    %c0_1 = arith.constant 0 : index
    %0 = vector.load %arg2[%c0, %c0_0, %c0_1] : memref<1x32x256xbf16, #tpu.memory_space<vmem>>, vector<1x32x256xbf16>
    %1 = vector.shape_cast %0 : vector<1x32x256xbf16> to vector<32x256xbf16>
    %c0_2 = arith.constant 0 : index
    %c0_3 = arith.constant 0 : index
    %c0_4 = arith.constant 0 : index
    %2 = vector.load %arg3[%c0_2, %c0_3, %c0_4] : memref<1x256x128xbf16, #tpu.memory_space<vmem>>, vector<1x256x128xbf16>
    %3 = vector.shape_cast %2 : vector<1x256x128xbf16> to vector<256x128xbf16>
    %cst = arith.constant dense<0.000000e+00> : vector<32x128xf32>
    %4 = tpu.matmul %1, %3, %cst {dimension_numbers = #tpu.dot_dimension_numbers<[1], [0], [0], [1], [0, 0, 1, 1], [], []>} : vector<32x256xbf16>, vector<256x128xbf16>, vector<32x128xf32> -> vector<32x128xf32>
    %c0_5 = arith.constant 0 : index
    %c0_6 = arith.constant 0 : index
    %5 = vector.load %arg4[%c0_5, %c0_6] : memref<1x128xf32, #tpu.memory_space<vmem>>, vector<1x128xf32>
    %6 = vector.broadcast %5 : vector<1x128xf32> to vector<32x128xf32>
    %7 = arith.addf %4, %6 : vector<32x128xf32>
    %c0_7 = arith.constant 0 : index
    %c0_8 = arith.constant 0 : index
    %c0_9 = arith.constant 0 : index
    %8 = vector.load %arg5[%c0_7, %c0_8, %c0_9] : memref<1x32x128xf32, #tpu.memory_space<vmem>>, vector<1x32x128xf32>
    %9 = vector.shape_cast %8 : vector<1x32x128xf32> to vector<32x128xf32>
    %10 = vector.shape_cast %7 : vector<32x128xf32> to vector<1x32x128xf32>
    tpu.vector_store %arg5[%c0_7, %c0_8, %c0_9], %10 {strides = array<i32>} : memref<1x32x128xf32, #tpu.memory_space<vmem>>, vector<1x32x128xf32>,
    return
  }
  func.func @transform_0(%arg0: i32, %arg1: i32) -> (i32, i32, i32) {
    %c0_i32 = arith.constant 0 : i32
    %c0_i32_0 = arith.constant 0 : i32
    return %arg0, %arg1, %c0_i32 : i32, i32, i32
  }
  func.func @transform_1(%arg0: i32, %arg1: i32) -> (i32, i32, i32) {
    %c0_i32 = arith.constant 0 : i32
    %c0_i32_0 = arith.constant 0 : i32
    %c0_i32_1 = arith.constant 0 : i32
    return %arg0, %c0_i32, %c0_i32_0 : i32, i32, i32
  }
  func.func @transform_2(%arg0: i32, %arg1: i32) -> (i32, i32) {
    %c0_i32 = arith.constant 0 : i32
    %c0_i32_0 = arith.constant 0 : i32
    %c0_i32_1 = arith.constant 0 : i32
    return %c0_i32, %c0_i32_0 : i32, i32
  }
  func.func @transform_3(%arg0: i32, %arg1: i32) -> (i32, i32, i32) {
    %c0_i32 = arith.constant 0 : i32
    %c0_i32_0 = arith.constant 0 : i32
    return %arg0, %arg1, %c0_i32 : i32, i32, i32
  }
}

module attributes {stable_mosaic.version = 11 : i64} {
  func.func @_mm_kernel_single(%arg0: i32, %arg1: i32, %arg2: memref<1x128x128xbf16, #tpu.memory_space<vmem>>, %arg3: memref<1x128x128xbf16, #tpu.memory_space<vmem>>, %arg4: memref<1x128xf32, #tpu.memory_space<vmem>>, %arg5: memref<1x128x128xf32, #tpu.memory_space<vmem>>) attributes {dimension_semantics = [#tpu.dimension_semantics<parallel>, #tpu.dimension_semantics<parallel>], iteration_bounds = array<i64: 4, 1>, scalar_prefetch = 0 : i64, scratch_operands = 0 : i64, tpu.core_type = #tpu.core_type<tc>, window_params = [{transform_indices = @transform_0, window_bounds = array<i64: 1, 128, 128>}, {transform_indices = @transform_1, window_bounds = array<i64: 1, 128, 128>}, {pipeline_mode = #tpu.pipeline_mode<synchronous>, transform_indices = @transform_2, window_bounds = array<i64: 1, 128>}, {transform_indices = @transform_3, window_bounds = array<i64: 1, 128, 128>}]} {
    %c0 = arith.constant 0 : index
    %c0_0 = arith.constant 0 : index
    %c0_1 = arith.constant 0 : index
    %0 = vector.load %arg2[%c0, %c0_0, %c0_1] : memref<1x128x128xbf16, #tpu.memory_space<vmem>>, vector<1x128x128xbf16>
    %1 = vector.shape_cast %0 : vector<1x128x128xbf16> to vector<128x128xbf16>
    %c0_2 = arith.constant 0 : index
    %c0_3 = arith.constant 0 : index
    %c0_4 = arith.constant 0 : index
    %2 = vector.load %arg3[%c0_2, %c0_3, %c0_4] : memref<1x128x128xbf16, #tpu.memory_space<vmem>>, vector<1x128x128xbf16>
    %3 = vector.shape_cast %2 : vector<1x128x128xbf16> to vector<128x128xbf16>
    %cst = arith.constant dense<0.000000e+00> : vector<128x128xf32>
    %4 = tpu.matmul %1, %3, %cst {dimension_numbers = #tpu.dot_dimension_numbers<[1], [0], [0], [1], [0, 0, 1, 1], [], []>} : vector<128x128xbf16>, vector<128x128xbf16>, vector<128x128xf32> -> vector<128x128xf32>
    %c0_5 = arith.constant 0 : index
    %c0_6 = arith.constant 0 : index
    %5 = vector.load %arg4[%c0_5, %c0_6] : memref<1x128xf32, #tpu.memory_space<vmem>>, vector<1x128xf32>
    %6 = vector.broadcast %5 : vector<1x128xf32> to vector<128x128xf32>
    %7 = arith.addf %4, %6 : vector<128x128xf32>
    %c0_7 = arith.constant 0 : index
    %c0_8 = arith.constant 0 : index
    %c0_9 = arith.constant 0 : index
    %8 = vector.load %arg5[%c0_7, %c0_8, %c0_9] : memref<1x128x128xf32, #tpu.memory_space<vmem>>, vector<1x128x128xf32>
    %9 = vector.shape_cast %8 : vector<1x128x128xf32> to vector<128x128xf32>
    %10 = vector.shape_cast %7 : vector<128x128xf32> to vector<1x128x128xf32>
    tpu.vector_store %arg5[%c0_7, %c0_8, %c0_9], %10 {strides = array<i32>} : memref<1x128x128xf32, #tpu.memory_space<vmem>>, vector<1x128x128xf32>,
    return
  }
  func.func @transform_0(%arg0: i32, %arg1: i32) -> (i32, i32, i32) {
    %c0_i32 = arith.constant 0 : i32
    %c0_i32_0 = arith.constant 0 : i32
    return %arg0, %arg1, %c0_i32 : i32, i32, i32
  }
  func.func @transform_1(%arg0: i32, %arg1: i32) -> (i32, i32, i32) {
    %c0_i32 = arith.constant 0 : i32
    %c0_i32_0 = arith.constant 0 : i32
    %c0_i32_1 = arith.constant 0 : i32
    return %arg0, %c0_i32, %c0_i32_0 : i32, i32, i32
  }
  func.func @transform_2(%arg0: i32, %arg1: i32) -> (i32, i32) {
    %c0_i32 = arith.constant 0 : i32
    %c0_i32_0 = arith.constant 0 : i32
    %c0_i32_1 = arith.constant 0 : i32
    return %c0_i32, %c0_i32_0 : i32, i32
  }
  func.func @transform_3(%arg0: i32, %arg1: i32) -> (i32, i32, i32) {
    %c0_i32 = arith.constant 0 : i32
    %c0_i32_0 = arith.constant 0 : i32
    return %arg0, %arg1, %c0_i32 : i32, i32, i32
  }
}

module attributes {stable_mosaic.version = 11 : i64} {
  func.func @_mm_kernel_single(%arg0: i32, %arg1: i32, %arg2: memref<1x128x128xbf16, #tpu.memory_space<vmem>>, %arg3: memref<1x128x128xbf16, #tpu.memory_space<vmem>>, %arg4: memref<1x128xf32, #tpu.memory_space<vmem>>, %arg5: memref<1x128x128xf32, #tpu.memory_space<vmem>>) attributes {dimension_semantics = [#tpu.dimension_semantics<parallel>, #tpu.dimension_semantics<parallel>], iteration_bounds = array<i64: 4, 4>, scalar_prefetch = 0 : i64, scratch_operands = 0 : i64, tpu.core_type = #tpu.core_type<tc>, window_params = [{transform_indices = @transform_0, window_bounds = array<i64: 1, 128, 128>}, {transform_indices = @transform_1, window_bounds = array<i64: 1, 128, 128>}, {pipeline_mode = #tpu.pipeline_mode<synchronous>, transform_indices = @transform_2, window_bounds = array<i64: 1, 128>}, {transform_indices = @transform_3, window_bounds = array<i64: 1, 128, 128>}]} {
    %c0 = arith.constant 0 : index
    %c0_0 = arith.constant 0 : index
    %c0_1 = arith.constant 0 : index
    %0 = vector.load %arg2[%c0, %c0_0, %c0_1] : memref<1x128x128xbf16, #tpu.memory_space<vmem>>, vector<1x128x128xbf16>
    %1 = vector.shape_cast %0 : vector<1x128x128xbf16> to vector<128x128xbf16>
    %c0_2 = arith.constant 0 : index
    %c0_3 = arith.constant 0 : index
    %c0_4 = arith.constant 0 : index
    %2 = vector.load %arg3[%c0_2, %c0_3, %c0_4] : memref<1x128x128xbf16, #tpu.memory_space<vmem>>, vector<1x128x128xbf16>
    %3 = vector.shape_cast %2 : vector<1x128x128xbf16> to vector<128x128xbf16>
    %cst = arith.constant dense<0.000000e+00> : vector<128x128xf32>
    %4 = tpu.matmul %1, %3, %cst {dimension_numbers = #tpu.dot_dimension_numbers<[1], [0], [0], [1], [0, 0, 1, 1], [], []>} : vector<128x128xbf16>, vector<128x128xbf16>, vector<128x128xf32> -> vector<128x128xf32>
    %c0_5 = arith.constant 0 : index
    %c0_6 = arith.constant 0 : index
    %5 = vector.load %arg4[%c0_5, %c0_6] : memref<1x128xf32, #tpu.memory_space<vmem>>, vector<1x128xf32>
    %6 = vector.broadcast %5 : vector<1x128xf32> to vector<128x128xf32>
    %7 = arith.addf %4, %6 : vector<128x128xf32>
    %8 = arith.negf %7 : vector<128x128xf32>
    %9 = math.exp %8 : vector<128x128xf32>
    %cst_7 = arith.constant 1.000000e+00 : f32
    %10 = vector.broadcast %cst_7 : f32 to vector<128x128xf32>
    %11 = arith.addf %10, %9 : vector<128x128xf32>
    %12 = arith.divf %10, %11 : vector<128x128xf32>
    %c0_8 = arith.constant 0 : index
    %c0_9 = arith.constant 0 : index
    %c0_10 = arith.constant 0 : index
    %13 = vector.load %arg5[%c0_8, %c0_9, %c0_10] : memref<1x128x128xf32, #tpu.memory_space<vmem>>, vector<1x128x128xf32>
    %14 = vector.shape_cast %13 : vector<1x128x128xf32> to vector<128x128xf32>
    %15 = vector.shape_cast %12 : vector<128x128xf32> to vector<1x128x128xf32>
    tpu.vector_store %arg5[%c0_8, %c0_9, %c0_10], %15 {strides = array<i32>} : memref<1x128x128xf32, #tpu.memory_space<vmem>>, vector<1x128x128xf32>,
    return
  }
  func.func @transform_0(%arg0: i32, %arg1: i32) -> (i32, i32, i32) {
    %c0_i32 = arith.constant 0 : i32
    %c0_i32_0 = arith.constant 0 : i32
    return %arg0, %arg1, %c0_i32 : i32, i32, i32
  }
  func.func @transform_1(%arg0: i32, %arg1: i32) -> (i32, i32, i32) {
    %c0_i32 = arith.constant 0 : i32
    %c0_i32_0 = arith.constant 0 : i32
    %c0_i32_1 = arith.constant 0 : i32
    return %arg0, %c0_i32, %c0_i32_0 : i32, i32, i32
  }
  func.func @transform_2(%arg0: i32, %arg1: i32) -> (i32, i32) {
    %c0_i32 = arith.constant 0 : i32
    %c0_i32_0 = arith.constant 0 : i32
    %c0_i32_1 = arith.constant 0 : i32
    return %c0_i32, %c0_i32_0 : i32, i32
  }
  func.func @transform_3(%arg0: i32, %arg1: i32) -> (i32, i32, i32) {
    %c0_i32 = arith.constant 0 : i32
    %c0_i32_0 = arith.constant 0 : i32
    return %arg0, %arg1, %c0_i32 : i32, i32, i32
  }
}

</mosaic_0001>

<llo_original>
// kernel: _lambda_.10
$region0: #{_lambda_.10}
  #allocation0 [shape = 'u32[]', space=smem, size = 0x4, offset = 0x4, fixed_abs, tag = 'smem constant byte address 0x4 - core index']
  #allocation1 [shape = 'u32[144,128]{1,0:T(1,128)}', space=vmem, size = 0x12000, scoped, tag = 'internal scratch']
  %s0 = inlined_call_operand.vmem [shape: bf16[1,512,128], index: 0, kind: input, shape index: {}]
  %s1 = inlined_call_operand.vmem [shape: bf16[1,128,128], index: 1, kind: input, shape index: {}]
  %s2 = inlined_call_operand.vmem [shape: f32[1,128], index: 2, kind: input, shape index: {}]
  %s3 = inlined_call_operand.vmem [shape: f32[1,512,128], index: 3, kind: output, shape index: {}]
  %s4 = sld [smem:[#allocation0]]
  $region45: #{_lambda_.10} parent=0
    _
  %s6 = ssub.s32 1, %s4
  %s7 = scalar_select 0, %s6, %s4
  loop: start=0, step=1, limit=6
  $region2: #{_lambda_.10} parent=0 // loop_pre_header
    _
  $region3: #{_lambda_.10} parent=0 // loop_header
    %s9 = sphi 0, %s13
    %p10 = scmp.ge.s32.totalorder %s9, 6
    %s16 = sphi 0, %s28
    %s17 = sphi 0, %s24
    %s18 = sphi 0, %s16
    %s19 = sphi 0, %s17
    %s20 = sphi 0, %s18
    %s21 = sphi 0, %s19
    %s33 = sphi 0, %s35
    %s36 = sphi 0, %s33
    %s37 = sphi 0, %s36
    %s53 = sphi 0, %s37
    %s59 = sphi 0, %s61
    %s62 = sphi 0, %s59
    %s63 = sphi 0, %s62
    %s79 = sphi 0, %s63
    %s83 = sphi 0, %s83
    %s85 = sphi 0, %s83
    %s86 = sphi 0, %s85
    %s100 = sphi 0, %s86
    %s108 = sphi 0, %s110
    %s111 = sphi 0, %s108
    %s112 = sphi 0, %s111
    %s128 = sphi 0, %s112
  $region4: #{_lambda_.10} parent=0 // loop_header_branch
    %12 = sbr.rel (%p10) target = $region8
  $region5: #{_lambda_.10} parent=0 // loop_body
    %s14 = ssub.s32 %s9, 1
    %s15 = ssub.s32 %s9, 2
    %s22 = sadd.s32 1, %s17
    %p23 = scmp.ge.s32.totalorder %s22, 4
    %s24 = scalar_select %p23, 0, %s22
    %s25 = sadd.s32 1, %s16
    %s26 = scalar_select %p23, %s25, %s16
    %p27 = scmp.ge.s32.totalorder %s26, 1
    %s28 = scalar_select %p27, 0, %s26
    %s29 = ssub.s32 %s16, %s28
    %s30 = ssub.s32 %s17, %s24
    %s31 = sor.u32 %s29, %s30
    %p32 = scmp.eq.s32.totalorder %s31, 0
    %s34 = sadd.s32 %s33, 1
    %s35 = scalar_select %p32, %s33, %s34
    %p38 = pneg %p32
    %p39 = scmp.eq.s32.totalorder %s9, 3
    %p40 = por %p38, %p39
    %p41 = scmp.ne.s32.totalorder %s33, %s36
    %p42 = scmp.eq.s32.totalorder %s9, 0
    %p43 = por %p41, %p42
    %p44 = scmp.ne.s32.totalorder %s33, %s36
    %p45 = scmp.eq.s32.totalorder %s14, 3
    %p46 = por %p44, %p45
    %p47 = scmp.ne.s32.totalorder %s36, %s37
    %p48 = scmp.eq.s32.totalorder %s14, 0
    %p49 = por %p47, %p48
    %p50 = scmp.ne.s32.totalorder %s36, %s37
    %p51 = scmp.eq.s32.totalorder %s15, 3
    %p52 = por %p50, %p51
    %p54 = scmp.ne.s32.totalorder %s37, %s53
    %p55 = scmp.eq.s32.totalorder %s15, 0
    %p56 = por %p54, %p55
    %s57 = ssub.s32 %s16, %s28
    %p58 = scmp.eq.s32.totalorder %s57, 0
    %s60 = sadd.s32 %s59, 1
    %s61 = scalar_select %p58, %s59, %s60
    %p64 = pneg %p58
    %p65 = scmp.eq.s32.totalorder %s9, 3
    %p66 = por %p64, %p65
    %p67 = scmp.ne.s32.totalorder %s59, %s62
    %p68 = scmp.eq.s32.totalorder %s9, 0
    %p69 = por %p67, %p68
    %p70 = scmp.ne.s32.totalorder %s59, %s62
    %p71 = scmp.eq.s32.totalorder %s14, 3
    %p72 = por %p70, %p71
    %p73 = scmp.ne.s32.totalorder %s62, %s63
    %p74 = scmp.eq.s32.totalorder %s14, 0
    %p75 = por %p73, %p74
    %p76 = scmp.ne.s32.totalorder %s62, %s63
    %p77 = scmp.eq.s32.totalorder %s15, 3
    %p78 = por %p76, %p77
    %p80 = scmp.ne.s32.totalorder %s63, %s79
    %p81 = scmp.eq.s32.totalorder %s15, 0
    %p82 = por %p80, %p81
    %s84 = sadd.s32 %s83, 1
    %p87 = scmp.eq.s32.totalorder %s9, 3
    %p88 = scmp.ne.s32.totalorder %s83, %s85
    %p89 = scmp.eq.s32.totalorder %s9, 0
    %p90 = por %p88, %p89
    %p91 = scmp.ne.s32.totalorder %s83, %s85
    %p92 = scmp.eq.s32.totalorder %s14, 3
    %p93 = por %p91, %p92
    %p94 = scmp.ne.s32.totalorder %s85, %s86
    %p95 = scmp.eq.s32.totalorder %s14, 0
    %p96 = por %p94, %p95
    %p97 = scmp.ne.s32.totalorder %s85, %s86
    %p98 = scmp.eq.s32.totalorder %s15, 3
    %p99 = por %p97, %p98
    %p101 = scmp.ne.s32.totalorder %s86, %s100
    %p102 = scmp.eq.s32.totalorder %s15, 0
    %p103 = por %p101, %p102
    %s104 = ssub.s32 %s16, %s28
    %s105 = ssub.s32 %s17, %s24
    %s106 = sor.u32 %s104, %s105
    %p107 = scmp.eq.s32.totalorder %s106, 0
    %s109 = sadd.s32 %s108, 1
    %s110 = scalar_select %p107, %s108, %s109
    %p113 = pneg %p107
    %p114 = scmp.eq.s32.totalorder %s9, 3
    %p115 = por %p113, %p114
    %p116 = scmp.ne.s32.totalorder %s108, %s111
    %p117 = scmp.eq.s32.totalorder %s9, 0
    %p118 = por %p116, %p117
    %p119 = scmp.ne.s32.totalorder %s108, %s111
    %p120 = scmp.eq.s32.totalorder %s14, 3
    %p121 = por %p119, %p120
    %p122 = scmp.ne.s32.totalorder %s111, %s112
    %p123 = scmp.eq.s32.totalorder %s14, 0
    %p124 = por %p122, %p123
    %p125 = scmp.ne.s32.totalorder %s111, %s112
    %p126 = scmp.eq.s32.totalorder %s15, 3
    %p127 = por %p125, %p126
    %p129 = scmp.ne.s32.totalorder %s112, %s128
    %p130 = scmp.eq.s32.totalorder %s15, 0
    %p131 = por %p129, %p130
    %p132 = scmp.le.s32.totalorder 1, %s9
    %p133 = scmp.lt.s32.totalorder %s9, 5
    %p134 = pnand %p132, %p133
    %p135 = pneg %p134
    // Predicated region
    $region9: #{_lambda_.10} parent=5 // pred_check
      _
    $region10: #{_lambda_.10} parent=5 // pred_check_branch
      %137 = sbr.rel (%p134) target = $region12
    $region11: #{_lambda_.10} parent=5 // pred_region
      %s138 = ssub.s32 %s9, 1
      // Predicated region
      $region13: #{_lambda_.10} parent=11 // pred_check
        %p139 = pneg %p75
      $region14: #{_lambda_.10} parent=11 // pred_check_branch
        %141 = sbr.rel (%p139) target = $region16
      $region15: #{_lambda_.10} parent=11 // pred_region
        %p142 = scmp.lt.s32.totalorder %s18, 0
        %s143 = scalar_select %p142, %s18, 0
        %s144 = smul.addr %s143, 16
        %s145 = smul.addr %s144, 4
        %s146 = scalar_lea.vmem %s1, %s145
      $region16: #{_lambda_.10} parent=11 // pred_fallthru
        _
      // Predicated region
      $region17: #{_lambda_.10} parent=11 // pred_check
        %p147 = pneg %p96
      $region18: #{_lambda_.10} parent=11 // pred_check_branch
        %149 = sbr.rel (%p147) target = $region20
      $region19: #{_lambda_.10} parent=11 // pred_region
        _
      $region20: #{_lambda_.10} parent=11 // pred_fallthru
        _
    $region12: #{_lambda_.10} parent=5 // pred_fallthru
      _
    %p150 = scmp.lt.s32.totalorder %s9, 4
    // Predicated region
    $region21: #{_lambda_.10} parent=5 // pred_check
      %p151 = pneg %p150
    $region22: #{_lambda_.10} parent=5 // pred_check_branch
      %153 = sbr.rel (%p151) target = $region24
    $region23: #{_lambda_.10} parent=5 // pred_region
      // Predicated region
      $region25: #{_lambda_.10} parent=23 // pred_check
        %p154 = pneg %p43
      $region26: #{_lambda_.10} parent=23 // pred_check_branch
        %156 = sbr.rel (%p154) target = $region28
      $region27: #{_lambda_.10} parent=23 // pred_region
        %s157 = smul.u32 16, %s17
        %p158 = scmp.lt.s32.totalorder %s16, 0
        %s159 = scalar_select %p158, %s16, 0
        %p160 = scmp.lt.s32.totalorder %s157, 63
        %s161 = scalar_select %p160, %s157, 63
        %s162 = smul.addr %s159, 64
        %s163 = sadd.s32 %s161, %s162
        %s164 = smul.addr %s163, 4
        %s165 = scalar_lea.vmem %s0, %s164
        %s166 = smul.u32 16, %s17
      $region28: #{_lambda_.10} parent=23 // pred_fallthru
        _
    $region24: #{_lambda_.10} parent=5 // pred_fallthru
      _
    %p167 = scmp.le.s32.totalorder 1, %s9
    %p168 = scmp.lt.s32.totalorder %s9, 5
    %p169 = pnand %p167, %p168
    %p170 = pneg %p169
    // Predicated region
    $region29: #{_lambda_.10} parent=5 // pred_check
      _
    $region30: #{_lambda_.10} parent=5 // pred_check_branch
      %172 = sbr.rel (%p169) target = $region32
    $region31: #{_lambda_.10} parent=5 // pred_region
      %s173 = ssub.s32 %s9, 1
      %s174 = smul.u32 16, %s19
      %p175 = scmp.lt.s32.totalorder %s18, 0
      %s176 = scalar_select %p175, %s18, 0
      %p177 = scmp.lt.s32.totalorder %s174, 63
      %s178 = scalar_select %p177, %s174, 63
      %s179 = smul.addr %s176, 64
      %s180 = sadd.s32 %s178, %s179
      %s181 = smul.addr %s180, 4
      %s182 = scalar_lea.vmem %s0, %s181
      %p183 = pneg %p49
      %p184 = pneg %p46
      %p185 = scmp.lt.s32.totalorder %s18, 0
      %s186 = scalar_select %p185, %s18, 0
      %s187 = smul.addr %s186, 16
      %s188 = smul.addr %s187, 4
      %s189 = scalar_lea.vmem %s1, %s188
      %p190 = pneg %p75
      %p191 = pneg %p72
      %p192 = pneg %p96
      %p193 = pneg %p93
      %p194 = pneg %p124
      %p195 = pneg %p121
      %s196 = smul.u32 16, %s19
      %p197 = scmp.lt.s32.totalorder %s18, 0
      %s198 = scalar_select %p197, %s18, 0
      %p199 = scmp.lt.s32.totalorder %s196, 63
      %s200 = scalar_select %p199, %s196, 63
      %s201 = smul.addr %s198, 64
      %s202 = sadd.s32 %s200, %s201
      %s203 = smul.addr %s202, 8
      %s204 = scalar_lea.vmem %s3, %s203
      %s205 = smul.u32 16, %s19
      %p206 = scmp.lt.s32.totalorder %s18, 0
      %s207 = scalar_select %p206, %s18, 0
      %p208 = scmp.lt.s32.totalorder %s205, 63
      %s209 = scalar_select %p208, %s205, 63
      %s210 = smul.addr %s207, 64
      %s211 = sadd.s32 %s209, %s210
      %s212 = smul.addr %s211, 4
      %s213 = scalar_lea.vmem %s0, %s212
      %s214 = smul.u32 16, %s19
      %p215 = scmp.lt.s32.totalorder %s18, 0
      %s216 = scalar_select %p215, %s18, 0
      %s217 = smul.addr %s216, 16
      %s218 = smul.addr %s217, 4
      %s219 = scalar_lea.vmem %s1, %s218
      %s220 = smul.u32 16, %s19
      %p221 = scmp.lt.s32.totalorder %s18, 0
      %s222 = scalar_select %p221, %s18, 0
      %p223 = scmp.lt.s32.totalorder %s220, 63
      %s224 = scalar_select %p223, %s220, 63
      %s225 = smul.addr %s222, 64
      %s226 = sadd.s32 %s224, %s225
      %s227 = smul.addr %s226, 8
      %s228 = scalar_lea.vmem %s3, %s227
      %s229 = smul.u32 16, %s19
      %v231 = vld [vmem:[%s213] sm:$0xf]
      %v232 = vld [vmem:[%s213 + $0x4] sm:$0xf]
      %v233 = vld [vmem:[%s213 + $0x8] sm:$0xf]
      %v234 = vld [vmem:[%s213 + $0xc] sm:$0xf]
      %v235 = vld [vmem:[%s213 + $0x10] sm:$0xf]
      %v236 = vld [vmem:[%s213 + $0x14] sm:$0xf]
      %v237 = vld [vmem:[%s213 + $0x18] sm:$0xf]
      %v238 = vld [vmem:[%s213 + $0x1c] sm:$0xf]
      %v239 = vld [vmem:[%s213 + $0x20] sm:$0xf]
      %v240 = vld [vmem:[%s213 + $0x24] sm:$0xf]
      %v241 = vld [vmem:[%s213 + $0x28] sm:$0xf]
      %v242 = vld [vmem:[%s213 + $0x2c] sm:$0xf]
      %v243 = vld [vmem:[%s213 + $0x30] sm:$0xf]
      %v244 = vld [vmem:[%s213 + $0x34] sm:$0xf]
      %v245 = vld [vmem:[%s213 + $0x38] sm:$0xf]
      %v246 = vld [vmem:[%s213 + $0x3c] sm:$0xf]
      %v247 = vld [vmem:[%s219] sm:$0xf]
      %v248 = vld [vmem:[%s219 + $0x4] sm:$0xf]
      %v249 = vld [vmem:[%s219 + $0x8] sm:$0xf]
      %v250 = vld [vmem:[%s219 + $0xc] sm:$0xf]
      %v251 = vld [vmem:[%s219 + $0x10] sm:$0xf]
      %v252 = vld [vmem:[%s219 + $0x14] sm:$0xf]
      %v253 = vld [vmem:[%s219 + $0x18] sm:$0xf]
      %v254 = vld [vmem:[%s219 + $0x1c] sm:$0xf]
      %v255 = vld [vmem:[%s219 + $0x20] sm:$0xf]
      %v256 = vld [vmem:[%s219 + $0x24] sm:$0xf]
      %v257 = vld [vmem:[%s219 + $0x28] sm:$0xf]
      %v258 = vld [vmem:[%s219 + $0x2c] sm:$0xf]
      %v259 = vld [vmem:[%s219 + $0x30] sm:$0xf]
      %v260 = vld [vmem:[%s219 + $0x34] sm:$0xf]
      %v261 = vld [vmem:[%s219 + $0x38] sm:$0xf]
      %v262 = vld [vmem:[%s219 + $0x3c] sm:$0xf]
      %v263 = vld [vmem:[%s2] sm:$0x1]
      %v265 = vlaneseq
      %v266 = vshrl.u32 %v265, 7
      %v267 = vsub.s32 0, %v266
      %v268 = vrot.slane %v263, %v267
      %v286 = vunpack.c.l.b16 %v231
      %v287 = vunpack.c.l.b16 %v232
      %v288 = vunpack.c.l.b16 %v233
      %v289 = vunpack.c.l.b16 %v234
      %v290 = vunpack.c.l.b16 %v235
      %v291 = vunpack.c.l.b16 %v236
      %v292 = vunpack.c.l.b16 %v237
      %v293 = vunpack.c.l.b16 %v238
      %v294 = vunpack.c.l.b16 %v239
      %v295 = vunpack.c.l.b16 %v240
      %v296 = vunpack.c.l.b16 %v241
      %v297 = vunpack.c.l.b16 %v242
      %v298 = vunpack.c.l.b16 %v243
      %v299 = vunpack.c.l.b16 %v244
      %v300 = vunpack.c.l.b16 %v245
      %v301 = vunpack.c.l.b16 %v246
      %v302 = vpack.c.b16 %v287, %v286
      %v303 = vpack.c.b16 %v289, %v288
      %v304 = vpack.c.b16 %v291, %v290
      %v305 = vpack.c.b16 %v293, %v292
      %v306 = vpack.c.b16 %v295, %v294
      %v307 = vpack.c.b16 %v297, %v296
      %v308 = vpack.c.b16 %v299, %v298
      %v309 = vpack.c.b16 %v301, %v300
      %v334 = vunpack.c.l.b16 %v247
      %v335 = vunpack.c.l.b16 %v248
      %v336 = vunpack.c.l.b16 %v249
      %v337 = vunpack.c.l.b16 %v250
      %v338 = vunpack.c.l.b16 %v251
      %v339 = vunpack.c.l.b16 %v252
      %v340 = vunpack.c.l.b16 %v253
      %v341 = vunpack.c.l.b16 %v254
      %v342 = vunpack.c.l.b16 %v255
      %v343 = vunpack.c.l.b16 %v256
      %v344 = vunpack.c.l.b16 %v257
      %v345 = vunpack.c.l.b16 %v258
      %v346 = vunpack.c.l.b16 %v259
      %v347 = vunpack.c.l.b16 %v260
      %v348 = vunpack.c.l.b16 %v261
      %v349 = vunpack.c.l.b16 %v262
      %v350 = vpack.c.b16 %v335, %v334
      %v351 = vpack.c.b16 %v337, %v336
      %v352 = vpack.c.b16 %v339, %v338
      %v353 = vpack.c.b16 %v341, %v340
      %v354 = vpack.c.b16 %v343, %v342
      %v355 = vpack.c.b16 %v345, %v344
      %v356 = vpack.c.b16 %v347, %v346
      %v357 = vpack.c.b16 %v349, %v348
      %366 = vmatprep.subr.bf16.mxu0 0
      %367 = vmatpush1.bf16.msra.mxu0 %v350
      %368 = vmatprep.subr.bf16.mxu0 0
      %369 = vmatpush1.bf16.msra.mxu0 %v351
      %370 = vmatprep.subr.bf16.mxu0 0
      %371 = vmatpush1.bf16.msra.mxu0 %v352
      %372 = vmatprep.subr.bf16.mxu0 0
      %373 = vmatpush1.bf16.msra.mxu0 %v353
      %374 = vmatprep.subr.bf16.mxu0 0
      %375 = vmatpush1.bf16.msra.mxu0 %v354
      %376 = vmatprep.subr.bf16.mxu0 0
      %377 = vmatpush1.bf16.msra.mxu0 %v355
      %378 = vmatprep.subr.bf16.mxu0 0
      %379 = vmatpush1.bf16.msra.mxu0 %v356
      %380 = vmatprep.subr.bf16.mxu0 0
      %381 = vmatpush1.bf16.msra.mxu0 %v357
      %382 = vmatprep.subr.bf16.mxu0 0
      %383 = vmatpush1.bf16.msra.mxu0 0
      %384 = vmatprep.subr.bf16.mxu0 0
      %385 = vmatpush1.bf16.msra.mxu0 0
      %386 = vmatprep.subr.bf16.mxu0 0
      %387 = vmatpush1.bf16.msra.mxu0 0
      %388 = vmatprep.subr.bf16.mxu0 0
      %389 = vmatpush1.bf16.msra.mxu0 0
      %390 = vmatprep.subr.bf16.mxu0 0
      %391 = vmatpush1.bf16.msra.mxu0 0
      %392 = vmatprep.subr.bf16.mxu0 0
      %393 = vmatpush1.bf16.msra.mxu0 0
      %394 = vmatprep.subr.bf16.mxu0 0
      %395 = vmatpush1.bf16.msra.mxu0 0
      %396 = vmatprep.subr.bf16.mxu0 0
      %397 = vmatpush1.bf16.msra.mxu0 0
      %398 = vmatprep.mubr.bf16.mxu0 0
      %399 = vmatmul.mubr.bf16.gmra.mrb[0].mxu0 %v302
      %v400 = vpop.f32.mrb[0].mxu0
      %v401 = vadd.f32 %v268, %v400
      %v402 = vpop.f32.mrb[0].mxu0
      %v403 = vpop.f32.mrb[0].mxu0
      %v404 = vadd.f32 %v268, %v403
      %v405 = vpop.f32.mrb[0].mxu0
      %406 = vmatprep.mubr.bf16.mxu0 0
      %407 = vmatmul.mubr.bf16.gmra.mrb[0].mxu0 %v303
      %v408 = vpop.f32.mrb[0].mxu0
      %v409 = vadd.f32 %v268, %v408
      %v410 = vpop.f32.mrb[0].mxu0
      %v411 = vpop.f32.mrb[0].mxu0
      %v412 = vadd.f32 %v268, %v411
      %v413 = vpop.f32.mrb[0].mxu0
      %414 = vmatprep.mubr.bf16.mxu0 0
      %415 = vmatmul.mubr.bf16.gmra.mrb[0].mxu0 %v304
      %v416 = vpop.f32.mrb[0].mxu0
      %v417 = vadd.f32 %v268, %v416
      %v418 = vpop.f32.mrb[0].mxu0
      %v419 = vpop.f32.mrb[0].mxu0
      %v420 = vadd.f32 %v268, %v419
      %v421 = vpop.f32.mrb[0].mxu0
      %422 = vmatprep.mubr.bf16.mxu0 0
      %423 = vmatmul.mubr.bf16.gmra.mrb[0].mxu0 %v305
      %v424 = vpop.f32.mrb[0].mxu0
      %v425 = vadd.f32 %v268, %v424
      %v426 = vpop.f32.mrb[0].mxu0
      %v427 = vpop.f32.mrb[0].mxu0
      %v428 = vadd.f32 %v268, %v427
      %v429 = vpop.f32.mrb[0].mxu0
      %430 = vmatprep.mubr.bf16.mxu0 0
      %431 = vmatmul.mubr.bf16.gmra.mrb[0].mxu0 %v306
      %v432 = vpop.f32.mrb[0].mxu0
      %v433 = vadd.f32 %v268, %v432
      %v434 = vpop.f32.mrb[0].mxu0
      %v435 = vpop.f32.mrb[0].mxu0
      %v436 = vadd.f32 %v268, %v435
      %v437 = vpop.f32.mrb[0].mxu0
      %438 = vmatprep.mubr.bf16.mxu0 0
      %439 = vmatmul.mubr.bf16.gmra.mrb[0].mxu0 %v307
      %v440 = vpop.f32.mrb[0].mxu0
      %v441 = vadd.f32 %v268, %v440
      %v442 = vpop.f32.mrb[0].mxu0
      %v443 = vpop.f32.mrb[0].mxu0
      %v444 = vadd.f32 %v268, %v443
      %v445 = vpop.f32.mrb[0].mxu0
      %446 = vmatprep.mubr.bf16.mxu0 0
      %447 = vmatmul.mubr.bf16.gmra.mrb[0].mxu0 %v308
      %v448 = vpop.f32.mrb[0].mxu0
      %v449 = vadd.f32 %v268, %v448
      %v450 = vpop.f32.mrb[0].mxu0
      %v451 = vpop.f32.mrb[0].mxu0
      %v452 = vadd.f32 %v268, %v451
      %v453 = vpop.f32.mrb[0].mxu0
      %454 = vmatprep.mubr.bf16.mxu0 0
      %455 = vmatmul.mubr.bf16.gmra.mrb[0].mxu0 %v309
      %v456 = vpop.f32.mrb[0].mxu0
      %v457 = vadd.f32 %v268, %v456
      %v458 = vpop.f32.mrb[0].mxu0
      %v459 = vpop.f32.mrb[0].mxu0
      %v460 = vadd.f32 %v268, %v459
      %v461 = vpop.f32.mrb[0].mxu0
      %462 = vdwg.mxu0
      %463 = vst [vmem:[%s228] sm:$0xff] %v401
      %464 = vst [vmem:[%s228 + $0x8] sm:$0xff] %v404
      %465 = vst [vmem:[%s228 + $0x10] sm:$0xff] %v409
      %466 = vst [vmem:[%s228 + $0x18] sm:$0xff] %v412
      %467 = vst [vmem:[%s228 + $0x20] sm:$0xff] %v417
      %468 = vst [vmem:[%s228 + $0x28] sm:$0xff] %v420
      %469 = vst [vmem:[%s228 + $0x30] sm:$0xff] %v425
      %470 = vst [vmem:[%s228 + $0x38] sm:$0xff] %v428
      %471 = vst [vmem:[%s228 + $0x40] sm:$0xff] %v433
      %472 = vst [vmem:[%s228 + $0x48] sm:$0xff] %v436
      %473 = vst [vmem:[%s228 + $0x50] sm:$0xff] %v441
      %474 = vst [vmem:[%s228 + $0x58] sm:$0xff] %v444
      %475 = vst [vmem:[%s228 + $0x60] sm:$0xff] %v449
      %476 = vst [vmem:[%s228 + $0x68] sm:$0xff] %v452
      %477 = vst [vmem:[%s228 + $0x70] sm:$0xff] %v457
      %478 = vst [vmem:[%s228 + $0x78] sm:$0xff] %v460
      %s479 = smul.u32 16, %s19
      %p480 = scmp.lt.s32.totalorder %s18, 0
      %s481 = scalar_select %p480, %s18, 0
      %p482 = scmp.lt.s32.totalorder %s479, 63
      %s483 = scalar_select %p482, %s479, 63
      %s484 = smul.addr %s481, 64
      %s485 = sadd.s32 %s483, %s484
      %s486 = smul.addr %s485, 8
      %s487 = scalar_lea.vmem %s3, %s486
      // Predicated region
      $region33: #{_lambda_.10} parent=31 // pred_check
        %p488 = pneg %p121
      $region34: #{_lambda_.10} parent=31 // pred_check_branch
        %490 = sbr.rel (%p488) target = $region36
      $region35: #{_lambda_.10} parent=31 // pred_region
        %s491 = smul.u32 16, %s19
      $region36: #{_lambda_.10} parent=31 // pred_fallthru
        _
    $region32: #{_lambda_.10} parent=5 // pred_fallthru
      _
    %p492 = scmp.le.s32.totalorder 2, %s9
    // Predicated region
    $region37: #{_lambda_.10} parent=5 // pred_check
      %p493 = pneg %p492
    $region38: #{_lambda_.10} parent=5 // pred_check_branch
      %495 = sbr.rel (%p493) target = $region40
    $region39: #{_lambda_.10} parent=5 // pred_region
      %s496 = ssub.s32 %s9, 2
      // Predicated region
      $region41: #{_lambda_.10} parent=39 // pred_check
        %p497 = pneg %p127
      $region42: #{_lambda_.10} parent=39 // pred_check_branch
        %499 = sbr.rel (%p497) target = $region44
      $region43: #{_lambda_.10} parent=39 // pred_region
        %s500 = smul.u32 16, %s21
        %p501 = scmp.lt.s32.totalorder %s20, 0
        %s502 = scalar_select %p501, %s20, 0
        %p503 = scmp.lt.s32.totalorder %s500, 63
        %s504 = scalar_select %p503, %s500, 63
        %s505 = smul.addr %s502, 64
        %s506 = sadd.s32 %s504, %s505
        %s507 = smul.addr %s506, 8
        %s508 = scalar_lea.vmem %s3, %s507
      $region44: #{_lambda_.10} parent=39 // pred_fallthru
        _
    $region40: #{_lambda_.10} parent=5 // pred_fallthru
      _
  $region6: #{_lambda_.10} parent=0 // loop_footer
    %s13 = sadd.s32 1, %s9
  $region7: #{_lambda_.10} parent=0 // loop_footer_branch
    %8 = sbr.rel target = $region3
  $region8: #{_lambda_.10} parent=0 // loop_exit
    _

// kernel: _lambda_.11
$region0: #{_lambda_.11}
  #allocation0 [shape = 'u32[]', space=smem, size = 0x4, offset = 0x4, fixed_abs, tag = 'smem constant byte address 0x4 - core index']
  #allocation1 [shape = 'u32[144,128]{1,0:T(1,128)}', space=vmem, size = 0x12000, scoped, tag = 'internal scratch']
  %s0 = inlined_call_operand.vmem [shape: bf16[1,128,128], index: 0, kind: input, shape index: {}]
  %s1 = inlined_call_operand.vmem [shape: bf16[1,128,128], index: 1, kind: input, shape index: {}]
  %s2 = inlined_call_operand.vmem [shape: f32[1,128], index: 2, kind: input, shape index: {}]
  %s3 = inlined_call_operand.vmem [shape: f32[1,128,128], index: 3, kind: output, shape index: {}]
  %s4 = sld [smem:[#allocation0]]
  $region22: #{_lambda_.11} parent=0
    _
  %s6 = ssub.s32 1, %s4
  %s7 = scalar_select 0, %s6, %s4
  // Predicated region
  $region2: #{_lambda_.11} parent=0 // pred_check
    _
  $region3: #{_lambda_.11} parent=0 // pred_check_branch
    %9 = sbr.rel (0) target = $region5
  $region4: #{_lambda_.11} parent=0 // pred_region
    _
  $region5: #{_lambda_.11} parent=0 // pred_fallthru
    _
  // Predicated region
  $region6: #{_lambda_.11} parent=0 // pred_check
    _
  $region7: #{_lambda_.11} parent=0 // pred_check_branch
    %11 = sbr.rel (0) target = $region9
  $region8: #{_lambda_.11} parent=0 // pred_region
    _
  $region9: #{_lambda_.11} parent=0 // pred_fallthru
    _
  // Predicated region
  $region10: #{_lambda_.11} parent=0 // pred_check
    _
  $region11: #{_lambda_.11} parent=0 // pred_check_branch
    %13 = sbr.rel (0) target = $region13
  $region12: #{_lambda_.11} parent=0 // pred_region
    _
  $region13: #{_lambda_.11} parent=0 // pred_fallthru
    _
  %v15 = vld [vmem:[%s0] sm:$0xf]
  %v16 = vld [vmem:[%s0 + $0x4] sm:$0xf]
  %v17 = vld [vmem:[%s0 + $0x8] sm:$0xf]
  %v18 = vld [vmem:[%s0 + $0xc] sm:$0xf]
  %v19 = vld [vmem:[%s0 + $0x10] sm:$0xf]
  %v20 = vld [vmem:[%s0 + $0x14] sm:$0xf]
  %v21 = vld [vmem:[%s0 + $0x18] sm:$0xf]
  %v22 = vld [vmem:[%s0 + $0x1c] sm:$0xf]
  %v23 = vld [vmem:[%s0 + $0x20] sm:$0xf]
  %v24 = vld [vmem:[%s0 + $0x24] sm:$0xf]
  %v25 = vld [vmem:[%s0 + $0x28] sm:$0xf]
  %v26 = vld [vmem:[%s0 + $0x2c] sm:$0xf]
  %v27 = vld [vmem:[%s0 + $0x30] sm:$0xf]
  %v28 = vld [vmem:[%s0 + $0x34] sm:$0xf]
  %v29 = vld [vmem:[%s0 + $0x38] sm:$0xf]
  %v30 = vld [vmem:[%s0 + $0x3c] sm:$0xf]
  %v31 = vld [vmem:[%s1] sm:$0xf]
  %v32 = vld [vmem:[%s1 + $0x4] sm:$0xf]
  %v33 = vld [vmem:[%s1 + $0x8] sm:$0xf]
  %v34 = vld [vmem:[%s1 + $0xc] sm:$0xf]
  %v35 = vld [vmem:[%s1 + $0x10] sm:$0xf]
  %v36 = vld [vmem:[%s1 + $0x14] sm:$0xf]
  %v37 = vld [vmem:[%s1 + $0x18] sm:$0xf]
  %v38 = vld [vmem:[%s1 + $0x1c] sm:$0xf]
  %v39 = vld [vmem:[%s1 + $0x20] sm:$0xf]
  %v40 = vld [vmem:[%s1 + $0x24] sm:$0xf]
  %v41 = vld [vmem:[%s1 + $0x28] sm:$0xf]
  %v42 = vld [vmem:[%s1 + $0x2c] sm:$0xf]
  %v43 = vld [vmem:[%s1 + $0x30] sm:$0xf]
  %v44 = vld [vmem:[%s1 + $0x34] sm:$0xf]
  %v45 = vld [vmem:[%s1 + $0x38] sm:$0xf]
  %v46 = vld [vmem:[%s1 + $0x3c] sm:$0xf]
  %v47 = vld [vmem:[%s2] sm:$0x1]
  %v49 = vlaneseq
  %v50 = vshrl.u32 %v49, 7
  %v51 = vsub.s32 0, %v50
  %v52 = vrot.slane %v47, %v51
  %v70 = vunpack.c.l.b16 %v15
  %v71 = vunpack.c.l.b16 %v16
  %v72 = vunpack.c.l.b16 %v17
  %v73 = vunpack.c.l.b16 %v18
  %v74 = vunpack.c.l.b16 %v19
  %v75 = vunpack.c.l.b16 %v20
  %v76 = vunpack.c.l.b16 %v21
  %v77 = vunpack.c.l.b16 %v22
  %v78 = vunpack.c.l.b16 %v23
  %v79 = vunpack.c.l.b16 %v24
  %v80 = vunpack.c.l.b16 %v25
  %v81 = vunpack.c.l.b16 %v26
  %v82 = vunpack.c.l.b16 %v27
  %v83 = vunpack.c.l.b16 %v28
  %v84 = vunpack.c.l.b16 %v29
  %v85 = vunpack.c.l.b16 %v30
  %v86 = vpack.c.b16 %v71, %v70
  %v87 = vpack.c.b16 %v73, %v72
  %v88 = vpack.c.b16 %v75, %v74
  %v89 = vpack.c.b16 %v77, %v76
  %v90 = vpack.c.b16 %v79, %v78
  %v91 = vpack.c.b16 %v81, %v80
  %v92 = vpack.c.b16 %v83, %v82
  %v93 = vpack.c.b16 %v85, %v84
  %v118 = vunpack.c.l.b16 %v31
  %v119 = vunpack.c.l.b16 %v32
  %v120 = vunpack.c.l.b16 %v33
  %v121 = vunpack.c.l.b16 %v34
  %v122 = vunpack.c.l.b16 %v35
  %v123 = vunpack.c.l.b16 %v36
  %v124 = vunpack.c.l.b16 %v37
  %v125 = vunpack.c.l.b16 %v38
  %v126 = vunpack.c.l.b16 %v39
  %v127 = vunpack.c.l.b16 %v40
  %v128 = vunpack.c.l.b16 %v41
  %v129 = vunpack.c.l.b16 %v42
  %v130 = vunpack.c.l.b16 %v43
  %v131 = vunpack.c.l.b16 %v44
  %v132 = vunpack.c.l.b16 %v45
  %v133 = vunpack.c.l.b16 %v46
  %v134 = vpack.c.b16 %v119, %v118
  %v135 = vpack.c.b16 %v121, %v120
  %v136 = vpack.c.b16 %v123, %v122
  %v137 = vpack.c.b16 %v125, %v124
  %v138 = vpack.c.b16 %v127, %v126
  %v139 = vpack.c.b16 %v129, %v128
  %v140 = vpack.c.b16 %v131, %v130
  %v141 = vpack.c.b16 %v133, %v132
  %150 = vmatprep.subr.bf16.mxu0 0
  %151 = vmatpush1.bf16.msra.mxu0 %v134
  %152 = vmatprep.subr.bf16.mxu0 0
  %153 = vmatpush1.bf16.msra.mxu0 %v135
  %154 = vmatprep.subr.bf16.mxu0 0
  %155 = vmatpush1.bf16.msra.mxu0 %v136
  %156 = vmatprep.subr.bf16.mxu0 0
  %157 = vmatpush1.bf16.msra.mxu0 %v137
  %158 = vmatprep.subr.bf16.mxu0 0
  %159 = vmatpush1.bf16.msra.mxu0 %v138
  %160 = vmatprep.subr.bf16.mxu0 0
  %161 = vmatpush1.bf16.msra.mxu0 %v139
  %162 = vmatprep.subr.bf16.mxu0 0
  %163 = vmatpush1.bf16.msra.mxu0 %v140
  %164 = vmatprep.subr.bf16.mxu0 0
  %165 = vmatpush1.bf16.msra.mxu0 %v141
  %166 = vmatprep.subr.bf16.mxu0 0
  %167 = vmatpush1.bf16.msra.mxu0 0
  %168 = vmatprep.subr.bf16.mxu0 0
  %169 = vmatpush1.bf16.msra.mxu0 0
  %170 = vmatprep.subr.bf16.mxu0 0
  %171 = vmatpush1.bf16.msra.mxu0 0
  %172 = vmatprep.subr.bf16.mxu0 0
  %173 = vmatpush1.bf16.msra.mxu0 0
  %174 = vmatprep.subr.bf16.mxu0 0
  %175 = vmatpush1.bf16.msra.mxu0 0
  %176 = vmatprep.subr.bf16.mxu0 0
  %177 = vmatpush1.bf16.msra.mxu0 0
  %178 = vmatprep.subr.bf16.mxu0 0
  %179 = vmatpush1.bf16.msra.mxu0 0
  %180 = vmatprep.subr.bf16.mxu0 0
  %181 = vmatpush1.bf16.msra.mxu0 0
  %182 = vmatprep.mubr.bf16.mxu0 0
  %183 = vmatmul.mubr.bf16.gmra.mrb[0].mxu0 %v86
  %v184 = vpop.f32.mrb[0].mxu0
  %v185 = vadd.f32 %v52, %v184
  %v186 = vpop.f32.mrb[0].mxu0
  %v187 = vpop.f32.mrb[0].mxu0
  %v188 = vadd.f32 %v52, %v187
  %v189 = vpop.f32.mrb[0].mxu0
  %190 = vmatprep.mubr.bf16.mxu0 0
  %191 = vmatmul.mubr.bf16.gmra.mrb[0].mxu0 %v87
  %v192 = vpop.f32.mrb[0].mxu0
  %v193 = vadd.f32 %v52, %v192
  %v194 = vpop.f32.mrb[0].mxu0
  %v195 = vpop.f32.mrb[0].mxu0
  %v196 = vadd.f32 %v52, %v195
  %v197 = vpop.f32.mrb[0].mxu0
  %198 = vmatprep.mubr.bf16.mxu0 0
  %199 = vmatmul.mubr.bf16.gmra.mrb[0].mxu0 %v88
  %v200 = vpop.f32.mrb[0].mxu0
  %v201 = vadd.f32 %v52, %v200
  %v202 = vpop.f32.mrb[0].mxu0
  %v203 = vpop.f32.mrb[0].mxu0
  %v204 = vadd.f32 %v52, %v203
  %v205 = vpop.f32.mrb[0].mxu0
  %206 = vmatprep.mubr.bf16.mxu0 0
  %207 = vmatmul.mubr.bf16.gmra.mrb[0].mxu0 %v89
  %v208 = vpop.f32.mrb[0].mxu0
  %v209 = vadd.f32 %v52, %v208
  %v210 = vpop.f32.mrb[0].mxu0
  %v211 = vpop.f32.mrb[0].mxu0
  %v212 = vadd.f32 %v52, %v211
  %v213 = vpop.f32.mrb[0].mxu0
  %214 = vmatprep.mubr.bf16.mxu0 0
  %215 = vmatmul.mubr.bf16.gmra.mrb[0].mxu0 %v90
  %v216 = vpop.f32.mrb[0].mxu0
  %v217 = vadd.f32 %v52, %v216
  %v218 = vpop.f32.mrb[0].mxu0
  %v219 = vpop.f32.mrb[0].mxu0
  %v220 = vadd.f32 %v52, %v219
  %v221 = vpop.f32.mrb[0].mxu0
  %222 = vmatprep.mubr.bf16.mxu0 0
  %223 = vmatmul.mubr.bf16.gmra.mrb[0].mxu0 %v91
  %v224 = vpop.f32.mrb[0].mxu0
  %v225 = vadd.f32 %v52, %v224
  %v226 = vpop.f32.mrb[0].mxu0
  %v227 = vpop.f32.mrb[0].mxu0
  %v228 = vadd.f32 %v52, %v227
  %v229 = vpop.f32.mrb[0].mxu0
  %230 = vmatprep.mubr.bf16.mxu0 0
  %231 = vmatmul.mubr.bf16.gmra.mrb[0].mxu0 %v92
  %v232 = vpop.f32.mrb[0].mxu0
  %v233 = vadd.f32 %v52, %v232
  %v234 = vpop.f32.mrb[0].mxu0
  %v235 = vpop.f32.mrb[0].mxu0
  %v236 = vadd.f32 %v52, %v235
  %v237 = vpop.f32.mrb[0].mxu0
  %238 = vmatprep.mubr.bf16.mxu0 0
  %239 = vmatmul.mubr.bf16.gmra.mrb[0].mxu0 %v93
  %v240 = vpop.f32.mrb[0].mxu0
  %v241 = vadd.f32 %v52, %v240
  %v242 = vpop.f32.mrb[0].mxu0
  %v243 = vpop.f32.mrb[0].mxu0
  %v244 = vadd.f32 %v52, %v243
  %v245 = vpop.f32.mrb[0].mxu0
  %246 = vdwg.mxu0
  %247 = vst [vmem:[%s3] sm:$0xff] %v185
  %248 = vst [vmem:[%s3 + $0x8] sm:$0xff] %v188
  %249 = vst [vmem:[%s3 + $0x10] sm:$0xff] %v193
  %250 = vst [vmem:[%s3 + $0x18] sm:$0xff] %v196
  %251 = vst [vmem:[%s3 + $0x20] sm:$0xff] %v201
  %252 = vst [vmem:[%s3 + $0x28] sm:$0xff] %v204
  %253 = vst [vmem:[%s3 + $0x30] sm:$0xff] %v209
  %254 = vst [vmem:[%s3 + $0x38] sm:$0xff] %v212
  %255 = vst [vmem:[%s3 + $0x40] sm:$0xff] %v217
  %256 = vst [vmem:[%s3 + $0x48] sm:$0xff] %v220
  %257 = vst [vmem:[%s3 + $0x50] sm:$0xff] %v225
  %258 = vst [vmem:[%s3 + $0x58] sm:$0xff] %v228
  %259 = vst [vmem:[%s3 + $0x60] sm:$0xff] %v233
  %260 = vst [vmem:[%s3 + $0x68] sm:$0xff] %v236
  %261 = vst [vmem:[%s3 + $0x70] sm:$0xff] %v241
  %262 = vst [vmem:[%s3 + $0x78] sm:$0xff] %v244
  // Predicated region
  $region14: #{_lambda_.11} parent=0 // pred_check
    _
  $region15: #{_lambda_.11} parent=0 // pred_check_branch
    %264 = sbr.rel (0) target = $region17
  $region16: #{_lambda_.11} parent=0 // pred_region
    _
  $region17: #{_lambda_.11} parent=0 // pred_fallthru
    _
  // Predicated region
  $region18: #{_lambda_.11} parent=0 // pred_check
    _
  $region19: #{_lambda_.11} parent=0 // pred_check_branch
    %266 = sbr.rel (0) target = $region21
  $region20: #{_lambda_.11} parent=0 // pred_region
    _
  $region21: #{_lambda_.11} parent=0 // pred_fallthru
    _

// kernel: _lambda_.12
$region0: #{_lambda_.12}
  #allocation0 [shape = 'u32[]', space=smem, size = 0x4, offset = 0x4, fixed_abs, tag = 'smem constant byte address 0x4 - core index']
  #allocation1 [shape = 'u32[144,128]{1,0:T(1,128)}', space=vmem, size = 0x12000, scoped, tag = 'internal scratch']
  %s0 = inlined_call_operand.vmem [shape: bf16[1,32,256], index: 0, kind: input, shape index: {}]
  %s1 = inlined_call_operand.vmem [shape: bf16[1,256,128], index: 1, kind: input, shape index: {}]
  %s2 = inlined_call_operand.vmem [shape: f32[1,128], index: 2, kind: input, shape index: {}]
  %s3 = inlined_call_operand.vmem [shape: f32[1,32,128], index: 3, kind: output, shape index: {}]
  %s4 = sld [smem:[#allocation0]]
  $region22: #{_lambda_.12} parent=0
    _
  %s6 = ssub.s32 1, %s4
  %s7 = scalar_select 0, %s6, %s4
  // Predicated region
  $region2: #{_lambda_.12} parent=0 // pred_check
    _
  $region3: #{_lambda_.12} parent=0 // pred_check_branch
    %9 = sbr.rel (0) target = $region5
  $region4: #{_lambda_.12} parent=0 // pred_region
    _
  $region5: #{_lambda_.12} parent=0 // pred_fallthru
    _
  // Predicated region
  $region6: #{_lambda_.12} parent=0 // pred_check
    _
  $region7: #{_lambda_.12} parent=0 // pred_check_branch
    %11 = sbr.rel (0) target = $region9
  $region8: #{_lambda_.12} parent=0 // pred_region
    _
  $region9: #{_lambda_.12} parent=0 // pred_fallthru
    _
  // Predicated region
  $region10: #{_lambda_.12} parent=0 // pred_check
    _
  $region11: #{_lambda_.12} parent=0 // pred_check_branch
    %13 = sbr.rel (0) target = $region13
  $region12: #{_lambda_.12} parent=0 // pred_region
    _
  $region13: #{_lambda_.12} parent=0 // pred_fallthru
    _
  %v15 = vld [vmem:[%s0] sm:$0xff]
  %v16 = vld [vmem:[%s0 + $0x8] sm:$0xff]
  %v17 = vld [vmem:[%s0 + $0x10] sm:$0xff]
  %v18 = vld [vmem:[%s0 + $0x18] sm:$0xff]
  %v19 = vld [vmem:[%s1] sm:$0xf]
  %v20 = vld [vmem:[%s1 + $0x4] sm:$0xf]
  %v21 = vld [vmem:[%s1 + $0x8] sm:$0xf]
  %v22 = vld [vmem:[%s1 + $0xc] sm:$0xf]
  %v23 = vld [vmem:[%s1 + $0x10] sm:$0xf]
  %v24 = vld [vmem:[%s1 + $0x14] sm:$0xf]
  %v25 = vld [vmem:[%s1 + $0x18] sm:$0xf]
  %v26 = vld [vmem:[%s1 + $0x1c] sm:$0xf]
  %v27 = vld [vmem:[%s1 + $0x20] sm:$0xf]
  %v28 = vld [vmem:[%s1 + $0x24] sm:$0xf]
  %v29 = vld [vmem:[%s1 + $0x28] sm:$0xf]
  %v30 = vld [vmem:[%s1 + $0x2c] sm:$0xf]
  %v31 = vld [vmem:[%s1 + $0x30] sm:$0xf]
  %v32 = vld [vmem:[%s1 + $0x34] sm:$0xf]
  %v33 = vld [vmem:[%s1 + $0x38] sm:$0xf]
  %v34 = vld [vmem:[%s1 + $0x3c] sm:$0xf]
  %v35 = vld [vmem:[%s1 + $0x40] sm:$0xf]
  %v36 = vld [vmem:[%s1 + $0x44] sm:$0xf]
  %v37 = vld [vmem:[%s1 + $0x48] sm:$0xf]
  %v38 = vld [vmem:[%s1 + $0x4c] sm:$0xf]
  %v39 = vld [vmem:[%s1 + $0x50] sm:$0xf]
  %v40 = vld [vmem:[%s1 + $0x54] sm:$0xf]
  %v41 = vld [vmem:[%s1 + $0x58] sm:$0xf]
  %v42 = vld [vmem:[%s1 + $0x5c] sm:$0xf]
  %v43 = vld [vmem:[%s1 + $0x60] sm:$0xf]
  %v44 = vld [vmem:[%s1 + $0x64] sm:$0xf]
  %v45 = vld [vmem:[%s1 + $0x68] sm:$0xf]
  %v46 = vld [vmem:[%s1 + $0x6c] sm:$0xf]
  %v47 = vld [vmem:[%s1 + $0x70] sm:$0xf]
  %v48 = vld [vmem:[%s1 + $0x74] sm:$0xf]
  %v49 = vld [vmem:[%s1 + $0x78] sm:$0xf]
  %v50 = vld [vmem:[%s1 + $0x7c] sm:$0xf]
  %v51 = vld [vmem:[%s2] sm:$0x1]
  %v53 = vlaneseq
  %v54 = vshrl.u32 %v53, 7
  %v55 = vsub.s32 0, %v54
  %v56 = vrot.slane %v51, %v55
  %v62 = vunpack.c.l.b16 %v15
  %v63 = vunpack.c.h.b16 %v15
  %v64 = vunpack.c.l.b16 %v16
  %v65 = vunpack.c.h.b16 %v16
  %v66 = vunpack.c.l.b16 %v17
  %v67 = vunpack.c.h.b16 %v17
  %v68 = vunpack.c.l.b16 %v18
  %v69 = vunpack.c.h.b16 %v18
  %v70 = vpack.c.b16 %v64, %v62
  %v71 = vpack.c.b16 %v65, %v63
  %v72 = vpack.c.b16 %v68, %v66
  %v73 = vpack.c.b16 %v69, %v67
  %v110 = vunpack.c.l.b16 %v19
  %v111 = vunpack.c.l.b16 %v20
  %v112 = vunpack.c.l.b16 %v21
  %v113 = vunpack.c.l.b16 %v22
  %v114 = vunpack.c.l.b16 %v23
  %v115 = vunpack.c.l.b16 %v24
  %v116 = vunpack.c.l.b16 %v25
  %v117 = vunpack.c.l.b16 %v26
  %v118 = vunpack.c.l.b16 %v27
  %v119 = vunpack.c.l.b16 %v28
  %v120 = vunpack.c.l.b16 %v29
  %v121 = vunpack.c.l.b16 %v30
  %v122 = vunpack.c.l.b16 %v31
  %v123 = vunpack.c.l.b16 %v32
  %v124 = vunpack.c.l.b16 %v33
  %v125 = vunpack.c.l.b16 %v34
  %v126 = vunpack.c.l.b16 %v35
  %v127 = vunpack.c.l.b16 %v36
  %v128 = vunpack.c.l.b16 %v37
  %v129 = vunpack.c.l.b16 %v38
  %v130 = vunpack.c.l.b16 %v39
  %v131 = vunpack.c.l.b16 %v40
  %v132 = vunpack.c.l.b16 %v41
  %v133 = vunpack.c.l.b16 %v42
  %v134 = vunpack.c.l.b16 %v43
  %v135 = vunpack.c.l.b16 %v44
  %v136 = vunpack.c.l.b16 %v45
  %v137 = vunpack.c.l.b16 %v46
  %v138 = vunpack.c.l.b16 %v47
  %v139 = vunpack.c.l.b16 %v48
  %v140 = vunpack.c.l.b16 %v49
  %v141 = vunpack.c.l.b16 %v50
  %v142 = vpack.c.b16 %v111, %v110
  %v143 = vpack.c.b16 %v113, %v112
  %v144 = vpack.c.b16 %v115, %v114
  %v145 = vpack.c.b16 %v117, %v116
  %v146 = vpack.c.b16 %v119, %v118
  %v147 = vpack.c.b16 %v121, %v120
  %v148 = vpack.c.b16 %v123, %v122
  %v149 = vpack.c.b16 %v125, %v124
  %v150 = vpack.c.b16 %v127, %v126
  %v151 = vpack.c.b16 %v129, %v128
  %v152 = vpack.c.b16 %v131, %v130
  %v153 = vpack.c.b16 %v133, %v132
  %v154 = vpack.c.b16 %v135, %v134
  %v155 = vpack.c.b16 %v137, %v136
  %v156 = vpack.c.b16 %v139, %v138
  %v157 = vpack.c.b16 %v141, %v140
  %174 = vmatprep.subr.bf16.mxu0 0
  %175 = vmatpush1.bf16.msra.mxu0 %v142
  %176 = vmatprep.subr.bf16.mxu0 0
  %177 = vmatpush1.bf16.msra.mxu0 %v143
  %178 = vmatprep.subr.bf16.mxu0 0
  %179 = vmatpush1.bf16.msra.mxu0 %v144
  %180 = vmatprep.subr.bf16.mxu0 0
  %181 = vmatpush1.bf16.msra.mxu0 %v145
  %182 = vmatprep.subr.bf16.mxu0 0
  %183 = vmatpush1.bf16.msra.mxu0 %v146
  %184 = vmatprep.subr.bf16.mxu0 0
  %185 = vmatpush1.bf16.msra.mxu0 %v147
  %186 = vmatprep.subr.bf16.mxu0 0
  %187 = vmatpush1.bf16.msra.mxu0 %v148
  %188 = vmatprep.subr.bf16.mxu0 0
  %189 = vmatpush1.bf16.msra.mxu0 %v149
  %190 = vmatprep.subr.bf16.mxu0 0
  %191 = vmatpush1.bf16.msra.mxu0 %v150
  %192 = vmatprep.subr.bf16.mxu0 0
  %193 = vmatpush1.bf16.msra.mxu0 %v151
  %194 = vmatprep.subr.bf16.mxu0 0
  %195 = vmatpush1.bf16.msra.mxu0 %v152
  %196 = vmatprep.subr.bf16.mxu0 0
  %197 = vmatpush1.bf16.msra.mxu0 %v153
  %198 = vmatprep.subr.bf16.mxu0 0
  %199 = vmatpush1.bf16.msra.mxu0 %v154
  %200 = vmatprep.subr.bf16.mxu0 0
  %201 = vmatpush1.bf16.msra.mxu0 %v155
  %202 = vmatprep.subr.bf16.mxu0 0
  %203 = vmatpush1.bf16.msra.mxu0 %v156
  %204 = vmatprep.subr.bf16.mxu0 0
  %205 = vmatpush1.bf16.msra.mxu0 %v157
  %206 = vmatprep.mubr.bf16.mxu0 %v71
  %207 = vmatmul.mubr.bf16.gmra.mrb[0].mxu0 %v70
  %v208 = vpop.f32.mrb[0].mxu0
  %v209 = vadd.f32 %v56, %v208
  %v210 = vpop.f32.mrb[0].mxu0
  %v211 = vpop.f32.mrb[0].mxu0
  %v212 = vadd.f32 %v56, %v211
  %v213 = vpop.f32.mrb[0].mxu0
  %214 = vmatprep.mubr.bf16.mxu0 %v73
  %215 = vmatmul.mubr.bf16.gmra.mrb[0].mxu0 %v72
  %v216 = vpop.f32.mrb[0].mxu0
  %v217 = vadd.f32 %v56, %v216
  %v218 = vpop.f32.mrb[0].mxu0
  %v219 = vpop.f32.mrb[0].mxu0
  %v220 = vadd.f32 %v56, %v219
  %v221 = vpop.f32.mrb[0].mxu0
  %222 = vdwg.mxu0
  %223 = vst [vmem:[%s3] sm:$0xff] %v209
  %224 = vst [vmem:[%s3 + $0x8] sm:$0xff] %v212
  %225 = vst [vmem:[%s3 + $0x10] sm:$0xff] %v217
  %226 = vst [vmem:[%s3 + $0x18] sm:$0xff] %v220
  // Predicated region
  $region14: #{_lambda_.12} parent=0 // pred_check
    _
  $region15: #{_lambda_.12} parent=0 // pred_check_branch
    %228 = sbr.rel (0) target = $region17
  $region16: #{_lambda_.12} parent=0 // pred_region
    _
  $region17: #{_lambda_.12} parent=0 // pred_fallthru
    _
  // Predicated region
  $region18: #{_lambda_.12} parent=0 // pred_check
    _
  $region19: #{_lambda_.12} parent=0 // pred_check_branch
    %230 = sbr.rel (0) target = $region21
  $region20: #{_lambda_.12} parent=0 // pred_region
    _
  $region21: #{_lambda_.12} parent=0 // pred_fallthru
    _

// kernel: _lambda_.15
$region0: #{_lambda_.15}
  #allocation0 [shape = 'u32[]', space=smem, size = 0x4, offset = 0x4, fixed_abs, tag = 'smem constant byte address 0x4 - core index']
  #allocation1 [shape = 'u32[144,128]{1,0:T(1,128)}', space=vmem, size = 0x12000, scoped, tag = 'internal scratch']
  %s0 = inlined_call_operand.vmem [shape: bf16[4,16,256], index: 0, kind: input, shape index: {}]
  %s1 = inlined_call_operand.vmem [shape: bf16[4,256,128], index: 1, kind: input, shape index: {}]
  %s2 = inlined_call_operand.vmem [shape: f32[1,128], index: 2, kind: input, shape index: {}]
  %s3 = inlined_call_operand.vmem [shape: f32[4,16,128], index: 3, kind: output, shape index: {}]
  %s4 = sld [smem:[#allocation0]]
  $region45: #{_lambda_.15} parent=0
    _
  %s6 = ssub.s32 1, %s4
  %s7 = scalar_select 0, %s6, %s4
  loop: start=0, step=1, limit=6
  $region2: #{_lambda_.15} parent=0 // loop_pre_header
    _
  $region3: #{_lambda_.15} parent=0 // loop_header
    %s9 = sphi 0, %s13
    %p10 = scmp.ge.s32.totalorder %s9, 6
    %s16 = sphi 0, %s28
    %s17 = sphi 0, %s24
    %s18 = sphi 0, %s16
    %s19 = sphi 0, %s17
    %s20 = sphi 0, %s18
    %s21 = sphi 0, %s19
    %s33 = sphi 0, %s35
    %s36 = sphi 0, %s33
    %s37 = sphi 0, %s36
    %s53 = sphi 0, %s37
    %s59 = sphi 0, %s61
    %s62 = sphi 0, %s59
    %s63 = sphi 0, %s62
    %s79 = sphi 0, %s63
    %s83 = sphi 0, %s83
    %s85 = sphi 0, %s83
    %s86 = sphi 0, %s85
    %s100 = sphi 0, %s86
    %s108 = sphi 0, %s110
    %s111 = sphi 0, %s108
    %s112 = sphi 0, %s111
    %s128 = sphi 0, %s112
  $region4: #{_lambda_.15} parent=0 // loop_header_branch
    %12 = sbr.rel (%p10) target = $region8
  $region5: #{_lambda_.15} parent=0 // loop_body
    %s14 = ssub.s32 %s9, 1
    %s15 = ssub.s32 %s9, 2
    %s22 = sadd.s32 1, %s17
    %p23 = scmp.ge.s32.totalorder %s22, 1
    %s24 = scalar_select %p23, 0, %s22
    %s25 = sadd.s32 1, %s16
    %s26 = scalar_select %p23, %s25, %s16
    %p27 = scmp.ge.s32.totalorder %s26, 4
    %s28 = scalar_select %p27, 0, %s26
    %s29 = ssub.s32 %s16, %s28
    %s30 = ssub.s32 %s17, %s24
    %s31 = sor.u32 %s29, %s30
    %p32 = scmp.eq.s32.totalorder %s31, 0
    %s34 = sadd.s32 %s33, 1
    %s35 = scalar_select %p32, %s33, %s34
    %p38 = pneg %p32
    %p39 = scmp.eq.s32.totalorder %s9, 3
    %p40 = por %p38, %p39
    %p41 = scmp.ne.s32.totalorder %s33, %s36
    %p42 = scmp.eq.s32.totalorder %s9, 0
    %p43 = por %p41, %p42
    %p44 = scmp.ne.s32.totalorder %s33, %s36
    %p45 = scmp.eq.s32.totalorder %s14, 3
    %p46 = por %p44, %p45
    %p47 = scmp.ne.s32.totalorder %s36, %s37
    %p48 = scmp.eq.s32.totalorder %s14, 0
    %p49 = por %p47, %p48
    %p50 = scmp.ne.s32.totalorder %s36, %s37
    %p51 = scmp.eq.s32.totalorder %s15, 3
    %p52 = por %p50, %p51
    %p54 = scmp.ne.s32.totalorder %s37, %s53
    %p55 = scmp.eq.s32.totalorder %s15, 0
    %p56 = por %p54, %p55
    %s57 = ssub.s32 %s16, %s28
    %p58 = scmp.eq.s32.totalorder %s57, 0
    %s60 = sadd.s32 %s59, 1
    %s61 = scalar_select %p58, %s59, %s60
    %p64 = pneg %p58
    %p65 = scmp.eq.s32.totalorder %s9, 3
    %p66 = por %p64, %p65
    %p67 = scmp.ne.s32.totalorder %s59, %s62
    %p68 = scmp.eq.s32.totalorder %s9, 0
    %p69 = por %p67, %p68
    %p70 = scmp.ne.s32.totalorder %s59, %s62
    %p71 = scmp.eq.s32.totalorder %s14, 3
    %p72 = por %p70, %p71
    %p73 = scmp.ne.s32.totalorder %s62, %s63
    %p74 = scmp.eq.s32.totalorder %s14, 0
    %p75 = por %p73, %p74
    %p76 = scmp.ne.s32.totalorder %s62, %s63
    %p77 = scmp.eq.s32.totalorder %s15, 3
    %p78 = por %p76, %p77
    %p80 = scmp.ne.s32.totalorder %s63, %s79
    %p81 = scmp.eq.s32.totalorder %s15, 0
    %p82 = por %p80, %p81
    %s84 = sadd.s32 %s83, 1
    %p87 = scmp.eq.s32.totalorder %s9, 3
    %p88 = scmp.ne.s32.totalorder %s83, %s85
    %p89 = scmp.eq.s32.totalorder %s9, 0
    %p90 = por %p88, %p89
    %p91 = scmp.ne.s32.totalorder %s83, %s85
    %p92 = scmp.eq.s32.totalorder %s14, 3
    %p93 = por %p91, %p92
    %p94 = scmp.ne.s32.totalorder %s85, %s86
    %p95 = scmp.eq.s32.totalorder %s14, 0
    %p96 = por %p94, %p95
    %p97 = scmp.ne.s32.totalorder %s85, %s86
    %p98 = scmp.eq.s32.totalorder %s15, 3
    %p99 = por %p97, %p98
    %p101 = scmp.ne.s32.totalorder %s86, %s100
    %p102 = scmp.eq.s32.totalorder %s15, 0
    %p103 = por %p101, %p102
    %s104 = ssub.s32 %s16, %s28
    %s105 = ssub.s32 %s17, %s24
    %s106 = sor.u32 %s104, %s105
    %p107 = scmp.eq.s32.totalorder %s106, 0
    %s109 = sadd.s32 %s108, 1
    %s110 = scalar_select %p107, %s108, %s109
    %p113 = pneg %p107
    %p114 = scmp.eq.s32.totalorder %s9, 3
    %p115 = por %p113, %p114
    %p116 = scmp.ne.s32.totalorder %s108, %s111
    %p117 = scmp.eq.s32.totalorder %s9, 0
    %p118 = por %p116, %p117
    %p119 = scmp.ne.s32.totalorder %s108, %s111
    %p120 = scmp.eq.s32.totalorder %s14, 3
    %p121 = por %p119, %p120
    %p122 = scmp.ne.s32.totalorder %s111, %s112
    %p123 = scmp.eq.s32.totalorder %s14, 0
    %p124 = por %p122, %p123
    %p125 = scmp.ne.s32.totalorder %s111, %s112
    %p126 = scmp.eq.s32.totalorder %s15, 3
    %p127 = por %p125, %p126
    %p129 = scmp.ne.s32.totalorder %s112, %s128
    %p130 = scmp.eq.s32.totalorder %s15, 0
    %p131 = por %p129, %p130
    %p132 = scmp.le.s32.totalorder 1, %s9
    %p133 = scmp.lt.s32.totalorder %s9, 5
    %p134 = pnand %p132, %p133
    %p135 = pneg %p134
    // Predicated region
    $region9: #{_lambda_.15} parent=5 // pred_check
      _
    $region10: #{_lambda_.15} parent=5 // pred_check_branch
      %137 = sbr.rel (%p134) target = $region12
    $region11: #{_lambda_.15} parent=5 // pred_region
      %s138 = ssub.s32 %s9, 1
      // Predicated region
      $region13: #{_lambda_.15} parent=11 // pred_check
        %p139 = pneg %p96
      $region14: #{_lambda_.15} parent=11 // pred_check_branch
        %141 = sbr.rel (%p139) target = $region16
      $region15: #{_lambda_.15} parent=11 // pred_region
        _
      $region16: #{_lambda_.15} parent=11 // pred_fallthru
        _
    $region12: #{_lambda_.15} parent=5 // pred_fallthru
      _
    %p142 = scmp.lt.s32.totalorder %s9, 4
    // Predicated region
    $region17: #{_lambda_.15} parent=5 // pred_check
      %p143 = pneg %p142
    $region18: #{_lambda_.15} parent=5 // pred_check_branch
      %145 = sbr.rel (%p143) target = $region20
    $region19: #{_lambda_.15} parent=5 // pred_region
      // Predicated region
      $region21: #{_lambda_.15} parent=19 // pred_check
        %p146 = pneg %p43
      $region22: #{_lambda_.15} parent=19 // pred_check_branch
        %148 = sbr.rel (%p146) target = $region24
      $region23: #{_lambda_.15} parent=19 // pred_region
        %s149 = smul.u32 2, %s17
        %p150 = scmp.lt.s32.totalorder %s16, 3
        %s151 = scalar_select %p150, %s16, 3
        %p152 = scmp.lt.s32.totalorder %s149, 1
        %s153 = scalar_select %p152, %s149, 1
        %s154 = smul.addr %s153, 2
        %s155 = smul.addr %s151, 4
        %s156 = sadd.s32 %s154, %s155
        %s157 = smul.addr %s156, 4
        %s158 = scalar_lea.vmem %s0, %s157
        %s159 = smul.u32 2, %s17
      $region24: #{_lambda_.15} parent=19 // pred_fallthru
        _
      // Predicated region
      $region25: #{_lambda_.15} parent=19 // pred_check
        %p160 = pneg %p69
      $region26: #{_lambda_.15} parent=19 // pred_check_branch
        %162 = sbr.rel (%p160) target = $region28
      $region27: #{_lambda_.15} parent=19 // pred_region
        %p163 = scmp.lt.s32.totalorder %s16, 3
        %s164 = scalar_select %p163, %s16, 3
        %s165 = smul.addr %s164, 32
        %s166 = smul.addr %s165, 4
        %s167 = scalar_lea.vmem %s1, %s166
      $region28: #{_lambda_.15} parent=19 // pred_fallthru
        _
    $region20: #{_lambda_.15} parent=5 // pred_fallthru
      _
    %p168 = scmp.le.s32.totalorder 1, %s9
    %p169 = scmp.lt.s32.totalorder %s9, 5
    %p170 = pnand %p168, %p169
    %p171 = pneg %p170
    // Predicated region
    $region29: #{_lambda_.15} parent=5 // pred_check
      _
    $region30: #{_lambda_.15} parent=5 // pred_check_branch
      %173 = sbr.rel (%p170) target = $region32
    $region31: #{_lambda_.15} parent=5 // pred_region
      %s174 = ssub.s32 %s9, 1
      %s175 = smul.u32 2, %s19
      %p176 = scmp.lt.s32.totalorder %s18, 3
      %s177 = scalar_select %p176, %s18, 3
      %p178 = scmp.lt.s32.totalorder %s175, 1
      %s179 = scalar_select %p178, %s175, 1
      %s180 = smul.addr %s179, 2
      %s181 = smul.addr %s177, 4
      %s182 = sadd.s32 %s180, %s181
      %s183 = smul.addr %s182, 4
      %s184 = scalar_lea.vmem %s0, %s183
      %p185 = pneg %p49
      %p186 = pneg %p46
      %p187 = scmp.lt.s32.totalorder %s18, 3
      %s188 = scalar_select %p187, %s18, 3
      %s189 = smul.addr %s188, 32
      %s190 = smul.addr %s189, 4
      %s191 = scalar_lea.vmem %s1, %s190
      %p192 = pneg %p75
      %p193 = pneg %p72
      %p194 = pneg %p96
      %p195 = pneg %p93
      %p196 = pneg %p124
      %p197 = pneg %p121
      %s198 = smul.u32 2, %s19
      %p199 = scmp.lt.s32.totalorder %s18, 3
      %s200 = scalar_select %p199, %s18, 3
      %p201 = scmp.lt.s32.totalorder %s198, 1
      %s202 = scalar_select %p201, %s198, 1
      %s203 = smul.addr %s200, 2
      %s204 = sadd.s32 %s202, %s203
      %s205 = smul.addr %s204, 8
      %s206 = scalar_lea.vmem %s3, %s205
      %s207 = smul.u32 2, %s19
      %p208 = scmp.lt.s32.totalorder %s18, 3
      %s209 = scalar_select %p208, %s18, 3
      %p210 = scmp.lt.s32.totalorder %s207, 1
      %s211 = scalar_select %p210, %s207, 1
      %s212 = smul.addr %s211, 2
      %s213 = smul.addr %s209, 4
      %s214 = sadd.s32 %s212, %s213
      %s215 = smul.addr %s214, 4
      %s216 = scalar_lea.vmem %s0, %s215
      %s217 = smul.u32 2, %s19
      %p218 = scmp.lt.s32.totalorder %s18, 3
      %s219 = scalar_select %p218, %s18, 3
      %s220 = smul.addr %s219, 32
      %s221 = smul.addr %s220, 4
      %s222 = scalar_lea.vmem %s1, %s221
      %s223 = smul.u32 2, %s19
      %p224 = scmp.lt.s32.totalorder %s18, 3
      %s225 = scalar_select %p224, %s18, 3
      %p226 = scmp.lt.s32.totalorder %s223, 1
      %s227 = scalar_select %p226, %s223, 1
      %s228 = smul.addr %s225, 2
      %s229 = sadd.s32 %s227, %s228
      %s230 = smul.addr %s229, 8
      %s231 = scalar_lea.vmem %s3, %s230
      %s232 = smul.u32 2, %s19
      %v234 = vld [vmem:[%s216] sm:$0xff]
      %v235 = vld [vmem:[%s216 + $0x8] sm:$0xff]
      %v236 = vld [vmem:[%s222] sm:$0xf]
      %v237 = vld [vmem:[%s222 + $0x4] sm:$0xf]
      %v238 = vld [vmem:[%s222 + $0x8] sm:$0xf]
      %v239 = vld [vmem:[%s222 + $0xc] sm:$0xf]
      %v240 = vld [vmem:[%s222 + $0x10] sm:$0xf]
      %v241 = vld [vmem:[%s222 + $0x14] sm:$0xf]
      %v242 = vld [vmem:[%s222 + $0x18] sm:$0xf]
      %v243 = vld [vmem:[%s222 + $0x1c] sm:$0xf]
      %v244 = vld [vmem:[%s222 + $0x20] sm:$0xf]
      %v245 = vld [vmem:[%s222 + $0x24] sm:$0xf]
      %v246 = vld [vmem:[%s222 + $0x28] sm:$0xf]
      %v247 = vld [vmem:[%s222 + $0x2c] sm:$0xf]
      %v248 = vld [vmem:[%s222 + $0x30] sm:$0xf]
      %v249 = vld [vmem:[%s222 + $0x34] sm:$0xf]
      %v250 = vld [vmem:[%s222 + $0x38] sm:$0xf]
      %v251 = vld [vmem:[%s222 + $0x3c] sm:$0xf]
      %v252 = vld [vmem:[%s222 + $0x40] sm:$0xf]
      %v253 = vld [vmem:[%s222 + $0x44] sm:$0xf]
      %v254 = vld [vmem:[%s222 + $0x48] sm:$0xf]
      %v255 = vld [vmem:[%s222 + $0x4c] sm:$0xf]
      %v256 = vld [vmem:[%s222 + $0x50] sm:$0xf]
      %v257 = vld [vmem:[%s222 + $0x54] sm:$0xf]
      %v258 = vld [vmem:[%s222 + $0x58] sm:$0xf]
      %v259 = vld [vmem:[%s222 + $0x5c] sm:$0xf]
      %v260 = vld [vmem:[%s222 + $0x60] sm:$0xf]
      %v261 = vld [vmem:[%s222 + $0x64] sm:$0xf]
      %v262 = vld [vmem:[%s222 + $0x68] sm:$0xf]
      %v263 = vld [vmem:[%s222 + $0x6c] sm:$0xf]
      %v264 = vld [vmem:[%s222 + $0x70] sm:$0xf]
      %v265 = vld [vmem:[%s222 + $0x74] sm:$0xf]
      %v266 = vld [vmem:[%s222 + $0x78] sm:$0xf]
      %v267 = vld [vmem:[%s222 + $0x7c] sm:$0xf]
      %v268 = vld [vmem:[%s2] sm:$0x1]
      %v270 = vlaneseq
      %v271 = vshrl.u32 %v270, 7
      %v272 = vsub.s32 0, %v271
      %v273 = vrot.slane %v268, %v272
      %v277 = vunpack.c.l.b16 %v234
      %v278 = vunpack.c.h.b16 %v234
      %v279 = vunpack.c.l.b16 %v235
      %v280 = vunpack.c.h.b16 %v235
      %v281 = vpack.c.b16 %v279, %v277
      %v282 = vpack.c.b16 %v280, %v278
      %v317 = vunpack.c.l.b16 %v236
      %v318 = vunpack.c.l.b16 %v237
      %v319 = vunpack.c.l.b16 %v238
      %v320 = vunpack.c.l.b16 %v239
      %v321 = vunpack.c.l.b16 %v240
      %v322 = vunpack.c.l.b16 %v241
      %v323 = vunpack.c.l.b16 %v242
      %v324 = vunpack.c.l.b16 %v243
      %v325 = vunpack.c.l.b16 %v244
      %v326 = vunpack.c.l.b16 %v245
      %v327 = vunpack.c.l.b16 %v246
      %v328 = vunpack.c.l.b16 %v247
      %v329 = vunpack.c.l.b16 %v248
      %v330 = vunpack.c.l.b16 %v249
      %v331 = vunpack.c.l.b16 %v250
      %v332 = vunpack.c.l.b16 %v251
      %v333 = vunpack.c.l.b16 %v252
      %v334 = vunpack.c.l.b16 %v253
      %v335 = vunpack.c.l.b16 %v254
      %v336 = vunpack.c.l.b16 %v255
      %v337 = vunpack.c.l.b16 %v256
      %v338 = vunpack.c.l.b16 %v257
      %v339 = vunpack.c.l.b16 %v258
      %v340 = vunpack.c.l.b16 %v259
      %v341 = vunpack.c.l.b16 %v260
      %v342 = vunpack.c.l.b16 %v261
      %v343 = vunpack.c.l.b16 %v262
      %v344 = vunpack.c.l.b16 %v263
      %v345 = vunpack.c.l.b16 %v264
      %v346 = vunpack.c.l.b16 %v265
      %v347 = vunpack.c.l.b16 %v266
      %v348 = vunpack.c.l.b16 %v267
      %v349 = vpack.c.b16 %v318, %v317
      %v350 = vpack.c.b16 %v320, %v319
      %v351 = vpack.c.b16 %v322, %v321
      %v352 = vpack.c.b16 %v324, %v323
      %v353 = vpack.c.b16 %v326, %v325
      %v354 = vpack.c.b16 %v328, %v327
      %v355 = vpack.c.b16 %v330, %v329
      %v356 = vpack.c.b16 %v332, %v331
      %v357 = vpack.c.b16 %v334, %v333
      %v358 = vpack.c.b16 %v336, %v335
      %v359 = vpack.c.b16 %v338, %v337
      %v360 = vpack.c.b16 %v340, %v339
      %v361 = vpack.c.b16 %v342, %v341
      %v362 = vpack.c.b16 %v344, %v343
      %v363 = vpack.c.b16 %v346, %v345
      %v364 = vpack.c.b16 %v348, %v347
      %381 = vmatprep.subr.bf16.mxu0 0
      %382 = vmatpush1.bf16.msra.mxu0 %v349
      %383 = vmatprep.subr.bf16.mxu0 0
      %384 = vmatpush1.bf16.msra.mxu0 %v350
      %385 = vmatprep.subr.bf16.mxu0 0
      %386 = vmatpush1.bf16.msra.mxu0 %v351
      %387 = vmatprep.subr.bf16.mxu0 0
      %388 = vmatpush1.bf16.msra.mxu0 %v352
      %389 = vmatprep.subr.bf16.mxu0 0
      %390 = vmatpush1.bf16.msra.mxu0 %v353
      %391 = vmatprep.subr.bf16.mxu0 0
      %392 = vmatpush1.bf16.msra.mxu0 %v354
      %393 = vmatprep.subr.bf16.mxu0 0
      %394 = vmatpush1.bf16.msra.mxu0 %v355
      %395 = vmatprep.subr.bf16.mxu0 0
      %396 = vmatpush1.bf16.msra.mxu0 %v356
      %397 = vmatprep.subr.bf16.mxu0 0
      %398 = vmatpush1.bf16.msra.mxu0 %v357
      %399 = vmatprep.subr.bf16.mxu0 0
      %400 = vmatpush1.bf16.msra.mxu0 %v358
      %401 = vmatprep.subr.bf16.mxu0 0
      %402 = vmatpush1.bf16.msra.mxu0 %v359
      %403 = vmatprep.subr.bf16.mxu0 0
      %404 = vmatpush1.bf16.msra.mxu0 %v360
      %405 = vmatprep.subr.bf16.mxu0 0
      %406 = vmatpush1.bf16.msra.mxu0 %v361
      %407 = vmatprep.subr.bf16.mxu0 0
      %408 = vmatpush1.bf16.msra.mxu0 %v362
      %409 = vmatprep.subr.bf16.mxu0 0
      %410 = vmatpush1.bf16.msra.mxu0 %v363
      %411 = vmatprep.subr.bf16.mxu0 0
      %412 = vmatpush1.bf16.msra.mxu0 %v364
      %413 = vmatprep.mubr.bf16.mxu0 %v282
      %414 = vmatmul.mubr.bf16.gmra.mrb[0].mxu0 %v281
      %v415 = vpop.f32.mrb[0].mxu0
      %v416 = vadd.f32 %v273, %v415
      %v417 = vpop.f32.mrb[0].mxu0
      %v418 = vpop.f32.mrb[0].mxu0
      %v419 = vadd.f32 %v273, %v418
      %v420 = vpop.f32.mrb[0].mxu0
      %421 = vdwg.mxu0
      %422 = vst [vmem:[%s231] sm:$0xff] %v416
      %423 = vst [vmem:[%s231 + $0x8] sm:$0xff] %v419
      %s424 = smul.u32 2, %s19
      %p425 = scmp.lt.s32.totalorder %s18, 3
      %s426 = scalar_select %p425, %s18, 3
      %p427 = scmp.lt.s32.totalorder %s424, 1
      %s428 = scalar_select %p427, %s424, 1
      %s429 = smul.addr %s426, 2
      %s430 = sadd.s32 %s428, %s429
      %s431 = smul.addr %s430, 8
      %s432 = scalar_lea.vmem %s3, %s431
      // Predicated region
      $region33: #{_lambda_.15} parent=31 // pred_check
        %p433 = pneg %p121
      $region34: #{_lambda_.15} parent=31 // pred_check_branch
        %435 = sbr.rel (%p433) target = $region36
      $region35: #{_lambda_.15} parent=31 // pred_region
        %s436 = smul.u32 2, %s19
      $region36: #{_lambda_.15} parent=31 // pred_fallthru
        _
    $region32: #{_lambda_.15} parent=5 // pred_fallthru
      _
    %p437 = scmp.le.s32.totalorder 2, %s9
    // Predicated region
    $region37: #{_lambda_.15} parent=5 // pred_check
      %p438 = pneg %p437
    $region38: #{_lambda_.15} parent=5 // pred_check_branch
      %440 = sbr.rel (%p438) target = $region40
    $region39: #{_lambda_.15} parent=5 // pred_region
      %s441 = ssub.s32 %s9, 2
      // Predicated region
      $region41: #{_lambda_.15} parent=39 // pred_check
        %p442 = pneg %p127
      $region42: #{_lambda_.15} parent=39 // pred_check_branch
        %444 = sbr.rel (%p442) target = $region44
      $region43: #{_lambda_.15} parent=39 // pred_region
        %s445 = smul.u32 2, %s21
        %p446 = scmp.lt.s32.totalorder %s20, 3
        %s447 = scalar_select %p446, %s20, 3
        %p448 = scmp.lt.s32.totalorder %s445, 1
        %s449 = scalar_select %p448, %s445, 1
        %s450 = smul.addr %s447, 2
        %s451 = sadd.s32 %s449, %s450
        %s452 = smul.addr %s451, 8
        %s453 = scalar_lea.vmem %s3, %s452
      $region44: #{_lambda_.15} parent=39 // pred_fallthru
        _
    $region40: #{_lambda_.15} parent=5 // pred_fallthru
      _
  $region6: #{_lambda_.15} parent=0 // loop_footer
    %s13 = sadd.s32 1, %s9
  $region7: #{_lambda_.15} parent=0 // loop_footer_branch
    %8 = sbr.rel target = $region3
  $region8: #{_lambda_.15} parent=0 // loop_exit
    _

// kernel: _lambda_.13
$region0: #{_lambda_.13}
  #allocation0 [shape = 'u32[]', space=smem, size = 0x4, offset = 0x4, fixed_abs, tag = 'smem constant byte address 0x4 - core index']
  #allocation1 [shape = 'u32[144,128]{1,0:T(1,128)}', space=vmem, size = 0x12000, scoped, tag = 'internal scratch']
  %s0 = inlined_call_operand.vmem [shape: bf16[1,16,512], index: 0, kind: input, shape index: {}]
  %s1 = inlined_call_operand.vmem [shape: bf16[1,512,128], index: 1, kind: input, shape index: {}]
  %s2 = inlined_call_operand.vmem [shape: f32[1,128], index: 2, kind: input, shape index: {}]
  %s3 = inlined_call_operand.vmem [shape: f32[1,16,128], index: 3, kind: output, shape index: {}]
  %s4 = sld [smem:[#allocation0]]
  $region22: #{_lambda_.13} parent=0
    _
  %s6 = ssub.s32 1, %s4
  %s7 = scalar_select 0, %s6, %s4
  // Predicated region
  $region2: #{_lambda_.13} parent=0 // pred_check
    _
  $region3: #{_lambda_.13} parent=0 // pred_check_branch
    %9 = sbr.rel (0) target = $region5
  $region4: #{_lambda_.13} parent=0 // pred_region
    _
  $region5: #{_lambda_.13} parent=0 // pred_fallthru
    _
  // Predicated region
  $region6: #{_lambda_.13} parent=0 // pred_check
    _
  $region7: #{_lambda_.13} parent=0 // pred_check_branch
    %11 = sbr.rel (0) target = $region9
  $region8: #{_lambda_.13} parent=0 // pred_region
    _
  $region9: #{_lambda_.13} parent=0 // pred_fallthru
    _
  // Predicated region
  $region10: #{_lambda_.13} parent=0 // pred_check
    _
  $region11: #{_lambda_.13} parent=0 // pred_check_branch
    %13 = sbr.rel (0) target = $region13
  $region12: #{_lambda_.13} parent=0 // pred_region
    _
  $region13: #{_lambda_.13} parent=0 // pred_fallthru
    _
  %v15 = vld [vmem:[%s0] sm:$0xff]
  %v16 = vld [vmem:[%s0 + $0x8] sm:$0xff]
  %v17 = vld [vmem:[%s0 + $0x10] sm:$0xff]
  %v18 = vld [vmem:[%s0 + $0x18] sm:$0xff]
  %v19 = vld [vmem:[%s1] sm:$0xf]
  %v20 = vld [vmem:[%s1 + $0x4] sm:$0xf]
  %v21 = vld [vmem:[%s1 + $0x8] sm:$0xf]
  %v22 = vld [vmem:[%s1 + $0xc] sm:$0xf]
  %v23 = vld [vmem:[%s1 + $0x10] sm:$0xf]
  %v24 = vld [vmem:[%s1 + $0x14] sm:$0xf]
  %v25 = vld [vmem:[%s1 + $0x18] sm:$0xf]
  %v26 = vld [vmem:[%s1 + $0x1c] sm:$0xf]
  %v27 = vld [vmem:[%s1 + $0x20] sm:$0xf]
  %v28 = vld [vmem:[%s1 + $0x24] sm:$0xf]
  %v29 = vld [vmem:[%s1 + $0x28] sm:$0xf]
  %v30 = vld [vmem:[%s1 + $0x2c] sm:$0xf]
  %v31 = vld [vmem:[%s1 + $0x30] sm:$0xf]
  %v32 = vld [vmem:[%s1 + $0x34] sm:$0xf]
  %v33 = vld [vmem:[%s1 + $0x38] sm:$0xf]
  %v34 = vld [vmem:[%s1 + $0x3c] sm:$0xf]
  %v35 = vld [vmem:[%s1 + $0x40] sm:$0xf]
  %v36 = vld [vmem:[%s1 + $0x44] sm:$0xf]
  %v37 = vld [vmem:[%s1 + $0x48] sm:$0xf]
  %v38 = vld [vmem:[%s1 + $0x4c] sm:$0xf]
  %v39 = vld [vmem:[%s1 + $0x50] sm:$0xf]
  %v40 = vld [vmem:[%s1 + $0x54] sm:$0xf]
  %v41 = vld [vmem:[%s1 + $0x58] sm:$0xf]
  %v42 = vld [vmem:[%s1 + $0x5c] sm:$0xf]
  %v43 = vld [vmem:[%s1 + $0x60] sm:$0xf]
  %v44 = vld [vmem:[%s1 + $0x64] sm:$0xf]
  %v45 = vld [vmem:[%s1 + $0x68] sm:$0xf]
  %v46 = vld [vmem:[%s1 + $0x6c] sm:$0xf]
  %v47 = vld [vmem:[%s1 + $0x70] sm:$0xf]
  %v48 = vld [vmem:[%s1 + $0x74] sm:$0xf]
  %v49 = vld [vmem:[%s1 + $0x78] sm:$0xf]
  %v50 = vld [vmem:[%s1 + $0x7c] sm:$0xf]
  %v51 = vld [vmem:[%s1 + $0x80] sm:$0xf]
  %v52 = vld [vmem:[%s1 + $0x84] sm:$0xf]
  %v53 = vld [vmem:[%s1 + $0x88] sm:$0xf]
  %v54 = vld [vmem:[%s1 + $0x8c] sm:$0xf]
  %v55 = vld [vmem:[%s1 + $0x90] sm:$0xf]
  %v56 = vld [vmem:[%s1 + $0x94] sm:$0xf]
  %v57 = vld [vmem:[%s1 + $0x98] sm:$0xf]
  %v58 = vld [vmem:[%s1 + $0x9c] sm:$0xf]
  %v59 = vld [vmem:[%s1 + $0xa0] sm:$0xf]
  %v60 = vld [vmem:[%s1 + $0xa4] sm:$0xf]
  %v61 = vld [vmem:[%s1 + $0xa8] sm:$0xf]
  %v62 = vld [vmem:[%s1 + $0xac] sm:$0xf]
  %v63 = vld [vmem:[%s1 + $0xb0] sm:$0xf]
  %v64 = vld [vmem:[%s1 + $0xb4] sm:$0xf]
  %v65 = vld [vmem:[%s1 + $0xb8] sm:$0xf]
  %v66 = vld [vmem:[%s1 + $0xbc] sm:$0xf]
  %v67 = vld [vmem:[%s1 + $0xc0] sm:$0xf]
  %v68 = vld [vmem:[%s1 + $0xc4] sm:$0xf]
  %v69 = vld [vmem:[%s1 + $0xc8] sm:$0xf]
  %v70 = vld [vmem:[%s1 + $0xcc] sm:$0xf]
  %v71 = vld [vmem:[%s1 + $0xd0] sm:$0xf]
  %v72 = vld [vmem:[%s1 + $0xd4] sm:$0xf]
  %v73 = vld [vmem:[%s1 + $0xd8] sm:$0xf]
  %v74 = vld [vmem:[%s1 + $0xdc] sm:$0xf]
  %v75 = vld [vmem:[%s1 + $0xe0] sm:$0xf]
  %v76 = vld [vmem:[%s1 + $0xe4] sm:$0xf]
  %v77 = vld [vmem:[%s1 + $0xe8] sm:$0xf]
  %v78 = vld [vmem:[%s1 + $0xec] sm:$0xf]
  %v79 = vld [vmem:[%s1 + $0xf0] sm:$0xf]
  %v80 = vld [vmem:[%s1 + $0xf4] sm:$0xf]
  %v81 = vld [vmem:[%s1 + $0xf8] sm:$0xf]
  %v82 = vld [vmem:[%s1 + $0xfc] sm:$0xf]
  %v83 = vld [vmem:[%s2] sm:$0x1]
  %v85 = vlaneseq
  %v86 = vshrl.u32 %v85, 7
  %v87 = vsub.s32 0, %v86
  %v88 = vrot.slane %v83, %v87
  %v94 = vunpack.c.l.b16 %v15
  %v95 = vunpack.c.h.b16 %v15
  %v96 = vunpack.c.l.b16 %v16
  %v97 = vunpack.c.h.b16 %v16
  %v98 = vunpack.c.l.b16 %v17
  %v99 = vunpack.c.h.b16 %v17
  %v100 = vunpack.c.l.b16 %v18
  %v101 = vunpack.c.h.b16 %v18
  %v102 = vpack.c.b16 %v98, %v94
  %v103 = vpack.c.b16 %v99, %v95
  %v104 = vpack.c.b16 %v100, %v96
  %v105 = vpack.c.b16 %v101, %v97
  %v174 = vunpack.c.l.b16 %v19
  %v175 = vunpack.c.l.b16 %v20
  %v176 = vunpack.c.l.b16 %v21
  %v177 = vunpack.c.l.b16 %v22
  %v178 = vunpack.c.l.b16 %v23
  %v179 = vunpack.c.l.b16 %v24
  %v180 = vunpack.c.l.b16 %v25
  %v181 = vunpack.c.l.b16 %v26
  %v182 = vunpack.c.l.b16 %v27
  %v183 = vunpack.c.l.b16 %v28
  %v184 = vunpack.c.l.b16 %v29
  %v185 = vunpack.c.l.b16 %v30
  %v186 = vunpack.c.l.b16 %v31
  %v187 = vunpack.c.l.b16 %v32
  %v188 = vunpack.c.l.b16 %v33
  %v189 = vunpack.c.l.b16 %v34
  %v190 = vunpack.c.l.b16 %v35
  %v191 = vunpack.c.l.b16 %v36
  %v192 = vunpack.c.l.b16 %v37
  %v193 = vunpack.c.l.b16 %v38
  %v194 = vunpack.c.l.b16 %v39
  %v195 = vunpack.c.l.b16 %v40
  %v196 = vunpack.c.l.b16 %v41
  %v197 = vunpack.c.l.b16 %v42
  %v198 = vunpack.c.l.b16 %v43
  %v199 = vunpack.c.l.b16 %v44
  %v200 = vunpack.c.l.b16 %v45
  %v201 = vunpack.c.l.b16 %v46
  %v202 = vunpack.c.l.b16 %v47
  %v203 = vunpack.c.l.b16 %v48
  %v204 = vunpack.c.l.b16 %v49
  %v205 = vunpack.c.l.b16 %v50
  %v206 = vunpack.c.l.b16 %v51
  %v207 = vunpack.c.l.b16 %v52
  %v208 = vunpack.c.l.b16 %v53
  %v209 = vunpack.c.l.b16 %v54
  %v210 = vunpack.c.l.b16 %v55
  %v211 = vunpack.c.l.b16 %v56
  %v212 = vunpack.c.l.b16 %v57
  %v213 = vunpack.c.l.b16 %v58
  %v214 = vunpack.c.l.b16 %v59
  %v215 = vunpack.c.l.b16 %v60
  %v216 = vunpack.c.l.b16 %v61
  %v217 = vunpack.c.l.b16 %v62
  %v218 = vunpack.c.l.b16 %v63
  %v219 = vunpack.c.l.b16 %v64
  %v220 = vunpack.c.l.b16 %v65
  %v221 = vunpack.c.l.b16 %v66
  %v222 = vunpack.c.l.b16 %v67
  %v223 = vunpack.c.l.b16 %v68
  %v224 = vunpack.c.l.b16 %v69
  %v225 = vunpack.c.l.b16 %v70
  %v226 = vunpack.c.l.b16 %v71
  %v227 = vunpack.c.l.b16 %v72
  %v228 = vunpack.c.l.b16 %v73
  %v229 = vunpack.c.l.b16 %v74
  %v230 = vunpack.c.l.b16 %v75
  %v231 = vunpack.c.l.b16 %v76
  %v232 = vunpack.c.l.b16 %v77
  %v233 = vunpack.c.l.b16 %v78
  %v234 = vunpack.c.l.b16 %v79
  %v235 = vunpack.c.l.b16 %v80
  %v236 = vunpack.c.l.b16 %v81
  %v237 = vunpack.c.l.b16 %v82
  %v238 = vpack.c.b16 %v175, %v174
  %v239 = vpack.c.b16 %v177, %v176
  %v240 = vpack.c.b16 %v179, %v178
  %v241 = vpack.c.b16 %v181, %v180
  %v242 = vpack.c.b16 %v183, %v182
  %v243 = vpack.c.b16 %v185, %v184
  %v244 = vpack.c.b16 %v187, %v186
  %v245 = vpack.c.b16 %v189, %v188
  %v246 = vpack.c.b16 %v191, %v190
  %v247 = vpack.c.b16 %v193, %v192
  %v248 = vpack.c.b16 %v195, %v194
  %v249 = vpack.c.b16 %v197, %v196
  %v250 = vpack.c.b16 %v199, %v198
  %v251 = vpack.c.b16 %v201, %v200
  %v252 = vpack.c.b16 %v203, %v202
  %v253 = vpack.c.b16 %v205, %v204
  %v254 = vpack.c.b16 %v207, %v206
  %v255 = vpack.c.b16 %v209, %v208
  %v256 = vpack.c.b16 %v211, %v210
  %v257 = vpack.c.b16 %v213, %v212
  %v258 = vpack.c.b16 %v215, %v214
  %v259 = vpack.c.b16 %v217, %v216
  %v260 = vpack.c.b16 %v219, %v218
  %v261 = vpack.c.b16 %v221, %v220
  %v262 = vpack.c.b16 %v223, %v222
  %v263 = vpack.c.b16 %v225, %v224
  %v264 = vpack.c.b16 %v227, %v226
  %v265 = vpack.c.b16 %v229, %v228
  %v266 = vpack.c.b16 %v231, %v230
  %v267 = vpack.c.b16 %v233, %v232
  %v268 = vpack.c.b16 %v235, %v234
  %v269 = vpack.c.b16 %v237, %v236
  %302 = vmatprep.subr.bf16.mxu0 0
  %303 = vmatpush1.bf16.msra.mxu0 %v238
  %304 = vmatprep.subr.bf16.mxu0 0
  %305 = vmatpush1.bf16.msra.mxu0 %v239
  %306 = vmatprep.subr.bf16.mxu0 0
  %307 = vmatpush1.bf16.msra.mxu0 %v240
  %308 = vmatprep.subr.bf16.mxu0 0
  %309 = vmatpush1.bf16.msra.mxu0 %v241
  %310 = vmatprep.subr.bf16.mxu0 0
  %311 = vmatpush1.bf16.msra.mxu0 %v242
  %312 = vmatprep.subr.bf16.mxu0 0
  %313 = vmatpush1.bf16.msra.mxu0 %v243
  %314 = vmatprep.subr.bf16.mxu0 0
  %315 = vmatpush1.bf16.msra.mxu0 %v244
  %316 = vmatprep.subr.bf16.mxu0 0
  %317 = vmatpush1.bf16.msra.mxu0 %v245
  %318 = vmatprep.subr.bf16.mxu0 0
  %319 = vmatpush1.bf16.msra.mxu0 %v246
  %320 = vmatprep.subr.bf16.mxu0 0
  %321 = vmatpush1.bf16.msra.mxu0 %v247
  %322 = vmatprep.subr.bf16.mxu0 0
  %323 = vmatpush1.bf16.msra.mxu0 %v248
  %324 = vmatprep.subr.bf16.mxu0 0
  %325 = vmatpush1.bf16.msra.mxu0 %v249
  %326 = vmatprep.subr.bf16.mxu0 0
  %327 = vmatpush1.bf16.msra.mxu0 %v250
  %328 = vmatprep.subr.bf16.mxu0 0
  %329 = vmatpush1.bf16.msra.mxu0 %v251
  %330 = vmatprep.subr.bf16.mxu0 0
  %331 = vmatpush1.bf16.msra.mxu0 %v252
  %332 = vmatprep.subr.bf16.mxu0 0
  %333 = vmatpush1.bf16.msra.mxu0 %v253
  %334 = vmatprep.mubr.bf16.mxu0 %v103
  %335 = vmatmul.mubr.bf16.gmra.mrb[0].mxu0 %v102
  %v336 = vpop.f32.mrb[0].mxu0
  %v337 = vadd.f32 %v88, %v336
  %v338 = vpop.f32.mrb[0].mxu0
  %v339 = vpop.f32.mrb[0].mxu0
  %v340 = vadd.f32 %v88, %v339
  %v341 = vpop.f32.mrb[0].mxu0
  %342 = vdwg.mxu0
  %343 = vmatprep.subr.bf16.mxu0 0
  %344 = vmatpush1.bf16.msra.mxu0 %v254
  %345 = vmatprep.subr.bf16.mxu0 0
  %346 = vmatpush1.bf16.msra.mxu0 %v255
  %347 = vmatprep.subr.bf16.mxu0 0
  %348 = vmatpush1.bf16.msra.mxu0 %v256
  %349 = vmatprep.subr.bf16.mxu0 0
  %350 = vmatpush1.bf16.msra.mxu0 %v257
  %351 = vmatprep.subr.bf16.mxu0 0
  %352 = vmatpush1.bf16.msra.mxu0 %v258
  %353 = vmatprep.subr.bf16.mxu0 0
  %354 = vmatpush1.bf16.msra.mxu0 %v259
  %355 = vmatprep.subr.bf16.mxu0 0
  %356 = vmatpush1.bf16.msra.mxu0 %v260
  %357 = vmatprep.subr.bf16.mxu0 0
  %358 = vmatpush1.bf16.msra.mxu0 %v261
  %359 = vmatprep.subr.bf16.mxu0 0
  %360 = vmatpush1.bf16.msra.mxu0 %v262
  %361 = vmatprep.subr.bf16.mxu0 0
  %362 = vmatpush1.bf16.msra.mxu0 %v263
  %363 = vmatprep.subr.bf16.mxu0 0
  %364 = vmatpush1.bf16.msra.mxu0 %v264
  %365 = vmatprep.subr.bf16.mxu0 0
  %366 = vmatpush1.bf16.msra.mxu0 %v265
  %367 = vmatprep.subr.bf16.mxu0 0
  %368 = vmatpush1.bf16.msra.mxu0 %v266
  %369 = vmatprep.subr.bf16.mxu0 0
  %370 = vmatpush1.bf16.msra.mxu0 %v267
  %371 = vmatprep.subr.bf16.mxu0 0
  %372 = vmatpush1.bf16.msra.mxu0 %v268
  %373 = vmatprep.subr.bf16.mxu0 0
  %374 = vmatpush1.bf16.msra.mxu0 %v269
  %375 = vmatprep.mubr.bf16.mxu0 %v105
  %376 = vmatmul.mubr.bf16.gmra.mrb[0].mxu0 %v104
  %v377 = vpop.f32.mrb[0].mxu0
  %v378 = vadd.f32 %v337, %v377
  %v379 = vpop.f32.mrb[0].mxu0
  %v380 = vpop.f32.mrb[0].mxu0
  %v381 = vadd.f32 %v340, %v380
  %v382 = vpop.f32.mrb[0].mxu0
  %383 = vdwg.mxu0
  %384 = vst [vmem:[%s3] sm:$0xff] %v378
  %385 = vst [vmem:[%s3 + $0x8] sm:$0xff] %v381
  // Predicated region
  $region14: #{_lambda_.13} parent=0 // pred_check
    _
  $region15: #{_lambda_.13} parent=0 // pred_check_branch
    %387 = sbr.rel (0) target = $region17
  $region16: #{_lambda_.13} parent=0 // pred_region
    _
  $region17: #{_lambda_.13} parent=0 // pred_fallthru
    _
  // Predicated region
  $region18: #{_lambda_.13} parent=0 // pred_check
    _
  $region19: #{_lambda_.13} parent=0 // pred_check_branch
    %389 = sbr.rel (0) target = $region21
  $region20: #{_lambda_.13} parent=0 // pred_region
    _
  $region21: #{_lambda_.13} parent=0 // pred_fallthru
    _

// kernel: _lambda_.14
$region0: #{_lambda_.14}
  #allocation0 [shape = 'u32[]', space=smem, size = 0x4, offset = 0x4, fixed_abs, tag = 'smem constant byte address 0x4 - core index']
  #allocation1 [shape = 'u32[144,128]{1,0:T(1,128)}', space=vmem, size = 0x12000, scoped, tag = 'internal scratch']
  %s0 = inlined_call_operand.vmem [shape: bf16[1,16,1024], index: 0, kind: input, shape index: {}]
  %s1 = inlined_call_operand.vmem [shape: bf16[1,1024,128], index: 1, kind: input, shape index: {}]
  %s2 = inlined_call_operand.vmem [shape: f32[1,128], index: 2, kind: input, shape index: {}]
  %s3 = inlined_call_operand.vmem [shape: f32[1,16,128], index: 3, kind: output, shape index: {}]
  %s4 = sld [smem:[#allocation0]]
  $region22: #{_lambda_.14} parent=0
    _
  %s6 = ssub.s32 1, %s4
  %s7 = scalar_select 0, %s6, %s4
  // Predicated region
  $region2: #{_lambda_.14} parent=0 // pred_check
    _
  $region3: #{_lambda_.14} parent=0 // pred_check_branch
    %9 = sbr.rel (0) target = $region5
  $region4: #{_lambda_.14} parent=0 // pred_region
    _
  $region5: #{_lambda_.14} parent=0 // pred_fallthru
    _
  // Predicated region
  $region6: #{_lambda_.14} parent=0 // pred_check
    _
  $region7: #{_lambda_.14} parent=0 // pred_check_branch
    %11 = sbr.rel (0) target = $region9
  $region8: #{_lambda_.14} parent=0 // pred_region
    _
  $region9: #{_lambda_.14} parent=0 // pred_fallthru
    _
  // Predicated region
  $region10: #{_lambda_.14} parent=0 // pred_check
    _
  $region11: #{_lambda_.14} parent=0 // pred_check_branch
    %13 = sbr.rel (0) target = $region13
  $region12: #{_lambda_.14} parent=0 // pred_region
    _
  $region13: #{_lambda_.14} parent=0 // pred_fallthru
    _
  %v15 = vld [vmem:[%s0] sm:$0xff]
  %v16 = vld [vmem:[%s0 + $0x8] sm:$0xff]
  %v17 = vld [vmem:[%s0 + $0x10] sm:$0xff]
  %v18 = vld [vmem:[%s0 + $0x18] sm:$0xff]
  %v19 = vld [vmem:[%s0 + $0x20] sm:$0xff]
  %v20 = vld [vmem:[%s0 + $0x28] sm:$0xff]
  %v21 = vld [vmem:[%s0 + $0x30] sm:$0xff]
  %v22 = vld [vmem:[%s0 + $0x38] sm:$0xff]
  %v23 = vld [vmem:[%s1] sm:$0xf]
  %v24 = vld [vmem:[%s1 + $0x4] sm:$0xf]
  %v25 = vld [vmem:[%s1 + $0x8] sm:$0xf]
  %v26 = vld [vmem:[%s1 + $0xc] sm:$0xf]
  %v27 = vld [vmem:[%s1 + $0x10] sm:$0xf]
  %v28 = vld [vmem:[%s1 + $0x14] sm:$0xf]
  %v29 = vld [vmem:[%s1 + $0x18] sm:$0xf]
  %v30 = vld [vmem:[%s1 + $0x1c] sm:$0xf]
  %v31 = vld [vmem:[%s1 + $0x20] sm:$0xf]
  %v32 = vld [vmem:[%s1 + $0x24] sm:$0xf]
  %v33 = vld [vmem:[%s1 + $0x28] sm:$0xf]
  %v34 = vld [vmem:[%s1 + $0x2c] sm:$0xf]
  %v35 = vld [vmem:[%s1 + $0x30] sm:$0xf]
  %v36 = vld [vmem:[%s1 + $0x34] sm:$0xf]
  %v37 = vld [vmem:[%s1 + $0x38] sm:$0xf]
  %v38 = vld [vmem:[%s1 + $0x3c] sm:$0xf]
  %v39 = vld [vmem:[%s1 + $0x40] sm:$0xf]
  %v40 = vld [vmem:[%s1 + $0x44] sm:$0xf]
  %v41 = vld [vmem:[%s1 + $0x48] sm:$0xf]
  %v42 = vld [vmem:[%s1 + $0x4c] sm:$0xf]
  %v43 = vld [vmem:[%s1 + $0x50] sm:$0xf]
  %v44 = vld [vmem:[%s1 + $0x54] sm:$0xf]
  %v45 = vld [vmem:[%s1 + $0x58] sm:$0xf]
  %v46 = vld [vmem:[%s1 + $0x5c] sm:$0xf]
  %v47 = vld [vmem:[%s1 + $0x60] sm:$0xf]
  %v48 = vld [vmem:[%s1 + $0x64] sm:$0xf]
  %v49 = vld [vmem:[%s1 + $0x68] sm:$0xf]
  %v50 = vld [vmem:[%s1 + $0x6c] sm:$0xf]
  %v51 = vld [vmem:[%s1 + $0x70] sm:$0xf]
  %v52 = vld [vmem:[%s1 + $0x74] sm:$0xf]
  %v53 = vld [vmem:[%s1 + $0x78] sm:$0xf]
  %v54 = vld [vmem:[%s1 + $0x7c] sm:$0xf]
  %v55 = vld [vmem:[%s1 + $0x80] sm:$0xf]
  %v56 = vld [vmem:[%s1 + $0x84] sm:$0xf]
  %v57 = vld [vmem:[%s1 + $0x88] sm:$0xf]
  %v58 = vld [vmem:[%s1 + $0x8c] sm:$0xf]
  %v59 = vld [vmem:[%s1 + $0x90] sm:$0xf]
  %v60 = vld [vmem:[%s1 + $0x94] sm:$0xf]
  %v61 = vld [vmem:[%s1 + $0x98] sm:$0xf]
  %v62 = vld [vmem:[%s1 + $0x9c] sm:$0xf]
  %v63 = vld [vmem:[%s1 + $0xa0] sm:$0xf]
  %v64 = vld [vmem:[%s1 + $0xa4] sm:$0xf]
  %v65 = vld [vmem:[%s1 + $0xa8] sm:$0xf]
  %v66 = vld [vmem:[%s1 + $0xac] sm:$0xf]
  %v67 = vld [vmem:[%s1 + $0xb0] sm:$0xf]
  %v68 = vld [vmem:[%s1 + $0xb4] sm:$0xf]
  %v69 = vld [vmem:[%s1 + $0xb8] sm:$0xf]
  %v70 = vld [vmem:[%s1 + $0xbc] sm:$0xf]
  %v71 = vld [vmem:[%s1 + $0xc0] sm:$0xf]
  %v72 = vld [vmem:[%s1 + $0xc4] sm:$0xf]
  %v73 = vld [vmem:[%s1 + $0xc8] sm:$0xf]
  %v74 = vld [vmem:[%s1 + $0xcc] sm:$0xf]
  %v75 = vld [vmem:[%s1 + $0xd0] sm:$0xf]
  %v76 = vld [vmem:[%s1 + $0xd4] sm:$0xf]
  %v77 = vld [vmem:[%s1 + $0xd8] sm:$0xf]
  %v78 = vld [vmem:[%s1 + $0xdc] sm:$0xf]
  %v79 = vld [vmem:[%s1 + $0xe0] sm:$0xf]
  %v80 = vld [vmem:[%s1 + $0xe4] sm:$0xf]
  %v81 = vld [vmem:[%s1 + $0xe8] sm:$0xf]
  %v82 = vld [vmem:[%s1 + $0xec] sm:$0xf]
  %v83 = vld [vmem:[%s1 + $0xf0] sm:$0xf]
  %v84 = vld [vmem:[%s1 + $0xf4] sm:$0xf]
  %v85 = vld [vmem:[%s1 + $0xf8] sm:$0xf]
  %v86 = vld [vmem:[%s1 + $0xfc] sm:$0xf]
  %v87 = vld [vmem:[%s1 + $0x100] sm:$0xf]
  %v88 = vld [vmem:[%s1 + $0x104] sm:$0xf]
  %v89 = vld [vmem:[%s1 + $0x108] sm:$0xf]
  %v90 = vld [vmem:[%s1 + $0x10c] sm:$0xf]
  %v91 = vld [vmem:[%s1 + $0x110] sm:$0xf]
  %v92 = vld [vmem:[%s1 + $0x114] sm:$0xf]
  %v93 = vld [vmem:[%s1 + $0x118] sm:$0xf]
  %v94 = vld [vmem:[%s1 + $0x11c] sm:$0xf]
  %v95 = vld [vmem:[%s1 + $0x120] sm:$0xf]
  %v96 = vld [vmem:[%s1 + $0x124] sm:$0xf]
  %v97 = vld [vmem:[%s1 + $0x128] sm:$0xf]
  %v98 = vld [vmem:[%s1 + $0x12c] sm:$0xf]
  %v99 = vld [vmem:[%s1 + $0x130] sm:$0xf]
  %v100 = vld [vmem:[%s1 + $0x134] sm:$0xf]
  %v101 = vld [vmem:[%s1 + $0x138] sm:$0xf]
  %v102 = vld [vmem:[%s1 + $0x13c] sm:$0xf]
  %v103 = vld [vmem:[%s1 + $0x140] sm:$0xf]
  %v104 = vld [vmem:[%s1 + $0x144] sm:$0xf]
  %v105 = vld [vmem:[%s1 + $0x148] sm:$0xf]
  %v106 = vld [vmem:[%s1 + $0x14c] sm:$0xf]
  %v107 = vld [vmem:[%s1 + $0x150] sm:$0xf]
  %v108 = vld [vmem:[%s1 + $0x154] sm:$0xf]
  %v109 = vld [vmem:[%s1 + $0x158] sm:$0xf]
  %v110 = vld [vmem:[%s1 + $0x15c] sm:$0xf]
  %v111 = vld [vmem:[%s1 + $0x160] sm:$0xf]
  %v112 = vld [vmem:[%s1 + $0x164] sm:$0xf]
  %v113 = vld [vmem:[%s1 + $0x168] sm:$0xf]
  %v114 = vld [vmem:[%s1 + $0x16c] sm:$0xf]
  %v115 = vld [vmem:[%s1 + $0x170] sm:$0xf]
  %v116 = vld [vmem:[%s1 + $0x174] sm:$0xf]
  %v117 = vld [vmem:[%s1 + $0x178] sm:$0xf]
  %v118 = vld [vmem:[%s1 + $0x17c] sm:$0xf]
  %v119 = vld [vmem:[%s1 + $0x180] sm:$0xf]
  %v120 = vld [vmem:[%s1 + $0x184] sm:$0xf]
  %v121 = vld [vmem:[%s1 + $0x188] sm:$0xf]
  %v122 = vld [vmem:[%s1 + $0x18c] sm:$0xf]
  %v123 = vld [vmem:[%s1 + $0x190] sm:$0xf]
  %v124 = vld [vmem:[%s1 + $0x194] sm:$0xf]
  %v125 = vld [vmem:[%s1 + $0x198] sm:$0xf]
  %v126 = vld [vmem:[%s1 + $0x19c] sm:$0xf]
  %v127 = vld [vmem:[%s1 + $0x1a0] sm:$0xf]
  %v128 = vld [vmem:[%s1 + $0x1a4] sm:$0xf]
  %v129 = vld [vmem:[%s1 + $0x1a8] sm:$0xf]
  %v130 = vld [vmem:[%s1 + $0x1ac] sm:$0xf]
  %v131 = vld [vmem:[%s1 + $0x1b0] sm:$0xf]
  %v132 = vld [vmem:[%s1 + $0x1b4] sm:$0xf]
  %v133 = vld [vmem:[%s1 + $0x1b8] sm:$0xf]
  %v134 = vld [vmem:[%s1 + $0x1bc] sm:$0xf]
  %v135 = vld [vmem:[%s1 + $0x1c0] sm:$0xf]
  %v136 = vld [vmem:[%s1 + $0x1c4] sm:$0xf]
  %v137 = vld [vmem:[%s1 + $0x1c8] sm:$0xf]
  %v138 = vld [vmem:[%s1 + $0x1cc] sm:$0xf]
  %v139 = vld [vmem:[%s1 + $0x1d0] sm:$0xf]
  %v140 = vld [vmem:[%s1 + $0x1d4] sm:$0xf]
  %v141 = vld [vmem:[%s1 + $0x1d8] sm:$0xf]
  %v142 = vld [vmem:[%s1 + $0x1dc] sm:$0xf]
  %v143 = vld [vmem:[%s1 + $0x1e0] sm:$0xf]
  %v144 = vld [vmem:[%s1 + $0x1e4] sm:$0xf]
  %v145 = vld [vmem:[%s1 + $0x1e8] sm:$0xf]
  %v146 = vld [vmem:[%s1 + $0x1ec] sm:$0xf]
  %v147 = vld [vmem:[%s1 + $0x1f0] sm:$0xf]
  %v148 = vld [vmem:[%s1 + $0x1f4] sm:$0xf]
  %v149 = vld [vmem:[%s1 + $0x1f8] sm:$0xf]
  %v150 = vld [vmem:[%s1 + $0x1fc] sm:$0xf]
  %v151 = vld [vmem:[%s2] sm:$0x1]
  %v153 = vlaneseq
  %v154 = vshrl.u32 %v153, 7
  %v155 = vsub.s32 0, %v154
  %v156 = vrot.slane %v151, %v155
  %v166 = vunpack.c.l.b16 %v15
  %v167 = vunpack.c.h.b16 %v15
  %v168 = vunpack.c.l.b16 %v16
  %v169 = vunpack.c.h.b16 %v16
  %v170 = vunpack.c.l.b16 %v17
  %v171 = vunpack.c.h.b16 %v17
  %v172 = vunpack.c.l.b16 %v18
  %v173 = vunpack.c.h.b16 %v18
  %v174 = vunpack.c.l.b16 %v19
  %v175 = vunpack.c.h.b16 %v19
  %v176 = vunpack.c.l.b16 %v20
  %v177 = vunpack.c.h.b16 %v20
  %v178 = vunpack.c.l.b16 %v21
  %v179 = vunpack.c.h.b16 %v21
  %v180 = vunpack.c.l.b16 %v22
  %v181 = vunpack.c.h.b16 %v22
  %v182 = vpack.c.b16 %v174, %v166
  %v183 = vpack.c.b16 %v175, %v167
  %v184 = vpack.c.b16 %v176, %v168
  %v185 = vpack.c.b16 %v177, %v169
  %v186 = vpack.c.b16 %v178, %v170
  %v187 = vpack.c.b16 %v179, %v171
  %v188 = vpack.c.b16 %v180, %v172
  %v189 = vpack.c.b16 %v181, %v173
  %v326 = vunpack.c.l.b16 %v23
  %v327 = vunpack.c.l.b16 %v24
  %v328 = vunpack.c.l.b16 %v25
  %v329 = vunpack.c.l.b16 %v26
  %v330 = vunpack.c.l.b16 %v27
  %v331 = vunpack.c.l.b16 %v28
  %v332 = vunpack.c.l.b16 %v29
  %v333 = vunpack.c.l.b16 %v30
  %v334 = vunpack.c.l.b16 %v31
  %v335 = vunpack.c.l.b16 %v32
  %v336 = vunpack.c.l.b16 %v33
  %v337 = vunpack.c.l.b16 %v34
  %v338 = vunpack.c.l.b16 %v35
  %v339 = vunpack.c.l.b16 %v36
  %v340 = vunpack.c.l.b16 %v37
  %v341 = vunpack.c.l.b16 %v38
  %v342 = vunpack.c.l.b16 %v39
  %v343 = vunpack.c.l.b16 %v40
  %v344 = vunpack.c.l.b16 %v41
  %v345 = vunpack.c.l.b16 %v42
  %v346 = vunpack.c.l.b16 %v43
  %v347 = vunpack.c.l.b16 %v44
  %v348 = vunpack.c.l.b16 %v45
  %v349 = vunpack.c.l.b16 %v46
  %v350 = vunpack.c.l.b16 %v47
  %v351 = vunpack.c.l.b16 %v48
  %v352 = vunpack.c.l.b16 %v49
  %v353 = vunpack.c.l.b16 %v50
  %v354 = vunpack.c.l.b16 %v51
  %v355 = vunpack.c.l.b16 %v52
  %v356 = vunpack.c.l.b16 %v53
  %v357 = vunpack.c.l.b16 %v54
  %v358 = vunpack.c.l.b16 %v55
  %v359 = vunpack.c.l.b16 %v56
  %v360 = vunpack.c.l.b16 %v57
  %v361 = vunpack.c.l.b16 %v58
  %v362 = vunpack.c.l.b16 %v59
  %v363 = vunpack.c.l.b16 %v60
  %v364 = vunpack.c.l.b16 %v61
  %v365 = vunpack.c.l.b16 %v62
  %v366 = vunpack.c.l.b16 %v63
  %v367 = vunpack.c.l.b16 %v64
  %v368 = vunpack.c.l.b16 %v65
  %v369 = vunpack.c.l.b16 %v66
  %v370 = vunpack.c.l.b16 %v67
  %v371 = vunpack.c.l.b16 %v68
  %v372 = vunpack.c.l.b16 %v69
  %v373 = vunpack.c.l.b16 %v70
  %v374 = vunpack.c.l.b16 %v71
  %v375 = vunpack.c.l.b16 %v72
  %v376 = vunpack.c.l.b16 %v73
  %v377 = vunpack.c.l.b16 %v74
  %v378 = vunpack.c.l.b16 %v75
  %v379 = vunpack.c.l.b16 %v76
  %v380 = vunpack.c.l.b16 %v77
  %v381 = vunpack.c.l.b16 %v78
  %v382 = vunpack.c.l.b16 %v79
  %v383 = vunpack.c.l.b16 %v80
  %v384 = vunpack.c.l.b16 %v81
  %v385 = vunpack.c.l.b16 %v82
  %v386 = vunpack.c.l.b16 %v83
  %v387 = vunpack.c.l.b16 %v84
  %v388 = vunpack.c.l.b16 %v85
  %v389 = vunpack.c.l.b16 %v86
  %v390 = vunpack.c.l.b16 %v87
  %v391 = vunpack.c.l.b16 %v88
  %v392 = vunpack.c.l.b16 %v89
  %v393 = vunpack.c.l.b16 %v90
  %v394 = vunpack.c.l.b16 %v91
  %v395 = vunpack.c.l.b16 %v92
  %v396 = vunpack.c.l.b16 %v93
  %v397 = vunpack.c.l.b16 %v94
  %v398 = vunpack.c.l.b16 %v95
  %v399 = vunpack.c.l.b16 %v96
  %v400 = vunpack.c.l.b16 %v97
  %v401 = vunpack.c.l.b16 %v98
  %v402 = vunpack.c.l.b16 %v99
  %v403 = vunpack.c.l.b16 %v100
  %v404 = vunpack.c.l.b16 %v101
  %v405 = vunpack.c.l.b16 %v102
  %v406 = vunpack.c.l.b16 %v103
  %v407 = vunpack.c.l.b16 %v104
  %v408 = vunpack.c.l.b16 %v105
  %v409 = vunpack.c.l.b16 %v106
  %v410 = vunpack.c.l.b16 %v107
  %v411 = vunpack.c.l.b16 %v108
  %v412 = vunpack.c.l.b16 %v109
  %v413 = vunpack.c.l.b16 %v110
  %v414 = vunpack.c.l.b16 %v111
  %v415 = vunpack.c.l.b16 %v112
  %v416 = vunpack.c.l.b16 %v113
  %v417 = vunpack.c.l.b16 %v114
  %v418 = vunpack.c.l.b16 %v115
  %v419 = vunpack.c.l.b16 %v116
  %v420 = vunpack.c.l.b16 %v117
  %v421 = vunpack.c.l.b16 %v118
  %v422 = vunpack.c.l.b16 %v119
  %v423 = vunpack.c.l.b16 %v120
  %v424 = vunpack.c.l.b16 %v121
  %v425 = vunpack.c.l.b16 %v122
  %v426 = vunpack.c.l.b16 %v123
  %v427 = vunpack.c.l.b16 %v124
  %v428 = vunpack.c.l.b16 %v125
  %v429 = vunpack.c.l.b16 %v126
  %v430 = vunpack.c.l.b16 %v127
  %v431 = vunpack.c.l.b16 %v128
  %v432 = vunpack.c.l.b16 %v129
  %v433 = vunpack.c.l.b16 %v130
  %v434 = vunpack.c.l.b16 %v131
  %v435 = vunpack.c.l.b16 %v132
  %v436 = vunpack.c.l.b16 %v133
  %v437 = vunpack.c.l.b16 %v134
  %v438 = vunpack.c.l.b16 %v135
  %v439 = vunpack.c.l.b16 %v136
  %v440 = vunpack.c.l.b16 %v137
  %v441 = vunpack.c.l.b16 %v138
  %v442 = vunpack.c.l.b16 %v139
  %v443 = vunpack.c.l.b16 %v140
  %v444 = vunpack.c.l.b16 %v141
  %v445 = vunpack.c.l.b16 %v142
  %v446 = vunpack.c.l.b16 %v143
  %v447 = vunpack.c.l.b16 %v144
  %v448 = vunpack.c.l.b16 %v145
  %v449 = vunpack.c.l.b16 %v146
  %v450 = vunpack.c.l.b16 %v147
  %v451 = vunpack.c.l.b16 %v148
  %v452 = vunpack.c.l.b16 %v149
  %v453 = vunpack.c.l.b16 %v150
  %v454 = vpack.c.b16 %v327, %v326
  %v455 = vpack.c.b16 %v329, %v328
  %v456 = vpack.c.b16 %v331, %v330
  %v457 = vpack.c.b16 %v333, %v332
  %v458 = vpack.c.b16 %v335, %v334
  %v459 = vpack.c.b16 %v337, %v336
  %v460 = vpack.c.b16 %v339, %v338
  %v461 = vpack.c.b16 %v341, %v340
  %v462 = vpack.c.b16 %v343, %v342
  %v463 = vpack.c.b16 %v345, %v344
  %v464 = vpack.c.b16 %v347, %v346
  %v465 = vpack.c.b16 %v349, %v348
  %v466 = vpack.c.b16 %v351, %v350
  %v467 = vpack.c.b16 %v353, %v352
  %v468 = vpack.c.b16 %v355, %v354
  %v469 = vpack.c.b16 %v357, %v356
  %v470 = vpack.c.b16 %v359, %v358
  %v471 = vpack.c.b16 %v361, %v360
  %v472 = vpack.c.b16 %v363, %v362
  %v473 = vpack.c.b16 %v365, %v364
  %v474 = vpack.c.b16 %v367, %v366
  %v475 = vpack.c.b16 %v369, %v368
  %v476 = vpack.c.b16 %v371, %v370
  %v477 = vpack.c.b16 %v373, %v372
  %v478 = vpack.c.b16 %v375, %v374
  %v479 = vpack.c.b16 %v377, %v376
  %v480 = vpack.c.b16 %v379, %v378
  %v481 = vpack.c.b16 %v381, %v380
  %v482 = vpack.c.b16 %v383, %v382
  %v483 = vpack.c.b16 %v385, %v384
  %v484 = vpack.c.b16 %v387, %v386
  %v485 = vpack.c.b16 %v389, %v388
  %v486 = vpack.c.b16 %v391, %v390
  %v487 = vpack.c.b16 %v393, %v392
  %v488 = vpack.c.b16 %v395, %v394
  %v489 = vpack.c.b16 %v397, %v396
  %v490 = vpack.c.b16 %v399, %v398
  %v491 = vpack.c.b16 %v401, %v400
  %v492 = vpack.c.b16 %v403, %v402
  %v493 = vpack.c.b16 %v405, %v404
  %v494 = vpack.c.b16 %v407, %v406
  %v495 = vpack.c.b16 %v409, %v408
  %v496 = vpack.c.b16 %v411, %v410
  %v497 = vpack.c.b16 %v413, %v412
  %v498 = vpack.c.b16 %v415, %v414
  %v499 = vpack.c.b16 %v417, %v416
  %v500 = vpack.c.b16 %v419, %v418
  %v501 = vpack.c.b16 %v421, %v420
  %v502 = vpack.c.b16 %v423, %v422
  %v503 = vpack.c.b16 %v425, %v424
  %v504 = vpack.c.b16 %v427, %v426
  %v505 = vpack.c.b16 %v429, %v428
  %v506 = vpack.c.b16 %v431, %v430
  %v507 = vpack.c.b16 %v433, %v432
  %v508 = vpack.c.b16 %v435, %v434
  %v509 = vpack.c.b16 %v437, %v436
  %v510 = vpack.c.b16 %v439, %v438
  %v511 = vpack.c.b16 %v441, %v440
  %v512 = vpack.c.b16 %v443, %v442
  %v513 = vpack.c.b16 %v445, %v444
  %v514 = vpack.c.b16 %v447, %v446
  %v515 = vpack.c.b16 %v449, %v448
  %v516 = vpack.c.b16 %v451, %v450
  %v517 = vpack.c.b16 %v453, %v452
  %582 = vmatprep.subr.bf16.mxu0 0
  %583 = vmatpush1.bf16.msra.mxu0 %v454
  %584 = vmatprep.subr.bf16.mxu0 0
  %585 = vmatpush1.bf16.msra.mxu0 %v455
  %586 = vmatprep.subr.bf16.mxu0 0
  %587 = vmatpush1.bf16.msra.mxu0 %v456
  %588 = vmatprep.subr.bf16.mxu0 0
  %589 = vmatpush1.bf16.msra.mxu0 %v457
  %590 = vmatprep.subr.bf16.mxu0 0
  %591 = vmatpush1.bf16.msra.mxu0 %v458
  %592 = vmatprep.subr.bf16.mxu0 0
  %593 = vmatpush1.bf16.msra.mxu0 %v459
  %594 = vmatprep.subr.bf16.mxu0 0
  %595 = vmatpush1.bf16.msra.mxu0 %v460
  %596 = vmatprep.subr.bf16.mxu0 0
  %597 = vmatpush1.bf16.msra.mxu0 %v461
  %598 = vmatprep.subr.bf16.mxu0 0
  %599 = vmatpush1.bf16.msra.mxu0 %v462
  %600 = vmatprep.subr.bf16.mxu0 0
  %601 = vmatpush1.bf16.msra.mxu0 %v463
  %602 = vmatprep.subr.bf16.mxu0 0
  %603 = vmatpush1.bf16.msra.mxu0 %v464
  %604 = vmatprep.subr.bf16.mxu0 0
  %605 = vmatpush1.bf16.msra.mxu0 %v465
  %606 = vmatprep.subr.bf16.mxu0 0
  %607 = vmatpush1.bf16.msra.mxu0 %v466
  %608 = vmatprep.subr.bf16.mxu0 0
  %609 = vmatpush1.bf16.msra.mxu0 %v467
  %610 = vmatprep.subr.bf16.mxu0 0
  %611 = vmatpush1.bf16.msra.mxu0 %v468
  %612 = vmatprep.subr.bf16.mxu0 0
  %613 = vmatpush1.bf16.msra.mxu0 %v469
  %614 = vmatprep.mubr.bf16.mxu0 %v183
  %615 = vmatmul.mubr.bf16.gmra.mrb[0].mxu0 %v182
  %v616 = vpop.f32.mrb[0].mxu0
  %v617 = vadd.f32 %v156, %v616
  %v618 = vpop.f32.mrb[0].mxu0
  %v619 = vpop.f32.mrb[0].mxu0
  %v620 = vadd.f32 %v156, %v619
  %v621 = vpop.f32.mrb[0].mxu0
  %622 = vdwg.mxu0
  %623 = vmatprep.subr.bf16.mxu0 0
  %624 = vmatpush1.bf16.msra.mxu0 %v470
  %625 = vmatprep.subr.bf16.mxu0 0
  %626 = vmatpush1.bf16.msra.mxu0 %v471
  %627 = vmatprep.subr.bf16.mxu0 0
  %628 = vmatpush1.bf16.msra.mxu0 %v472
  %629 = vmatprep.subr.bf16.mxu0 0
  %630 = vmatpush1.bf16.msra.mxu0 %v473
  %631 = vmatprep.subr.bf16.mxu0 0
  %632 = vmatpush1.bf16.msra.mxu0 %v474
  %633 = vmatprep.subr.bf16.mxu0 0
  %634 = vmatpush1.bf16.msra.mxu0 %v475
  %635 = vmatprep.subr.bf16.mxu0 0
  %636 = vmatpush1.bf16.msra.mxu0 %v476
  %637 = vmatprep.subr.bf16.mxu0 0
  %638 = vmatpush1.bf16.msra.mxu0 %v477
  %639 = vmatprep.subr.bf16.mxu0 0
  %640 = vmatpush1.bf16.msra.mxu0 %v478
  %641 = vmatprep.subr.bf16.mxu0 0
  %642 = vmatpush1.bf16.msra.mxu0 %v479
  %643 = vmatprep.subr.bf16.mxu0 0
  %644 = vmatpush1.bf16.msra.mxu0 %v480
  %645 = vmatprep.subr.bf16.mxu0 0
  %646 = vmatpush1.bf16.msra.mxu0 %v481
  %647 = vmatprep.subr.bf16.mxu0 0
  %648 = vmatpush1.bf16.msra.mxu0 %v482
  %649 = vmatprep.subr.bf16.mxu0 0
  %650 = vmatpush1.bf16.msra.mxu0 %v483
  %651 = vmatprep.subr.bf16.mxu0 0
  %652 = vmatpush1.bf16.msra.mxu0 %v484
  %653 = vmatprep.subr.bf16.mxu0 0
  %654 = vmatpush1.bf16.msra.mxu0 %v485
  %655 = vmatprep.mubr.bf16.mxu0 %v185
  %656 = vmatmul.mubr.bf16.gmra.mrb[0].mxu0 %v184
  %v657 = vpop.f32.mrb[0].mxu0
  %v658 = vadd.f32 %v617, %v657
  %v659 = vpop.f32.mrb[0].mxu0
  %v660 = vpop.f32.mrb[0].mxu0
  %v661 = vadd.f32 %v620, %v660
  %v662 = vpop.f32.mrb[0].mxu0
  %663 = vdwg.mxu0
  %664 = vmatprep.subr.bf16.mxu0 0
  %665 = vmatpush1.bf16.msra.mxu0 %v486
  %666 = vmatprep.subr.bf16.mxu0 0
  %667 = vmatpush1.bf16.msra.mxu0 %v487
  %668 = vmatprep.subr.bf16.mxu0 0
  %669 = vmatpush1.bf16.msra.mxu0 %v488
  %670 = vmatprep.subr.bf16.mxu0 0
  %671 = vmatpush1.bf16.msra.mxu0 %v489
  %672 = vmatprep.subr.bf16.mxu0 0
  %673 = vmatpush1.bf16.msra.mxu0 %v490
  %674 = vmatprep.subr.bf16.mxu0 0
  %675 = vmatpush1.bf16.msra.mxu0 %v491
  %676 = vmatprep.subr.bf16.mxu0 0
  %677 = vmatpush1.bf16.msra.mxu0 %v492
  %678 = vmatprep.subr.bf16.mxu0 0
  %679 = vmatpush1.bf16.msra.mxu0 %v493
  %680 = vmatprep.subr.bf16.mxu0 0
  %681 = vmatpush1.bf16.msra.mxu0 %v494
  %682 = vmatprep.subr.bf16.mxu0 0
  %683 = vmatpush1.bf16.msra.mxu0 %v495
  %684 = vmatprep.subr.bf16.mxu0 0
  %685 = vmatpush1.bf16.msra.mxu0 %v496
  %686 = vmatprep.subr.bf16.mxu0 0
  %687 = vmatpush1.bf16.msra.mxu0 %v497
  %688 = vmatprep.subr.bf16.mxu0 0
  %689 = vmatpush1.bf16.msra.mxu0 %v498
  %690 = vmatprep.subr.bf16.mxu0 0
  %691 = vmatpush1.bf16.msra.mxu0 %v499
  %692 = vmatprep.subr.bf16.mxu0 0
  %693 = vmatpush1.bf16.msra.mxu0 %v500
  %694 = vmatprep.subr.bf16.mxu0 0
  %695 = vmatpush1.bf16.msra.mxu0 %v501
  %696 = vmatprep.mubr.bf16.mxu0 %v187
  %697 = vmatmul.mubr.bf16.gmra.mrb[0].mxu0 %v186
  %v698 = vpop.f32.mrb[0].mxu0
  %v699 = vadd.f32 %v658, %v698
  %v700 = vpop.f32.mrb[0].mxu0
  %v701 = vpop.f32.mrb[0].mxu0
  %v702 = vadd.f32 %v661, %v701
  %v703 = vpop.f32.mrb[0].mxu0
  %704 = vdwg.mxu0
  %705 = vmatprep.subr.bf16.mxu0 0
  %706 = vmatpush1.bf16.msra.mxu0 %v502
  %707 = vmatprep.subr.bf16.mxu0 0
  %708 = vmatpush1.bf16.msra.mxu0 %v503
  %709 = vmatprep.subr.bf16.mxu0 0
  %710 = vmatpush1.bf16.msra.mxu0 %v504
  %711 = vmatprep.subr.bf16.mxu0 0
  %712 = vmatpush1.bf16.msra.mxu0 %v505
  %713 = vmatprep.subr.bf16.mxu0 0
  %714 = vmatpush1.bf16.msra.mxu0 %v506
  %715 = vmatprep.subr.bf16.mxu0 0
  %716 = vmatpush1.bf16.msra.mxu0 %v507
  %717 = vmatprep.subr.bf16.mxu0 0
  %718 = vmatpush1.bf16.msra.mxu0 %v508
  %719 = vmatprep.subr.bf16.mxu0 0
  %720 = vmatpush1.bf16.msra.mxu0 %v509
  %721 = vmatprep.subr.bf16.mxu0 0
  %722 = vmatpush1.bf16.msra.mxu0 %v510
  %723 = vmatprep.subr.bf16.mxu0 0
  %724 = vmatpush1.bf16.msra.mxu0 %v511
  %725 = vmatprep.subr.bf16.mxu0 0
  %726 = vmatpush1.bf16.msra.mxu0 %v512
  %727 = vmatprep.subr.bf16.mxu0 0
  %728 = vmatpush1.bf16.msra.mxu0 %v513
  %729 = vmatprep.subr.bf16.mxu0 0
  %730 = vmatpush1.bf16.msra.mxu0 %v514
  %731 = vmatprep.subr.bf16.mxu0 0
  %732 = vmatpush1.bf16.msra.mxu0 %v515
  %733 = vmatprep.subr.bf16.mxu0 0
  %734 = vmatpush1.bf16.msra.mxu0 %v516
  %735 = vmatprep.subr.bf16.mxu0 0
  %736 = vmatpush1.bf16.msra.mxu0 %v517
  %737 = vmatprep.mubr.bf16.mxu0 %v189
  %738 = vmatmul.mubr.bf16.gmra.mrb[0].mxu0 %v188
  %v739 = vpop.f32.mrb[0].mxu0
  %v740 = vadd.f32 %v699, %v739
  %v741 = vpop.f32.mrb[0].mxu0
  %v742 = vpop.f32.mrb[0].mxu0
  %v743 = vadd.f32 %v702, %v742
  %v744 = vpop.f32.mrb[0].mxu0
  %745 = vdwg.mxu0
  %746 = vst [vmem:[%s3] sm:$0xff] %v740
  %747 = vst [vmem:[%s3 + $0x8] sm:$0xff] %v743
  // Predicated region
  $region14: #{_lambda_.14} parent=0 // pred_check
    _
  $region15: #{_lambda_.14} parent=0 // pred_check_branch
    %749 = sbr.rel (0) target = $region17
  $region16: #{_lambda_.14} parent=0 // pred_region
    _
  $region17: #{_lambda_.14} parent=0 // pred_fallthru
    _
  // Predicated region
  $region18: #{_lambda_.14} parent=0 // pred_check
    _
  $region19: #{_lambda_.14} parent=0 // pred_check_branch
    %751 = sbr.rel (0) target = $region21
  $region20: #{_lambda_.14} parent=0 // pred_region
    _
  $region21: #{_lambda_.14} parent=0 // pred_fallthru
    _

// kernel: _lambda_.16
$region0: #{_lambda_.16}
  #allocation0 [shape = 'u32[]', space=smem, size = 0x4, offset = 0x4, fixed_abs, tag = 'smem constant byte address 0x4 - core index']
  #allocation1 [shape = 'u32[144,128]{1,0:T(1,128)}', space=vmem, size = 0x12000, scoped, tag = 'internal scratch']
  %s0 = inlined_call_operand.vmem [shape: bf16[4,16,512], index: 0, kind: input, shape index: {}]
  %s1 = inlined_call_operand.vmem [shape: bf16[4,512,128], index: 1, kind: input, shape index: {}]
  %s2 = inlined_call_operand.vmem [shape: f32[1,128], index: 2, kind: input, shape index: {}]
  %s3 = inlined_call_operand.vmem [shape: f32[4,16,128], index: 3, kind: output, shape index: {}]
  %s4 = sld [smem:[#allocation0]]
  $region45: #{_lambda_.16} parent=0
    _
  %s6 = ssub.s32 1, %s4
  %s7 = scalar_select 0, %s6, %s4
  loop: start=0, step=1, limit=6
  $region2: #{_lambda_.16} parent=0 // loop_pre_header
    _
  $region3: #{_lambda_.16} parent=0 // loop_header
    %s9 = sphi 0, %s13
    %p10 = scmp.ge.s32.totalorder %s9, 6
    %s16 = sphi 0, %s28
    %s17 = sphi 0, %s24
    %s18 = sphi 0, %s16
    %s19 = sphi 0, %s17
    %s20 = sphi 0, %s18
    %s21 = sphi 0, %s19
    %s33 = sphi 0, %s35
    %s36 = sphi 0, %s33
    %s37 = sphi 0, %s36
    %s53 = sphi 0, %s37
    %s59 = sphi 0, %s61
    %s62 = sphi 0, %s59
    %s63 = sphi 0, %s62
    %s79 = sphi 0, %s63
    %s83 = sphi 0, %s83
    %s85 = sphi 0, %s83
    %s86 = sphi 0, %s85
    %s100 = sphi 0, %s86
    %s108 = sphi 0, %s110
    %s111 = sphi 0, %s108
    %s112 = sphi 0, %s111
    %s128 = sphi 0, %s112
  $region4: #{_lambda_.16} parent=0 // loop_header_branch
    %12 = sbr.rel (%p10) target = $region8
  $region5: #{_lambda_.16} parent=0 // loop_body
    %s14 = ssub.s32 %s9, 1
    %s15 = ssub.s32 %s9, 2
    %s22 = sadd.s32 1, %s17
    %p23 = scmp.ge.s32.totalorder %s22, 1
    %s24 = scalar_select %p23, 0, %s22
    %s25 = sadd.s32 1, %s16
    %s26 = scalar_select %p23, %s25, %s16
    %p27 = scmp.ge.s32.totalorder %s26, 4
    %s28 = scalar_select %p27, 0, %s26
    %s29 = ssub.s32 %s16, %s28
    %s30 = ssub.s32 %s17, %s24
    %s31 = sor.u32 %s29, %s30
    %p32 = scmp.eq.s32.totalorder %s31, 0
    %s34 = sadd.s32 %s33, 1
    %s35 = scalar_select %p32, %s33, %s34
    %p38 = pneg %p32
    %p39 = scmp.eq.s32.totalorder %s9, 3
    %p40 = por %p38, %p39
    %p41 = scmp.ne.s32.totalorder %s33, %s36
    %p42 = scmp.eq.s32.totalorder %s9, 0
    %p43 = por %p41, %p42
    %p44 = scmp.ne.s32.totalorder %s33, %s36
    %p45 = scmp.eq.s32.totalorder %s14, 3
    %p46 = por %p44, %p45
    %p47 = scmp.ne.s32.totalorder %s36, %s37
    %p48 = scmp.eq.s32.totalorder %s14, 0
    %p49 = por %p47, %p48
    %p50 = scmp.ne.s32.totalorder %s36, %s37
    %p51 = scmp.eq.s32.totalorder %s15, 3
    %p52 = por %p50, %p51
    %p54 = scmp.ne.s32.totalorder %s37, %s53
    %p55 = scmp.eq.s32.totalorder %s15, 0
    %p56 = por %p54, %p55
    %s57 = ssub.s32 %s16, %s28
    %p58 = scmp.eq.s32.totalorder %s57, 0
    %s60 = sadd.s32 %s59, 1
    %s61 = scalar_select %p58, %s59, %s60
    %p64 = pneg %p58
    %p65 = scmp.eq.s32.totalorder %s9, 3
    %p66 = por %p64, %p65
    %p67 = scmp.ne.s32.totalorder %s59, %s62
    %p68 = scmp.eq.s32.totalorder %s9, 0
    %p69 = por %p67, %p68
    %p70 = scmp.ne.s32.totalorder %s59, %s62
    %p71 = scmp.eq.s32.totalorder %s14, 3
    %p72 = por %p70, %p71
    %p73 = scmp.ne.s32.totalorder %s62, %s63
    %p74 = scmp.eq.s32.totalorder %s14, 0
    %p75 = por %p73, %p74
    %p76 = scmp.ne.s32.totalorder %s62, %s63
    %p77 = scmp.eq.s32.totalorder %s15, 3
    %p78 = por %p76, %p77
    %p80 = scmp.ne.s32.totalorder %s63, %s79
    %p81 = scmp.eq.s32.totalorder %s15, 0
    %p82 = por %p80, %p81
    %s84 = sadd.s32 %s83, 1
    %p87 = scmp.eq.s32.totalorder %s9, 3
    %p88 = scmp.ne.s32.totalorder %s83, %s85
    %p89 = scmp.eq.s32.totalorder %s9, 0
    %p90 = por %p88, %p89
    %p91 = scmp.ne.s32.totalorder %s83, %s85
    %p92 = scmp.eq.s32.totalorder %s14, 3
    %p93 = por %p91, %p92
    %p94 = scmp.ne.s32.totalorder %s85, %s86
    %p95 = scmp.eq.s32.totalorder %s14, 0
    %p96 = por %p94, %p95
    %p97 = scmp.ne.s32.totalorder %s85, %s86
    %p98 = scmp.eq.s32.totalorder %s15, 3
    %p99 = por %p97, %p98
    %p101 = scmp.ne.s32.totalorder %s86, %s100
    %p102 = scmp.eq.s32.totalorder %s15, 0
    %p103 = por %p101, %p102
    %s104 = ssub.s32 %s16, %s28
    %s105 = ssub.s32 %s17, %s24
    %s106 = sor.u32 %s104, %s105
    %p107 = scmp.eq.s32.totalorder %s106, 0
    %s109 = sadd.s32 %s108, 1
    %s110 = scalar_select %p107, %s108, %s109
    %p113 = pneg %p107
    %p114 = scmp.eq.s32.totalorder %s9, 3
    %p115 = por %p113, %p114
    %p116 = scmp.ne.s32.totalorder %s108, %s111
    %p117 = scmp.eq.s32.totalorder %s9, 0
    %p118 = por %p116, %p117
    %p119 = scmp.ne.s32.totalorder %s108, %s111
    %p120 = scmp.eq.s32.totalorder %s14, 3
    %p121 = por %p119, %p120
    %p122 = scmp.ne.s32.totalorder %s111, %s112
    %p123 = scmp.eq.s32.totalorder %s14, 0
    %p124 = por %p122, %p123
    %p125 = scmp.ne.s32.totalorder %s111, %s112
    %p126 = scmp.eq.s32.totalorder %s15, 3
    %p127 = por %p125, %p126
    %p129 = scmp.ne.s32.totalorder %s112, %s128
    %p130 = scmp.eq.s32.totalorder %s15, 0
    %p131 = por %p129, %p130
    %p132 = scmp.le.s32.totalorder 1, %s9
    %p133 = scmp.lt.s32.totalorder %s9, 5
    %p134 = pnand %p132, %p133
    %p135 = pneg %p134
    // Predicated region
    $region9: #{_lambda_.16} parent=5 // pred_check
      _
    $region10: #{_lambda_.16} parent=5 // pred_check_branch
      %137 = sbr.rel (%p134) target = $region12
    $region11: #{_lambda_.16} parent=5 // pred_region
      %s138 = ssub.s32 %s9, 1
      // Predicated region
      $region13: #{_lambda_.16} parent=11 // pred_check
        %p139 = pneg %p96
      $region14: #{_lambda_.16} parent=11 // pred_check_branch
        %141 = sbr.rel (%p139) target = $region16
      $region15: #{_lambda_.16} parent=11 // pred_region
        _
      $region16: #{_lambda_.16} parent=11 // pred_fallthru
        _
    $region12: #{_lambda_.16} parent=5 // pred_fallthru
      _
    %p142 = scmp.lt.s32.totalorder %s9, 4
    // Predicated region
    $region17: #{_lambda_.16} parent=5 // pred_check
      %p143 = pneg %p142
    $region18: #{_lambda_.16} parent=5 // pred_check_branch
      %145 = sbr.rel (%p143) target = $region20
    $region19: #{_lambda_.16} parent=5 // pred_region
      // Predicated region
      $region21: #{_lambda_.16} parent=19 // pred_check
        %p146 = pneg %p43
      $region22: #{_lambda_.16} parent=19 // pred_check_branch
        %148 = sbr.rel (%p146) target = $region24
      $region23: #{_lambda_.16} parent=19 // pred_region
        %s149 = smul.u32 2, %s17
        %p150 = scmp.lt.s32.totalorder %s16, 3
        %s151 = scalar_select %p150, %s16, 3
        %p152 = scmp.lt.s32.totalorder %s149, 1
        %s153 = scalar_select %p152, %s149, 1
        %s154 = smul.addr %s153, 4
        %s155 = smul.addr %s151, 8
        %s156 = sadd.s32 %s154, %s155
        %s157 = smul.addr %s156, 4
        %s158 = scalar_lea.vmem %s0, %s157
        %s159 = smul.u32 2, %s17
      $region24: #{_lambda_.16} parent=19 // pred_fallthru
        _
      // Predicated region
      $region25: #{_lambda_.16} parent=19 // pred_check
        %p160 = pneg %p69
      $region26: #{_lambda_.16} parent=19 // pred_check_branch
        %162 = sbr.rel (%p160) target = $region28
      $region27: #{_lambda_.16} parent=19 // pred_region
        %p163 = scmp.lt.s32.totalorder %s16, 3
        %s164 = scalar_select %p163, %s16, 3
        %s165 = smul.addr %s164, 64
        %s166 = smul.addr %s165, 4
        %s167 = scalar_lea.vmem %s1, %s166
      $region28: #{_lambda_.16} parent=19 // pred_fallthru
        _
    $region20: #{_lambda_.16} parent=5 // pred_fallthru
      _
    %p168 = scmp.le.s32.totalorder 1, %s9
    %p169 = scmp.lt.s32.totalorder %s9, 5
    %p170 = pnand %p168, %p169
    %p171 = pneg %p170
    // Predicated region
    $region29: #{_lambda_.16} parent=5 // pred_check
      _
    $region30: #{_lambda_.16} parent=5 // pred_check_branch
      %173 = sbr.rel (%p170) target = $region32
    $region31: #{_lambda_.16} parent=5 // pred_region
      %s174 = ssub.s32 %s9, 1
      %s175 = smul.u32 2, %s19
      %p176 = scmp.lt.s32.totalorder %s18, 3
      %s177 = scalar_select %p176, %s18, 3
      %p178 = scmp.lt.s32.totalorder %s175, 1
      %s179 = scalar_select %p178, %s175, 1
      %s180 = smul.addr %s179, 4
      %s181 = smul.addr %s177, 8
      %s182 = sadd.s32 %s180, %s181
      %s183 = smul.addr %s182, 4
      %s184 = scalar_lea.vmem %s0, %s183
      %p185 = pneg %p49
      %p186 = pneg %p46
      %p187 = scmp.lt.s32.totalorder %s18, 3
      %s188 = scalar_select %p187, %s18, 3
      %s189 = smul.addr %s188, 64
      %s190 = smul.addr %s189, 4
      %s191 = scalar_lea.vmem %s1, %s190
      %p192 = pneg %p75
      %p193 = pneg %p72
      %p194 = pneg %p96
      %p195 = pneg %p93
      %p196 = pneg %p124
      %p197 = pneg %p121
      %s198 = smul.u32 2, %s19
      %p199 = scmp.lt.s32.totalorder %s18, 3
      %s200 = scalar_select %p199, %s18, 3
      %p201 = scmp.lt.s32.totalorder %s198, 1
      %s202 = scalar_select %p201, %s198, 1
      %s203 = smul.addr %s200, 2
      %s204 = sadd.s32 %s202, %s203
      %s205 = smul.addr %s204, 8
      %s206 = scalar_lea.vmem %s3, %s205
      %s207 = smul.u32 2, %s19
      %p208 = scmp.lt.s32.totalorder %s18, 3
      %s209 = scalar_select %p208, %s18, 3
      %p210 = scmp.lt.s32.totalorder %s207, 1
      %s211 = scalar_select %p210, %s207, 1
      %s212 = smul.addr %s211, 4
      %s213 = smul.addr %s209, 8
      %s214 = sadd.s32 %s212, %s213
      %s215 = smul.addr %s214, 4
      %s216 = scalar_lea.vmem %s0, %s215
      %s217 = smul.u32 2, %s19
      %p218 = scmp.lt.s32.totalorder %s18, 3
      %s219 = scalar_select %p218, %s18, 3
      %s220 = smul.addr %s219, 64
      %s221 = smul.addr %s220, 4
      %s222 = scalar_lea.vmem %s1, %s221
      %s223 = smul.u32 2, %s19
      %p224 = scmp.lt.s32.totalorder %s18, 3
      %s225 = scalar_select %p224, %s18, 3
      %p226 = scmp.lt.s32.totalorder %s223, 1
      %s227 = scalar_select %p226, %s223, 1
      %s228 = smul.addr %s225, 2
      %s229 = sadd.s32 %s227, %s228
      %s230 = smul.addr %s229, 8
      %s231 = scalar_lea.vmem %s3, %s230
      %s232 = smul.u32 2, %s19
      %v234 = vld [vmem:[%s216] sm:$0xff]
      %v235 = vld [vmem:[%s216 + $0x8] sm:$0xff]
      %v236 = vld [vmem:[%s216 + $0x10] sm:$0xff]
      %v237 = vld [vmem:[%s216 + $0x18] sm:$0xff]
      %v238 = vld [vmem:[%s222] sm:$0xf]
      %v239 = vld [vmem:[%s222 + $0x4] sm:$0xf]
      %v240 = vld [vmem:[%s222 + $0x8] sm:$0xf]
      %v241 = vld [vmem:[%s222 + $0xc] sm:$0xf]
      %v242 = vld [vmem:[%s222 + $0x10] sm:$0xf]
      %v243 = vld [vmem:[%s222 + $0x14] sm:$0xf]
      %v244 = vld [vmem:[%s222 + $0x18] sm:$0xf]
      %v245 = vld [vmem:[%s222 + $0x1c] sm:$0xf]
      %v246 = vld [vmem:[%s222 + $0x20] sm:$0xf]
      %v247 = vld [vmem:[%s222 + $0x24] sm:$0xf]
      %v248 = vld [vmem:[%s222 + $0x28] sm:$0xf]
      %v249 = vld [vmem:[%s222 + $0x2c] sm:$0xf]
      %v250 = vld [vmem:[%s222 + $0x30] sm:$0xf]
      %v251 = vld [vmem:[%s222 + $0x34] sm:$0xf]
      %v252 = vld [vmem:[%s222 + $0x38] sm:$0xf]
      %v253 = vld [vmem:[%s222 + $0x3c] sm:$0xf]
      %v254 = vld [vmem:[%s222 + $0x40] sm:$0xf]
      %v255 = vld [vmem:[%s222 + $0x44] sm:$0xf]
      %v256 = vld [vmem:[%s222 + $0x48] sm:$0xf]
      %v257 = vld [vmem:[%s222 + $0x4c] sm:$0xf]
      %v258 = vld [vmem:[%s222 + $0x50] sm:$0xf]
      %v259 = vld [vmem:[%s222 + $0x54] sm:$0xf]
      %v260 = vld [vmem:[%s222 + $0x58] sm:$0xf]
      %v261 = vld [vmem:[%s222 + $0x5c] sm:$0xf]
      %v262 = vld [vmem:[%s222 + $0x60] sm:$0xf]
      %v263 = vld [vmem:[%s222 + $0x64] sm:$0xf]
      %v264 = vld [vmem:[%s222 + $0x68] sm:$0xf]
      %v265 = vld [vmem:[%s222 + $0x6c] sm:$0xf]
      %v266 = vld [vmem:[%s222 + $0x70] sm:$0xf]
      %v267 = vld [vmem:[%s222 + $0x74] sm:$0xf]
      %v268 = vld [vmem:[%s222 + $0x78] sm:$0xf]
      %v269 = vld [vmem:[%s222 + $0x7c] sm:$0xf]
      %v270 = vld [vmem:[%s222 + $0x80] sm:$0xf]
      %v271 = vld [vmem:[%s222 + $0x84] sm:$0xf]
      %v272 = vld [vmem:[%s222 + $0x88] sm:$0xf]
      %v273 = vld [vmem:[%s222 + $0x8c] sm:$0xf]
      %v274 = vld [vmem:[%s222 + $0x90] sm:$0xf]
      %v275 = vld [vmem:[%s222 + $0x94] sm:$0xf]
      %v276 = vld [vmem:[%s222 + $0x98] sm:$0xf]
      %v277 = vld [vmem:[%s222 + $0x9c] sm:$0xf]
      %v278 = vld [vmem:[%s222 + $0xa0] sm:$0xf]
      %v279 = vld [vmem:[%s222 + $0xa4] sm:$0xf]
      %v280 = vld [vmem:[%s222 + $0xa8] sm:$0xf]
      %v281 = vld [vmem:[%s222 + $0xac] sm:$0xf]
      %v282 = vld [vmem:[%s222 + $0xb0] sm:$0xf]
      %v283 = vld [vmem:[%s222 + $0xb4] sm:$0xf]
      %v284 = vld [vmem:[%s222 + $0xb8] sm:$0xf]
      %v285 = vld [vmem:[%s222 + $0xbc] sm:$0xf]
      %v286 = vld [vmem:[%s222 + $0xc0] sm:$0xf]
      %v287 = vld [vmem:[%s222 + $0xc4] sm:$0xf]
      %v288 = vld [vmem:[%s222 + $0xc8] sm:$0xf]
      %v289 = vld [vmem:[%s222 + $0xcc] sm:$0xf]
      %v290 = vld [vmem:[%s222 + $0xd0] sm:$0xf]
      %v291 = vld [vmem:[%s222 + $0xd4] sm:$0xf]
      %v292 = vld [vmem:[%s222 + $0xd8] sm:$0xf]
      %v293 = vld [vmem:[%s222 + $0xdc] sm:$0xf]
      %v294 = vld [vmem:[%s222 + $0xe0] sm:$0xf]
      %v295 = vld [vmem:[%s222 + $0xe4] sm:$0xf]
      %v296 = vld [vmem:[%s222 + $0xe8] sm:$0xf]
      %v297 = vld [vmem:[%s222 + $0xec] sm:$0xf]
      %v298 = vld [vmem:[%s222 + $0xf0] sm:$0xf]
      %v299 = vld [vmem:[%s222 + $0xf4] sm:$0xf]
      %v300 = vld [vmem:[%s222 + $0xf8] sm:$0xf]
      %v301 = vld [vmem:[%s222 + $0xfc] sm:$0xf]
      %v302 = vld [vmem:[%s2] sm:$0x1]
      %v304 = vlaneseq
      %v305 = vshrl.u32 %v304, 7
      %v306 = vsub.s32 0, %v305
      %v307 = vrot.slane %v302, %v306
      %v313 = vunpack.c.l.b16 %v234
      %v314 = vunpack.c.h.b16 %v234
      %v315 = vunpack.c.l.b16 %v235
      %v316 = vunpack.c.h.b16 %v235
      %v317 = vunpack.c.l.b16 %v236
      %v318 = vunpack.c.h.b16 %v236
      %v319 = vunpack.c.l.b16 %v237
      %v320 = vunpack.c.h.b16 %v237
      %v321 = vpack.c.b16 %v317, %v313
      %v322 = vpack.c.b16 %v318, %v314
      %v323 = vpack.c.b16 %v319, %v315
      %v324 = vpack.c.b16 %v320, %v316
      %v393 = vunpack.c.l.b16 %v238
      %v394 = vunpack.c.l.b16 %v239
      %v395 = vunpack.c.l.b16 %v240
      %v396 = vunpack.c.l.b16 %v241
      %v397 = vunpack.c.l.b16 %v242
      %v398 = vunpack.c.l.b16 %v243
      %v399 = vunpack.c.l.b16 %v244
      %v400 = vunpack.c.l.b16 %v245
      %v401 = vunpack.c.l.b16 %v246
      %v402 = vunpack.c.l.b16 %v247
      %v403 = vunpack.c.l.b16 %v248
      %v404 = vunpack.c.l.b16 %v249
      %v405 = vunpack.c.l.b16 %v250
      %v406 = vunpack.c.l.b16 %v251
      %v407 = vunpack.c.l.b16 %v252
      %v408 = vunpack.c.l.b16 %v253
      %v409 = vunpack.c.l.b16 %v254
      %v410 = vunpack.c.l.b16 %v255
      %v411 = vunpack.c.l.b16 %v256
      %v412 = vunpack.c.l.b16 %v257
      %v413 = vunpack.c.l.b16 %v258
      %v414 = vunpack.c.l.b16 %v259
      %v415 = vunpack.c.l.b16 %v260
      %v416 = vunpack.c.l.b16 %v261
      %v417 = vunpack.c.l.b16 %v262
      %v418 = vunpack.c.l.b16 %v263
      %v419 = vunpack.c.l.b16 %v264
      %v420 = vunpack.c.l.b16 %v265
      %v421 = vunpack.c.l.b16 %v266
      %v422 = vunpack.c.l.b16 %v267
      %v423 = vunpack.c.l.b16 %v268
      %v424 = vunpack.c.l.b16 %v269
      %v425 = vunpack.c.l.b16 %v270
      %v426 = vunpack.c.l.b16 %v271
      %v427 = vunpack.c.l.b16 %v272
      %v428 = vunpack.c.l.b16 %v273
      %v429 = vunpack.c.l.b16 %v274
      %v430 = vunpack.c.l.b16 %v275
      %v431 = vunpack.c.l.b16 %v276
      %v432 = vunpack.c.l.b16 %v277
      %v433 = vunpack.c.l.b16 %v278
      %v434 = vunpack.c.l.b16 %v279
      %v435 = vunpack.c.l.b16 %v280
      %v436 = vunpack.c.l.b16 %v281
      %v437 = vunpack.c.l.b16 %v282
      %v438 = vunpack.c.l.b16 %v283
      %v439 = vunpack.c.l.b16 %v284
      %v440 = vunpack.c.l.b16 %v285
      %v441 = vunpack.c.l.b16 %v286
      %v442 = vunpack.c.l.b16 %v287
      %v443 = vunpack.c.l.b16 %v288
      %v444 = vunpack.c.l.b16 %v289
      %v445 = vunpack.c.l.b16 %v290
      %v446 = vunpack.c.l.b16 %v291
      %v447 = vunpack.c.l.b16 %v292
      %v448 = vunpack.c.l.b16 %v293
      %v449 = vunpack.c.l.b16 %v294
      %v450 = vunpack.c.l.b16 %v295
      %v451 = vunpack.c.l.b16 %v296
      %v452 = vunpack.c.l.b16 %v297
      %v453 = vunpack.c.l.b16 %v298
      %v454 = vunpack.c.l.b16 %v299
      %v455 = vunpack.c.l.b16 %v300
      %v456 = vunpack.c.l.b16 %v301
      %v457 = vpack.c.b16 %v394, %v393
      %v458 = vpack.c.b16 %v396, %v395
      %v459 = vpack.c.b16 %v398, %v397
      %v460 = vpack.c.b16 %v400, %v399
      %v461 = vpack.c.b16 %v402, %v401
      %v462 = vpack.c.b16 %v404, %v403
      %v463 = vpack.c.b16 %v406, %v405
      %v464 = vpack.c.b16 %v408, %v407
      %v465 = vpack.c.b16 %v410, %v409
      %v466 = vpack.c.b16 %v412, %v411
      %v467 = vpack.c.b16 %v414, %v413
      %v468 = vpack.c.b16 %v416, %v415
      %v469 = vpack.c.b16 %v418, %v417
      %v470 = vpack.c.b16 %v420, %v419
      %v471 = vpack.c.b16 %v422, %v421
      %v472 = vpack.c.b16 %v424, %v423
      %v473 = vpack.c.b16 %v426, %v425
      %v474 = vpack.c.b16 %v428, %v427
      %v475 = vpack.c.b16 %v430, %v429
      %v476 = vpack.c.b16 %v432, %v431
      %v477 = vpack.c.b16 %v434, %v433
      %v478 = vpack.c.b16 %v436, %v435
      %v479 = vpack.c.b16 %v438, %v437
      %v480 = vpack.c.b16 %v440, %v439
      %v481 = vpack.c.b16 %v442, %v441
      %v482 = vpack.c.b16 %v444, %v443
      %v483 = vpack.c.b16 %v446, %v445
      %v484 = vpack.c.b16 %v448, %v447
      %v485 = vpack.c.b16 %v450, %v449
      %v486 = vpack.c.b16 %v452, %v451
      %v487 = vpack.c.b16 %v454, %v453
      %v488 = vpack.c.b16 %v456, %v455
      %521 = vmatprep.subr.bf16.mxu0 0
      %522 = vmatpush1.bf16.msra.mxu0 %v457
      %523 = vmatprep.subr.bf16.mxu0 0
      %524 = vmatpush1.bf16.msra.mxu0 %v458
      %525 = vmatprep.subr.bf16.mxu0 0
      %526 = vmatpush1.bf16.msra.mxu0 %v459
      %527 = vmatprep.subr.bf16.mxu0 0
      %528 = vmatpush1.bf16.msra.mxu0 %v460
      %529 = vmatprep.subr.bf16.mxu0 0
      %530 = vmatpush1.bf16.msra.mxu0 %v461
      %531 = vmatprep.subr.bf16.mxu0 0
      %532 = vmatpush1.bf16.msra.mxu0 %v462
      %533 = vmatprep.subr.bf16.mxu0 0
      %534 = vmatpush1.bf16.msra.mxu0 %v463
      %535 = vmatprep.subr.bf16.mxu0 0
      %536 = vmatpush1.bf16.msra.mxu0 %v464
      %537 = vmatprep.subr.bf16.mxu0 0
      %538 = vmatpush1.bf16.msra.mxu0 %v465
      %539 = vmatprep.subr.bf16.mxu0 0
      %540 = vmatpush1.bf16.msra.mxu0 %v466
      %541 = vmatprep.subr.bf16.mxu0 0
      %542 = vmatpush1.bf16.msra.mxu0 %v467
      %543 = vmatprep.subr.bf16.mxu0 0
      %544 = vmatpush1.bf16.msra.mxu0 %v468
      %545 = vmatprep.subr.bf16.mxu0 0
      %546 = vmatpush1.bf16.msra.mxu0 %v469
      %547 = vmatprep.subr.bf16.mxu0 0
      %548 = vmatpush1.bf16.msra.mxu0 %v470
      %549 = vmatprep.subr.bf16.mxu0 0
      %550 = vmatpush1.bf16.msra.mxu0 %v471
      %551 = vmatprep.subr.bf16.mxu0 0
      %552 = vmatpush1.bf16.msra.mxu0 %v472
      %553 = vmatprep.mubr.bf16.mxu0 %v322
      %554 = vmatmul.mubr.bf16.gmra.mrb[0].mxu0 %v321
      %v555 = vpop.f32.mrb[0].mxu0
      %v556 = vadd.f32 %v307, %v555
      %v557 = vpop.f32.mrb[0].mxu0
      %v558 = vpop.f32.mrb[0].mxu0
      %v559 = vadd.f32 %v307, %v558
      %v560 = vpop.f32.mrb[0].mxu0
      %561 = vdwg.mxu0
      %562 = vmatprep.subr.bf16.mxu0 0
      %563 = vmatpush1.bf16.msra.mxu0 %v473
      %564 = vmatprep.subr.bf16.mxu0 0
      %565 = vmatpush1.bf16.msra.mxu0 %v474
      %566 = vmatprep.subr.bf16.mxu0 0
      %567 = vmatpush1.bf16.msra.mxu0 %v475
      %568 = vmatprep.subr.bf16.mxu0 0
      %569 = vmatpush1.bf16.msra.mxu0 %v476
      %570 = vmatprep.subr.bf16.mxu0 0
      %571 = vmatpush1.bf16.msra.mxu0 %v477
      %572 = vmatprep.subr.bf16.mxu0 0
      %573 = vmatpush1.bf16.msra.mxu0 %v478
      %574 = vmatprep.subr.bf16.mxu0 0
      %575 = vmatpush1.bf16.msra.mxu0 %v479
      %576 = vmatprep.subr.bf16.mxu0 0
      %577 = vmatpush1.bf16.msra.mxu0 %v480
      %578 = vmatprep.subr.bf16.mxu0 0
      %579 = vmatpush1.bf16.msra.mxu0 %v481
      %580 = vmatprep.subr.bf16.mxu0 0
      %581 = vmatpush1.bf16.msra.mxu0 %v482
      %582 = vmatprep.subr.bf16.mxu0 0
      %583 = vmatpush1.bf16.msra.mxu0 %v483
      %584 = vmatprep.subr.bf16.mxu0 0
      %585 = vmatpush1.bf16.msra.mxu0 %v484
      %586 = vmatprep.subr.bf16.mxu0 0
      %587 = vmatpush1.bf16.msra.mxu0 %v485
      %588 = vmatprep.subr.bf16.mxu0 0
      %589 = vmatpush1.bf16.msra.mxu0 %v486
      %590 = vmatprep.subr.bf16.mxu0 0
      %591 = vmatpush1.bf16.msra.mxu0 %v487
      %592 = vmatprep.subr.bf16.mxu0 0
      %593 = vmatpush1.bf16.msra.mxu0 %v488
      %594 = vmatprep.mubr.bf16.mxu0 %v324
      %595 = vmatmul.mubr.bf16.gmra.mrb[0].mxu0 %v323
      %v596 = vpop.f32.mrb[0].mxu0
      %v597 = vadd.f32 %v556, %v596
      %v598 = vpop.f32.mrb[0].mxu0
      %v599 = vpop.f32.mrb[0].mxu0
      %v600 = vadd.f32 %v559, %v599
      %v601 = vpop.f32.mrb[0].mxu0
      %602 = vdwg.mxu0
      %603 = vst [vmem:[%s231] sm:$0xff] %v597
      %604 = vst [vmem:[%s231 + $0x8] sm:$0xff] %v600
      %s605 = smul.u32 2, %s19
      %p606 = scmp.lt.s32.totalorder %s18, 3
      %s607 = scalar_select %p606, %s18, 3
      %p608 = scmp.lt.s32.totalorder %s605, 1
      %s609 = scalar_select %p608, %s605, 1
      %s610 = smul.addr %s607, 2
      %s611 = sadd.s32 %s609, %s610
      %s612 = smul.addr %s611, 8
      %s613 = scalar_lea.vmem %s3, %s612
      // Predicated region
      $region33: #{_lambda_.16} parent=31 // pred_check
        %p614 = pneg %p121
      $region34: #{_lambda_.16} parent=31 // pred_check_branch
        %616 = sbr.rel (%p614) target = $region36
      $region35: #{_lambda_.16} parent=31 // pred_region
        %s617 = smul.u32 2, %s19
      $region36: #{_lambda_.16} parent=31 // pred_fallthru
        _
    $region32: #{_lambda_.16} parent=5 // pred_fallthru
      _
    %p618 = scmp.le.s32.totalorder 2, %s9
    // Predicated region
    $region37: #{_lambda_.16} parent=5 // pred_check
      %p619 = pneg %p618
    $region38: #{_lambda_.16} parent=5 // pred_check_branch
      %621 = sbr.rel (%p619) target = $region40
    $region39: #{_lambda_.16} parent=5 // pred_region
      %s622 = ssub.s32 %s9, 2
      // Predicated region
      $region41: #{_lambda_.16} parent=39 // pred_check
        %p623 = pneg %p127
      $region42: #{_lambda_.16} parent=39 // pred_check_branch
        %625 = sbr.rel (%p623) target = $region44
      $region43: #{_lambda_.16} parent=39 // pred_region
        %s626 = smul.u32 2, %s21
        %p627 = scmp.lt.s32.totalorder %s20, 3
        %s628 = scalar_select %p627, %s20, 3
        %p629 = scmp.lt.s32.totalorder %s626, 1
        %s630 = scalar_select %p629, %s626, 1
        %s631 = smul.addr %s628, 2
        %s632 = sadd.s32 %s630, %s631
        %s633 = smul.addr %s632, 8
        %s634 = scalar_lea.vmem %s3, %s633
      $region44: #{_lambda_.16} parent=39 // pred_fallthru
        _
    $region40: #{_lambda_.16} parent=5 // pred_fallthru
      _
  $region6: #{_lambda_.16} parent=0 // loop_footer
    %s13 = sadd.s32 1, %s9
  $region7: #{_lambda_.16} parent=0 // loop_footer_branch
    %8 = sbr.rel target = $region3
  $region8: #{_lambda_.16} parent=0 // loop_exit
    _

// kernel: _lambda_.17
$region0: #{_lambda_.17}
  #allocation0 [shape = 'u32[]', space=smem, size = 0x4, offset = 0x4, fixed_abs, tag = 'smem constant byte address 0x4 - core index']
  #allocation1 [shape = 'u32[144,128]{1,0:T(1,128)}', space=vmem, size = 0x12000, scoped, tag = 'internal scratch']
  %s0 = inlined_call_operand.vmem [shape: bf16[4,32,256], index: 0, kind: input, shape index: {}]
  %s1 = inlined_call_operand.vmem [shape: bf16[4,256,128], index: 1, kind: input, shape index: {}]
  %s2 = inlined_call_operand.vmem [shape: f32[1,128], index: 2, kind: input, shape index: {}]
  %s3 = inlined_call_operand.vmem [shape: f32[4,32,128], index: 3, kind: output, shape index: {}]
  %s4 = sld [smem:[#allocation0]]
  $region45: #{_lambda_.17} parent=0
    _
  %s6 = ssub.s32 1, %s4
  %s7 = scalar_select 0, %s6, %s4
  loop: start=0, step=1, limit=6
  $region2: #{_lambda_.17} parent=0 // loop_pre_header
    _
  $region3: #{_lambda_.17} parent=0 // loop_header
    %s9 = sphi 0, %s13
    %p10 = scmp.ge.s32.totalorder %s9, 6
    %s16 = sphi 0, %s28
    %s17 = sphi 0, %s24
    %s18 = sphi 0, %s16
    %s19 = sphi 0, %s17
    %s20 = sphi 0, %s18
    %s21 = sphi 0, %s19
    %s33 = sphi 0, %s35
    %s36 = sphi 0, %s33
    %s37 = sphi 0, %s36
    %s53 = sphi 0, %s37
    %s59 = sphi 0, %s61
    %s62 = sphi 0, %s59
    %s63 = sphi 0, %s62
    %s79 = sphi 0, %s63
    %s83 = sphi 0, %s83
    %s85 = sphi 0, %s83
    %s86 = sphi 0, %s85
    %s100 = sphi 0, %s86
    %s108 = sphi 0, %s110
    %s111 = sphi 0, %s108
    %s112 = sphi 0, %s111
    %s128 = sphi 0, %s112
  $region4: #{_lambda_.17} parent=0 // loop_header_branch
    %12 = sbr.rel (%p10) target = $region8
  $region5: #{_lambda_.17} parent=0 // loop_body
    %s14 = ssub.s32 %s9, 1
    %s15 = ssub.s32 %s9, 2
    %s22 = sadd.s32 1, %s17
    %p23 = scmp.ge.s32.totalorder %s22, 1
    %s24 = scalar_select %p23, 0, %s22
    %s25 = sadd.s32 1, %s16
    %s26 = scalar_select %p23, %s25, %s16
    %p27 = scmp.ge.s32.totalorder %s26, 4
    %s28 = scalar_select %p27, 0, %s26
    %s29 = ssub.s32 %s16, %s28
    %s30 = ssub.s32 %s17, %s24
    %s31 = sor.u32 %s29, %s30
    %p32 = scmp.eq.s32.totalorder %s31, 0
    %s34 = sadd.s32 %s33, 1
    %s35 = scalar_select %p32, %s33, %s34
    %p38 = pneg %p32
    %p39 = scmp.eq.s32.totalorder %s9, 3
    %p40 = por %p38, %p39
    %p41 = scmp.ne.s32.totalorder %s33, %s36
    %p42 = scmp.eq.s32.totalorder %s9, 0
    %p43 = por %p41, %p42
    %p44 = scmp.ne.s32.totalorder %s33, %s36
    %p45 = scmp.eq.s32.totalorder %s14, 3
    %p46 = por %p44, %p45
    %p47 = scmp.ne.s32.totalorder %s36, %s37
    %p48 = scmp.eq.s32.totalorder %s14, 0
    %p49 = por %p47, %p48
    %p50 = scmp.ne.s32.totalorder %s36, %s37
    %p51 = scmp.eq.s32.totalorder %s15, 3
    %p52 = por %p50, %p51
    %p54 = scmp.ne.s32.totalorder %s37, %s53
    %p55 = scmp.eq.s32.totalorder %s15, 0
    %p56 = por %p54, %p55
    %s57 = ssub.s32 %s16, %s28
    %p58 = scmp.eq.s32.totalorder %s57, 0
    %s60 = sadd.s32 %s59, 1
    %s61 = scalar_select %p58, %s59, %s60
    %p64 = pneg %p58
    %p65 = scmp.eq.s32.totalorder %s9, 3
    %p66 = por %p64, %p65
    %p67 = scmp.ne.s32.totalorder %s59, %s62
    %p68 = scmp.eq.s32.totalorder %s9, 0
    %p69 = por %p67, %p68
    %p70 = scmp.ne.s32.totalorder %s59, %s62
    %p71 = scmp.eq.s32.totalorder %s14, 3
    %p72 = por %p70, %p71
    %p73 = scmp.ne.s32.totalorder %s62, %s63
    %p74 = scmp.eq.s32.totalorder %s14, 0
    %p75 = por %p73, %p74
    %p76 = scmp.ne.s32.totalorder %s62, %s63
    %p77 = scmp.eq.s32.totalorder %s15, 3
    %p78 = por %p76, %p77
    %p80 = scmp.ne.s32.totalorder %s63, %s79
    %p81 = scmp.eq.s32.totalorder %s15, 0
    %p82 = por %p80, %p81
    %s84 = sadd.s32 %s83, 1
    %p87 = scmp.eq.s32.totalorder %s9, 3
    %p88 = scmp.ne.s32.totalorder %s83, %s85
    %p89 = scmp.eq.s32.totalorder %s9, 0
    %p90 = por %p88, %p89
    %p91 = scmp.ne.s32.totalorder %s83, %s85
    %p92 = scmp.eq.s32.totalorder %s14, 3
    %p93 = por %p91, %p92
    %p94 = scmp.ne.s32.totalorder %s85, %s86
    %p95 = scmp.eq.s32.totalorder %s14, 0
    %p96 = por %p94, %p95
    %p97 = scmp.ne.s32.totalorder %s85, %s86
    %p98 = scmp.eq.s32.totalorder %s15, 3
    %p99 = por %p97, %p98
    %p101 = scmp.ne.s32.totalorder %s86, %s100
    %p102 = scmp.eq.s32.totalorder %s15, 0
    %p103 = por %p101, %p102
    %s104 = ssub.s32 %s16, %s28
    %s105 = ssub.s32 %s17, %s24
    %s106 = sor.u32 %s104, %s105
    %p107 = scmp.eq.s32.totalorder %s106, 0
    %s109 = sadd.s32 %s108, 1
    %s110 = scalar_select %p107, %s108, %s109
    %p113 = pneg %p107
    %p114 = scmp.eq.s32.totalorder %s9, 3
    %p115 = por %p113, %p114
    %p116 = scmp.ne.s32.totalorder %s108, %s111
    %p117 = scmp.eq.s32.totalorder %s9, 0
    %p118 = por %p116, %p117
    %p119 = scmp.ne.s32.totalorder %s108, %s111
    %p120 = scmp.eq.s32.totalorder %s14, 3
    %p121 = por %p119, %p120
    %p122 = scmp.ne.s32.totalorder %s111, %s112
    %p123 = scmp.eq.s32.totalorder %s14, 0
    %p124 = por %p122, %p123
    %p125 = scmp.ne.s32.totalorder %s111, %s112
    %p126 = scmp.eq.s32.totalorder %s15, 3
    %p127 = por %p125, %p126
    %p129 = scmp.ne.s32.totalorder %s112, %s128
    %p130 = scmp.eq.s32.totalorder %s15, 0
    %p131 = por %p129, %p130
    %p132 = scmp.le.s32.totalorder 1, %s9
    %p133 = scmp.lt.s32.totalorder %s9, 5
    %p134 = pnand %p132, %p133
    %p135 = pneg %p134
    // Predicated region
    $region9: #{_lambda_.17} parent=5 // pred_check
      _
    $region10: #{_lambda_.17} parent=5 // pred_check_branch
      %137 = sbr.rel (%p134) target = $region12
    $region11: #{_lambda_.17} parent=5 // pred_region
      %s138 = ssub.s32 %s9, 1
      // Predicated region
      $region13: #{_lambda_.17} parent=11 // pred_check
        %p139 = pneg %p96
      $region14: #{_lambda_.17} parent=11 // pred_check_branch
        %141 = sbr.rel (%p139) target = $region16
      $region15: #{_lambda_.17} parent=11 // pred_region
        _
      $region16: #{_lambda_.17} parent=11 // pred_fallthru
        _
    $region12: #{_lambda_.17} parent=5 // pred_fallthru
      _
    %p142 = scmp.lt.s32.totalorder %s9, 4
    // Predicated region
    $region17: #{_lambda_.17} parent=5 // pred_check
      %p143 = pneg %p142
    $region18: #{_lambda_.17} parent=5 // pred_check_branch
      %145 = sbr.rel (%p143) target = $region20
    $region19: #{_lambda_.17} parent=5 // pred_region
      // Predicated region
      $region21: #{_lambda_.17} parent=19 // pred_check
        %p146 = pneg %p43
      $region22: #{_lambda_.17} parent=19 // pred_check_branch
        %148 = sbr.rel (%p146) target = $region24
      $region23: #{_lambda_.17} parent=19 // pred_region
        %s149 = smul.u32 4, %s17
        %p150 = scmp.lt.s32.totalorder %s16, 3
        %s151 = scalar_select %p150, %s16, 3
        %p152 = scmp.lt.s32.totalorder %s149, 3
        %s153 = scalar_select %p152, %s149, 3
        %s154 = smul.addr %s153, 2
        %s155 = smul.addr %s151, 8
        %s156 = sadd.s32 %s154, %s155
        %s157 = smul.addr %s156, 4
        %s158 = scalar_lea.vmem %s0, %s157
        %s159 = smul.u32 4, %s17
      $region24: #{_lambda_.17} parent=19 // pred_fallthru
        _
      // Predicated region
      $region25: #{_lambda_.17} parent=19 // pred_check
        %p160 = pneg %p69
      $region26: #{_lambda_.17} parent=19 // pred_check_branch
        %162 = sbr.rel (%p160) target = $region28
      $region27: #{_lambda_.17} parent=19 // pred_region
        %p163 = scmp.lt.s32.totalorder %s16, 3
        %s164 = scalar_select %p163, %s16, 3
        %s165 = smul.addr %s164, 32
        %s166 = smul.addr %s165, 4
        %s167 = scalar_lea.vmem %s1, %s166
      $region28: #{_lambda_.17} parent=19 // pred_fallthru
        _
    $region20: #{_lambda_.17} parent=5 // pred_fallthru
      _
    %p168 = scmp.le.s32.totalorder 1, %s9
    %p169 = scmp.lt.s32.totalorder %s9, 5
    %p170 = pnand %p168, %p169
    %p171 = pneg %p170
    // Predicated region
    $region29: #{_lambda_.17} parent=5 // pred_check
      _
    $region30: #{_lambda_.17} parent=5 // pred_check_branch
      %173 = sbr.rel (%p170) target = $region32
    $region31: #{_lambda_.17} parent=5 // pred_region
      %s174 = ssub.s32 %s9, 1
      %s175 = smul.u32 4, %s19
      %p176 = scmp.lt.s32.totalorder %s18, 3
      %s177 = scalar_select %p176, %s18, 3
      %p178 = scmp.lt.s32.totalorder %s175, 3
      %s179 = scalar_select %p178, %s175, 3
      %s180 = smul.addr %s179, 2
      %s181 = smul.addr %s177, 8
      %s182 = sadd.s32 %s180, %s181
      %s183 = smul.addr %s182, 4
      %s184 = scalar_lea.vmem %s0, %s183
      %p185 = pneg %p49
      %p186 = pneg %p46
      %p187 = scmp.lt.s32.totalorder %s18, 3
      %s188 = scalar_select %p187, %s18, 3
      %s189 = smul.addr %s188, 32
      %s190 = smul.addr %s189, 4
      %s191 = scalar_lea.vmem %s1, %s190
      %p192 = pneg %p75
      %p193 = pneg %p72
      %p194 = pneg %p96
      %p195 = pneg %p93
      %p196 = pneg %p124
      %p197 = pneg %p121
      %s198 = smul.u32 4, %s19
      %p199 = scmp.lt.s32.totalorder %s18, 3
      %s200 = scalar_select %p199, %s18, 3
      %p201 = scmp.lt.s32.totalorder %s198, 3
      %s202 = scalar_select %p201, %s198, 3
      %s203 = smul.addr %s200, 4
      %s204 = sadd.s32 %s202, %s203
      %s205 = smul.addr %s204, 8
      %s206 = scalar_lea.vmem %s3, %s205
      %s207 = smul.u32 4, %s19
      %p208 = scmp.lt.s32.totalorder %s18, 3
      %s209 = scalar_select %p208, %s18, 3
      %p210 = scmp.lt.s32.totalorder %s207, 3
      %s211 = scalar_select %p210, %s207, 3
      %s212 = smul.addr %s211, 2
      %s213 = smul.addr %s209, 8
      %s214 = sadd.s32 %s212, %s213
      %s215 = smul.addr %s214, 4
      %s216 = scalar_lea.vmem %s0, %s215
      %s217 = smul.u32 4, %s19
      %p218 = scmp.lt.s32.totalorder %s18, 3
      %s219 = scalar_select %p218, %s18, 3
      %s220 = smul.addr %s219, 32
      %s221 = smul.addr %s220, 4
      %s222 = scalar_lea.vmem %s1, %s221
      %s223 = smul.u32 4, %s19
      %p224 = scmp.lt.s32.totalorder %s18, 3
      %s225 = scalar_select %p224, %s18, 3
      %p226 = scmp.lt.s32.totalorder %s223, 3
      %s227 = scalar_select %p226, %s223, 3
      %s228 = smul.addr %s225, 4
      %s229 = sadd.s32 %s227, %s228
      %s230 = smul.addr %s229, 8
      %s231 = scalar_lea.vmem %s3, %s230
      %s232 = smul.u32 4, %s19
      %v234 = vld [vmem:[%s216] sm:$0xff]
      %v235 = vld [vmem:[%s216 + $0x8] sm:$0xff]
      %v236 = vld [vmem:[%s216 + $0x10] sm:$0xff]
      %v237 = vld [vmem:[%s216 + $0x18] sm:$0xff]
      %v238 = vld [vmem:[%s222] sm:$0xf]
      %v239 = vld [vmem:[%s222 + $0x4] sm:$0xf]
      %v240 = vld [vmem:[%s222 + $0x8] sm:$0xf]
      %v241 = vld [vmem:[%s222 + $0xc] sm:$0xf]
      %v242 = vld [vmem:[%s222 + $0x10] sm:$0xf]
      %v243 = vld [vmem:[%s222 + $0x14] sm:$0xf]
      %v244 = vld [vmem:[%s222 + $0x18] sm:$0xf]
      %v245 = vld [vmem:[%s222 + $0x1c] sm:$0xf]
      %v246 = vld [vmem:[%s222 + $0x20] sm:$0xf]
      %v247 = vld [vmem:[%s222 + $0x24] sm:$0xf]
      %v248 = vld [vmem:[%s222 + $0x28] sm:$0xf]
      %v249 = vld [vmem:[%s222 + $0x2c] sm:$0xf]
      %v250 = vld [vmem:[%s222 + $0x30] sm:$0xf]
      %v251 = vld [vmem:[%s222 + $0x34] sm:$0xf]
      %v252 = vld [vmem:[%s222 + $0x38] sm:$0xf]
      %v253 = vld [vmem:[%s222 + $0x3c] sm:$0xf]
      %v254 = vld [vmem:[%s222 + $0x40] sm:$0xf]
      %v255 = vld [vmem:[%s222 + $0x44] sm:$0xf]
      %v256 = vld [vmem:[%s222 + $0x48] sm:$0xf]
      %v257 = vld [vmem:[%s222 + $0x4c] sm:$0xf]
      %v258 = vld [vmem:[%s222 + $0x50] sm:$0xf]
      %v259 = vld [vmem:[%s222 + $0x54] sm:$0xf]
      %v260 = vld [vmem:[%s222 + $0x58] sm:$0xf]
      %v261 = vld [vmem:[%s222 + $0x5c] sm:$0xf]
      %v262 = vld [vmem:[%s222 + $0x60] sm:$0xf]
      %v263 = vld [vmem:[%s222 + $0x64] sm:$0xf]
      %v264 = vld [vmem:[%s222 + $0x68] sm:$0xf]
      %v265 = vld [vmem:[%s222 + $0x6c] sm:$0xf]
      %v266 = vld [vmem:[%s222 + $0x70] sm:$0xf]
      %v267 = vld [vmem:[%s222 + $0x74] sm:$0xf]
      %v268 = vld [vmem:[%s222 + $0x78] sm:$0xf]
      %v269 = vld [vmem:[%s222 + $0x7c] sm:$0xf]
      %v270 = vld [vmem:[%s2] sm:$0x1]
      %v272 = vlaneseq
      %v273 = vshrl.u32 %v272, 7
      %v274 = vsub.s32 0, %v273
      %v275 = vrot.slane %v270, %v274
      %v281 = vunpack.c.l.b16 %v234
      %v282 = vunpack.c.h.b16 %v234
      %v283 = vunpack.c.l.b16 %v235
      %v284 = vunpack.c.h.b16 %v235
      %v285 = vunpack.c.l.b16 %v236
      %v286 = vunpack.c.h.b16 %v236
      %v287 = vunpack.c.l.b16 %v237
      %v288 = vunpack.c.h.b16 %v237
      %v289 = vpack.c.b16 %v283, %v281
      %v290 = vpack.c.b16 %v284, %v282
      %v291 = vpack.c.b16 %v287, %v285
      %v292 = vpack.c.b16 %v288, %v286
      %v329 = vunpack.c.l.b16 %v238
      %v330 = vunpack.c.l.b16 %v239
      %v331 = vunpack.c.l.b16 %v240
      %v332 = vunpack.c.l.b16 %v241
      %v333 = vunpack.c.l.b16 %v242
      %v334 = vunpack.c.l.b16 %v243
      %v335 = vunpack.c.l.b16 %v244
      %v336 = vunpack.c.l.b16 %v245
      %v337 = vunpack.c.l.b16 %v246
      %v338 = vunpack.c.l.b16 %v247
      %v339 = vunpack.c.l.b16 %v248
      %v340 = vunpack.c.l.b16 %v249
      %v341 = vunpack.c.l.b16 %v250
      %v342 = vunpack.c.l.b16 %v251
      %v343 = vunpack.c.l.b16 %v252
      %v344 = vunpack.c.l.b16 %v253
      %v345 = vunpack.c.l.b16 %v254
      %v346 = vunpack.c.l.b16 %v255
      %v347 = vunpack.c.l.b16 %v256
      %v348 = vunpack.c.l.b16 %v257
      %v349 = vunpack.c.l.b16 %v258
      %v350 = vunpack.c.l.b16 %v259
      %v351 = vunpack.c.l.b16 %v260
      %v352 = vunpack.c.l.b16 %v261
      %v353 = vunpack.c.l.b16 %v262
      %v354 = vunpack.c.l.b16 %v263
      %v355 = vunpack.c.l.b16 %v264
      %v356 = vunpack.c.l.b16 %v265
      %v357 = vunpack.c.l.b16 %v266
      %v358 = vunpack.c.l.b16 %v267
      %v359 = vunpack.c.l.b16 %v268
      %v360 = vunpack.c.l.b16 %v269
      %v361 = vpack.c.b16 %v330, %v329
      %v362 = vpack.c.b16 %v332, %v331
      %v363 = vpack.c.b16 %v334, %v333
      %v364 = vpack.c.b16 %v336, %v335
      %v365 = vpack.c.b16 %v338, %v337
      %v366 = vpack.c.b16 %v340, %v339
      %v367 = vpack.c.b16 %v342, %v341
      %v368 = vpack.c.b16 %v344, %v343
      %v369 = vpack.c.b16 %v346, %v345
      %v370 = vpack.c.b16 %v348, %v347
      %v371 = vpack.c.b16 %v350, %v349
      %v372 = vpack.c.b16 %v352, %v351
      %v373 = vpack.c.b16 %v354, %v353
      %v374 = vpack.c.b16 %v356, %v355
      %v375 = vpack.c.b16 %v358, %v357
      %v376 = vpack.c.b16 %v360, %v359
      %393 = vmatprep.subr.bf16.mxu0 0
      %394 = vmatpush1.bf16.msra.mxu0 %v361
      %395 = vmatprep.subr.bf16.mxu0 0
      %396 = vmatpush1.bf16.msra.mxu0 %v362
      %397 = vmatprep.subr.bf16.mxu0 0
      %398 = vmatpush1.bf16.msra.mxu0 %v363
      %399 = vmatprep.subr.bf16.mxu0 0
      %400 = vmatpush1.bf16.msra.mxu0 %v364
      %401 = vmatprep.subr.bf16.mxu0 0
      %402 = vmatpush1.bf16.msra.mxu0 %v365
      %403 = vmatprep.subr.bf16.mxu0 0
      %404 = vmatpush1.bf16.msra.mxu0 %v366
      %405 = vmatprep.subr.bf16.mxu0 0
      %406 = vmatpush1.bf16.msra.mxu0 %v367
      %407 = vmatprep.subr.bf16.mxu0 0
      %408 = vmatpush1.bf16.msra.mxu0 %v368
      %409 = vmatprep.subr.bf16.mxu0 0
      %410 = vmatpush1.bf16.msra.mxu0 %v369
      %411 = vmatprep.subr.bf16.mxu0 0
      %412 = vmatpush1.bf16.msra.mxu0 %v370
      %413 = vmatprep.subr.bf16.mxu0 0
      %414 = vmatpush1.bf16.msra.mxu0 %v371
      %415 = vmatprep.subr.bf16.mxu0 0
      %416 = vmatpush1.bf16.msra.mxu0 %v372
      %417 = vmatprep.subr.bf16.mxu0 0
      %418 = vmatpush1.bf16.msra.mxu0 %v373
      %419 = vmatprep.subr.bf16.mxu0 0
      %420 = vmatpush1.bf16.msra.mxu0 %v374
      %421 = vmatprep.subr.bf16.mxu0 0
      %422 = vmatpush1.bf16.msra.mxu0 %v375
      %423 = vmatprep.subr.bf16.mxu0 0
      %424 = vmatpush1.bf16.msra.mxu0 %v376
      %425 = vmatprep.mubr.bf16.mxu0 %v290
      %426 = vmatmul.mubr.bf16.gmra.mrb[0].mxu0 %v289
      %v427 = vpop.f32.mrb[0].mxu0
      %v428 = vadd.f32 %v275, %v427
      %v429 = vpop.f32.mrb[0].mxu0
      %v430 = vpop.f32.mrb[0].mxu0
      %v431 = vadd.f32 %v275, %v430
      %v432 = vpop.f32.mrb[0].mxu0
      %433 = vmatprep.mubr.bf16.mxu0 %v292
      %434 = vmatmul.mubr.bf16.gmra.mrb[0].mxu0 %v291
      %v435 = vpop.f32.mrb[0].mxu0
      %v436 = vadd.f32 %v275, %v435
      %v437 = vpop.f32.mrb[0].mxu0
      %v438 = vpop.f32.mrb[0].mxu0
      %v439 = vadd.f32 %v275, %v438
      %v440 = vpop.f32.mrb[0].mxu0
      %441 = vdwg.mxu0
      %442 = vst [vmem:[%s231] sm:$0xff] %v428
      %443 = vst [vmem:[%s231 + $0x8] sm:$0xff] %v431
      %444 = vst [vmem:[%s231 + $0x10] sm:$0xff] %v436
      %445 = vst [vmem:[%s231 + $0x18] sm:$0xff] %v439
      %s446 = smul.u32 4, %s19
      %p447 = scmp.lt.s32.totalorder %s18, 3
      %s448 = scalar_select %p447, %s18, 3
      %p449 = scmp.lt.s32.totalorder %s446, 3
      %s450 = scalar_select %p449, %s446, 3
      %s451 = smul.addr %s448, 4
      %s452 = sadd.s32 %s450, %s451
      %s453 = smul.addr %s452, 8
      %s454 = scalar_lea.vmem %s3, %s453
      // Predicated region
      $region33: #{_lambda_.17} parent=31 // pred_check
        %p455 = pneg %p121
      $region34: #{_lambda_.17} parent=31 // pred_check_branch
        %457 = sbr.rel (%p455) target = $region36
      $region35: #{_lambda_.17} parent=31 // pred_region
        %s458 = smul.u32 4, %s19
      $region36: #{_lambda_.17} parent=31 // pred_fallthru
        _
    $region32: #{_lambda_.17} parent=5 // pred_fallthru
      _
    %p459 = scmp.le.s32.totalorder 2, %s9
    // Predicated region
    $region37: #{_lambda_.17} parent=5 // pred_check
      %p460 = pneg %p459
    $region38: #{_lambda_.17} parent=5 // pred_check_branch
      %462 = sbr.rel (%p460) target = $region40
    $region39: #{_lambda_.17} parent=5 // pred_region
      %s463 = ssub.s32 %s9, 2
      // Predicated region
      $region41: #{_lambda_.17} parent=39 // pred_check
        %p464 = pneg %p127
      $region42: #{_lambda_.17} parent=39 // pred_check_branch
        %466 = sbr.rel (%p464) target = $region44
      $region43: #{_lambda_.17} parent=39 // pred_region
        %s467 = smul.u32 4, %s21
        %p468 = scmp.lt.s32.totalorder %s20, 3
        %s469 = scalar_select %p468, %s20, 3
        %p470 = scmp.lt.s32.totalorder %s467, 3
        %s471 = scalar_select %p470, %s467, 3
        %s472 = smul.addr %s469, 4
        %s473 = sadd.s32 %s471, %s472
        %s474 = smul.addr %s473, 8
        %s475 = scalar_lea.vmem %s3, %s474
      $region44: #{_lambda_.17} parent=39 // pred_fallthru
        _
    $region40: #{_lambda_.17} parent=5 // pred_fallthru
      _
  $region6: #{_lambda_.17} parent=0 // loop_footer
    %s13 = sadd.s32 1, %s9
  $region7: #{_lambda_.17} parent=0 // loop_footer_branch
    %8 = sbr.rel target = $region3
  $region8: #{_lambda_.17} parent=0 // loop_exit
    _

// kernel: _lambda_.18
$region0: #{_lambda_.18}
  #allocation0 [shape = 'u32[]', space=smem, size = 0x4, offset = 0x4, fixed_abs, tag = 'smem constant byte address 0x4 - core index']
  #allocation1 [shape = 'u32[144,128]{1,0:T(1,128)}', space=vmem, size = 0x12000, scoped, tag = 'internal scratch']
  %s0 = inlined_call_operand.vmem [shape: bf16[4,128,128], index: 0, kind: input, shape index: {}]
  %s1 = inlined_call_operand.vmem [shape: bf16[4,128,128], index: 1, kind: input, shape index: {}]
  %s2 = inlined_call_operand.vmem [shape: f32[1,128], index: 2, kind: input, shape index: {}]
  %s3 = inlined_call_operand.vmem [shape: f32[4,128,128], index: 3, kind: output, shape index: {}]
  %s4 = sld [smem:[#allocation0]]
  $region45: #{_lambda_.18} parent=0
    _
  %s6 = ssub.s32 1, %s4
  %s7 = scalar_select 0, %s6, %s4
  loop: start=0, step=1, limit=6
  $region2: #{_lambda_.18} parent=0 // loop_pre_header
    _
  $region3: #{_lambda_.18} parent=0 // loop_header
    %s9 = sphi 0, %s13
    %p10 = scmp.ge.s32.totalorder %s9, 6
    %s16 = sphi 0, %s28
    %s17 = sphi 0, %s24
    %s18 = sphi 0, %s16
    %s19 = sphi 0, %s17
    %s20 = sphi 0, %s18
    %s21 = sphi 0, %s19
    %s33 = sphi 0, %s35
    %s36 = sphi 0, %s33
    %s37 = sphi 0, %s36
    %s53 = sphi 0, %s37
    %s59 = sphi 0, %s61
    %s62 = sphi 0, %s59
    %s63 = sphi 0, %s62
    %s79 = sphi 0, %s63
    %s83 = sphi 0, %s83
    %s85 = sphi 0, %s83
    %s86 = sphi 0, %s85
    %s100 = sphi 0, %s86
    %s108 = sphi 0, %s110
    %s111 = sphi 0, %s108
    %s112 = sphi 0, %s111
    %s128 = sphi 0, %s112
  $region4: #{_lambda_.18} parent=0 // loop_header_branch
    %12 = sbr.rel (%p10) target = $region8
  $region5: #{_lambda_.18} parent=0 // loop_body
    %s14 = ssub.s32 %s9, 1
    %s15 = ssub.s32 %s9, 2
    %s22 = sadd.s32 1, %s17
    %p23 = scmp.ge.s32.totalorder %s22, 1
    %s24 = scalar_select %p23, 0, %s22
    %s25 = sadd.s32 1, %s16
    %s26 = scalar_select %p23, %s25, %s16
    %p27 = scmp.ge.s32.totalorder %s26, 4
    %s28 = scalar_select %p27, 0, %s26
    %s29 = ssub.s32 %s16, %s28
    %s30 = ssub.s32 %s17, %s24
    %s31 = sor.u32 %s29, %s30
    %p32 = scmp.eq.s32.totalorder %s31, 0
    %s34 = sadd.s32 %s33, 1
    %s35 = scalar_select %p32, %s33, %s34
    %p38 = pneg %p32
    %p39 = scmp.eq.s32.totalorder %s9, 3
    %p40 = por %p38, %p39
    %p41 = scmp.ne.s32.totalorder %s33, %s36
    %p42 = scmp.eq.s32.totalorder %s9, 0
    %p43 = por %p41, %p42
    %p44 = scmp.ne.s32.totalorder %s33, %s36
    %p45 = scmp.eq.s32.totalorder %s14, 3
    %p46 = por %p44, %p45
    %p47 = scmp.ne.s32.totalorder %s36, %s37
    %p48 = scmp.eq.s32.totalorder %s14, 0
    %p49 = por %p47, %p48
    %p50 = scmp.ne.s32.totalorder %s36, %s37
    %p51 = scmp.eq.s32.totalorder %s15, 3
    %p52 = por %p50, %p51
    %p54 = scmp.ne.s32.totalorder %s37, %s53
    %p55 = scmp.eq.s32.totalorder %s15, 0
    %p56 = por %p54, %p55
    %s57 = ssub.s32 %s16, %s28
    %p58 = scmp.eq.s32.totalorder %s57, 0
    %s60 = sadd.s32 %s59, 1
    %s61 = scalar_select %p58, %s59, %s60
    %p64 = pneg %p58
    %p65 = scmp.eq.s32.totalorder %s9, 3
    %p66 = por %p64, %p65
    %p67 = scmp.ne.s32.totalorder %s59, %s62
    %p68 = scmp.eq.s32.totalorder %s9, 0
    %p69 = por %p67, %p68
    %p70 = scmp.ne.s32.totalorder %s59, %s62
    %p71 = scmp.eq.s32.totalorder %s14, 3
    %p72 = por %p70, %p71
    %p73 = scmp.ne.s32.totalorder %s62, %s63
    %p74 = scmp.eq.s32.totalorder %s14, 0
    %p75 = por %p73, %p74
    %p76 = scmp.ne.s32.totalorder %s62, %s63
    %p77 = scmp.eq.s32.totalorder %s15, 3
    %p78 = por %p76, %p77
    %p80 = scmp.ne.s32.totalorder %s63, %s79
    %p81 = scmp.eq.s32.totalorder %s15, 0
    %p82 = por %p80, %p81
    %s84 = sadd.s32 %s83, 1
    %p87 = scmp.eq.s32.totalorder %s9, 3
    %p88 = scmp.ne.s32.totalorder %s83, %s85
    %p89 = scmp.eq.s32.totalorder %s9, 0
    %p90 = por %p88, %p89
    %p91 = scmp.ne.s32.totalorder %s83, %s85
    %p92 = scmp.eq.s32.totalorder %s14, 3
    %p93 = por %p91, %p92
    %p94 = scmp.ne.s32.totalorder %s85, %s86
    %p95 = scmp.eq.s32.totalorder %s14, 0
    %p96 = por %p94, %p95
    %p97 = scmp.ne.s32.totalorder %s85, %s86
    %p98 = scmp.eq.s32.totalorder %s15, 3
    %p99 = por %p97, %p98
    %p101 = scmp.ne.s32.totalorder %s86, %s100
    %p102 = scmp.eq.s32.totalorder %s15, 0
    %p103 = por %p101, %p102
    %s104 = ssub.s32 %s16, %s28
    %s105 = ssub.s32 %s17, %s24
    %s106 = sor.u32 %s104, %s105
    %p107 = scmp.eq.s32.totalorder %s106, 0
    %s109 = sadd.s32 %s108, 1
    %s110 = scalar_select %p107, %s108, %s109
    %p113 = pneg %p107
    %p114 = scmp.eq.s32.totalorder %s9, 3
    %p115 = por %p113, %p114
    %p116 = scmp.ne.s32.totalorder %s108, %s111
    %p117 = scmp.eq.s32.totalorder %s9, 0
    %p118 = por %p116, %p117
    %p119 = scmp.ne.s32.totalorder %s108, %s111
    %p120 = scmp.eq.s32.totalorder %s14, 3
    %p121 = por %p119, %p120
    %p122 = scmp.ne.s32.totalorder %s111, %s112
    %p123 = scmp.eq.s32.totalorder %s14, 0
    %p124 = por %p122, %p123
    %p125 = scmp.ne.s32.totalorder %s111, %s112
    %p126 = scmp.eq.s32.totalorder %s15, 3
    %p127 = por %p125, %p126
    %p129 = scmp.ne.s32.totalorder %s112, %s128
    %p130 = scmp.eq.s32.totalorder %s15, 0
    %p131 = por %p129, %p130
    %p132 = scmp.le.s32.totalorder 1, %s9
    %p133 = scmp.lt.s32.totalorder %s9, 5
    %p134 = pnand %p132, %p133
    %p135 = pneg %p134
    // Predicated region
    $region9: #{_lambda_.18} parent=5 // pred_check
      _
    $region10: #{_lambda_.18} parent=5 // pred_check_branch
      %137 = sbr.rel (%p134) target = $region12
    $region11: #{_lambda_.18} parent=5 // pred_region
      %s138 = ssub.s32 %s9, 1
      // Predicated region
      $region13: #{_lambda_.18} parent=11 // pred_check
        %p139 = pneg %p96
      $region14: #{_lambda_.18} parent=11 // pred_check_branch
        %141 = sbr.rel (%p139) target = $region16
      $region15: #{_lambda_.18} parent=11 // pred_region
        _
      $region16: #{_lambda_.18} parent=11 // pred_fallthru
        _
    $region12: #{_lambda_.18} parent=5 // pred_fallthru
      _
    %p142 = scmp.lt.s32.totalorder %s9, 4
    // Predicated region
    $region17: #{_lambda_.18} parent=5 // pred_check
      %p143 = pneg %p142
    $region18: #{_lambda_.18} parent=5 // pred_check_branch
      %145 = sbr.rel (%p143) target = $region20
    $region19: #{_lambda_.18} parent=5 // pred_region
      // Predicated region
      $region21: #{_lambda_.18} parent=19 // pred_check
        %p146 = pneg %p43
      $region22: #{_lambda_.18} parent=19 // pred_check_branch
        %148 = sbr.rel (%p146) target = $region24
      $region23: #{_lambda_.18} parent=19 // pred_region
        %s149 = smul.u32 16, %s17
        %p150 = scmp.lt.s32.totalorder %s16, 3
        %s151 = scalar_select %p150, %s16, 3
        %p152 = scmp.lt.s32.totalorder %s149, 15
        %s153 = scalar_select %p152, %s149, 15
        %s154 = smul.addr %s151, 16
        %s155 = sadd.s32 %s153, %s154
        %s156 = smul.addr %s155, 4
        %s157 = scalar_lea.vmem %s0, %s156
        %s158 = smul.u32 16, %s17
      $region24: #{_lambda_.18} parent=19 // pred_fallthru
        _
      // Predicated region
      $region25: #{_lambda_.18} parent=19 // pred_check
        %p159 = pneg %p69
      $region26: #{_lambda_.18} parent=19 // pred_check_branch
        %161 = sbr.rel (%p159) target = $region28
      $region27: #{_lambda_.18} parent=19 // pred_region
        %p162 = scmp.lt.s32.totalorder %s16, 3
        %s163 = scalar_select %p162, %s16, 3
        %s164 = smul.addr %s163, 16
        %s165 = smul.addr %s164, 4
        %s166 = scalar_lea.vmem %s1, %s165
      $region28: #{_lambda_.18} parent=19 // pred_fallthru
        _
    $region20: #{_lambda_.18} parent=5 // pred_fallthru
      _
    %p167 = scmp.le.s32.totalorder 1, %s9
    %p168 = scmp.lt.s32.totalorder %s9, 5
    %p169 = pnand %p167, %p168
    %p170 = pneg %p169
    // Predicated region
    $region29: #{_lambda_.18} parent=5 // pred_check
      _
    $region30: #{_lambda_.18} parent=5 // pred_check_branch
      %172 = sbr.rel (%p169) target = $region32
    $region31: #{_lambda_.18} parent=5 // pred_region
      %s173 = ssub.s32 %s9, 1
      %s174 = smul.u32 16, %s19
      %p175 = scmp.lt.s32.totalorder %s18, 3
      %s176 = scalar_select %p175, %s18, 3
      %p177 = scmp.lt.s32.totalorder %s174, 15
      %s178 = scalar_select %p177, %s174, 15
      %s179 = smul.addr %s176, 16
      %s180 = sadd.s32 %s178, %s179
      %s181 = smul.addr %s180, 4
      %s182 = scalar_lea.vmem %s0, %s181
      %p183 = pneg %p49
      %p184 = pneg %p46
      %p185 = scmp.lt.s32.totalorder %s18, 3
      %s186 = scalar_select %p185, %s18, 3
      %s187 = smul.addr %s186, 16
      %s188 = smul.addr %s187, 4
      %s189 = scalar_lea.vmem %s1, %s188
      %p190 = pneg %p75
      %p191 = pneg %p72
      %p192 = pneg %p96
      %p193 = pneg %p93
      %p194 = pneg %p124
      %p195 = pneg %p121
      %s196 = smul.u32 16, %s19
      %p197 = scmp.lt.s32.totalorder %s18, 3
      %s198 = scalar_select %p197, %s18, 3
      %p199 = scmp.lt.s32.totalorder %s196, 15
      %s200 = scalar_select %p199, %s196, 15
      %s201 = smul.addr %s198, 16
      %s202 = sadd.s32 %s200, %s201
      %s203 = smul.addr %s202, 8
      %s204 = scalar_lea.vmem %s3, %s203
      %s205 = smul.u32 16, %s19
      %p206 = scmp.lt.s32.totalorder %s18, 3
      %s207 = scalar_select %p206, %s18, 3
      %p208 = scmp.lt.s32.totalorder %s205, 15
      %s209 = scalar_select %p208, %s205, 15
      %s210 = smul.addr %s207, 16
      %s211 = sadd.s32 %s209, %s210
      %s212 = smul.addr %s211, 4
      %s213 = scalar_lea.vmem %s0, %s212
      %s214 = smul.u32 16, %s19
      %p215 = scmp.lt.s32.totalorder %s18, 3
      %s216 = scalar_select %p215, %s18, 3
      %s217 = smul.addr %s216, 16
      %s218 = smul.addr %s217, 4
      %s219 = scalar_lea.vmem %s1, %s218
      %s220 = smul.u32 16, %s19
      %p221 = scmp.lt.s32.totalorder %s18, 3
      %s222 = scalar_select %p221, %s18, 3
      %p223 = scmp.lt.s32.totalorder %s220, 15
      %s224 = scalar_select %p223, %s220, 15
      %s225 = smul.addr %s222, 16
      %s226 = sadd.s32 %s224, %s225
      %s227 = smul.addr %s226, 8
      %s228 = scalar_lea.vmem %s3, %s227
      %s229 = smul.u32 16, %s19
      %v231 = vld [vmem:[%s213] sm:$0xf]
      %v232 = vld [vmem:[%s213 + $0x4] sm:$0xf]
      %v233 = vld [vmem:[%s213 + $0x8] sm:$0xf]
      %v234 = vld [vmem:[%s213 + $0xc] sm:$0xf]
      %v235 = vld [vmem:[%s213 + $0x10] sm:$0xf]
      %v236 = vld [vmem:[%s213 + $0x14] sm:$0xf]
      %v237 = vld [vmem:[%s213 + $0x18] sm:$0xf]
      %v238 = vld [vmem:[%s213 + $0x1c] sm:$0xf]
      %v239 = vld [vmem:[%s213 + $0x20] sm:$0xf]
      %v240 = vld [vmem:[%s213 + $0x24] sm:$0xf]
      %v241 = vld [vmem:[%s213 + $0x28] sm:$0xf]
      %v242 = vld [vmem:[%s213 + $0x2c] sm:$0xf]
      %v243 = vld [vmem:[%s213 + $0x30] sm:$0xf]
      %v244 = vld [vmem:[%s213 + $0x34] sm:$0xf]
      %v245 = vld [vmem:[%s213 + $0x38] sm:$0xf]
      %v246 = vld [vmem:[%s213 + $0x3c] sm:$0xf]
      %v247 = vld [vmem:[%s219] sm:$0xf]
      %v248 = vld [vmem:[%s219 + $0x4] sm:$0xf]
      %v249 = vld [vmem:[%s219 + $0x8] sm:$0xf]
      %v250 = vld [vmem:[%s219 + $0xc] sm:$0xf]
      %v251 = vld [vmem:[%s219 + $0x10] sm:$0xf]
      %v252 = vld [vmem:[%s219 + $0x14] sm:$0xf]
      %v253 = vld [vmem:[%s219 + $0x18] sm:$0xf]
      %v254 = vld [vmem:[%s219 + $0x1c] sm:$0xf]
      %v255 = vld [vmem:[%s219 + $0x20] sm:$0xf]
      %v256 = vld [vmem:[%s219 + $0x24] sm:$0xf]
      %v257 = vld [vmem:[%s219 + $0x28] sm:$0xf]
      %v258 = vld [vmem:[%s219 + $0x2c] sm:$0xf]
      %v259 = vld [vmem:[%s219 + $0x30] sm:$0xf]
      %v260 = vld [vmem:[%s219 + $0x34] sm:$0xf]
      %v261 = vld [vmem:[%s219 + $0x38] sm:$0xf]
      %v262 = vld [vmem:[%s219 + $0x3c] sm:$0xf]
      %v263 = vld [vmem:[%s2] sm:$0x1]
      %v265 = vlaneseq
      %v266 = vshrl.u32 %v265, 7
      %v267 = vsub.s32 0, %v266
      %v268 = vrot.slane %v263, %v267
      %v286 = vunpack.c.l.b16 %v231
      %v287 = vunpack.c.l.b16 %v232
      %v288 = vunpack.c.l.b16 %v233
      %v289 = vunpack.c.l.b16 %v234
      %v290 = vunpack.c.l.b16 %v235
      %v291 = vunpack.c.l.b16 %v236
      %v292 = vunpack.c.l.b16 %v237
      %v293 = vunpack.c.l.b16 %v238
      %v294 = vunpack.c.l.b16 %v239
      %v295 = vunpack.c.l.b16 %v240
      %v296 = vunpack.c.l.b16 %v241
      %v297 = vunpack.c.l.b16 %v242
      %v298 = vunpack.c.l.b16 %v243
      %v299 = vunpack.c.l.b16 %v244
      %v300 = vunpack.c.l.b16 %v245
      %v301 = vunpack.c.l.b16 %v246
      %v302 = vpack.c.b16 %v287, %v286
      %v303 = vpack.c.b16 %v289, %v288
      %v304 = vpack.c.b16 %v291, %v290
      %v305 = vpack.c.b16 %v293, %v292
      %v306 = vpack.c.b16 %v295, %v294
      %v307 = vpack.c.b16 %v297, %v296
      %v308 = vpack.c.b16 %v299, %v298
      %v309 = vpack.c.b16 %v301, %v300
      %v334 = vunpack.c.l.b16 %v247
      %v335 = vunpack.c.l.b16 %v248
      %v336 = vunpack.c.l.b16 %v249
      %v337 = vunpack.c.l.b16 %v250
      %v338 = vunpack.c.l.b16 %v251
      %v339 = vunpack.c.l.b16 %v252
      %v340 = vunpack.c.l.b16 %v253
      %v341 = vunpack.c.l.b16 %v254
      %v342 = vunpack.c.l.b16 %v255
      %v343 = vunpack.c.l.b16 %v256
      %v344 = vunpack.c.l.b16 %v257
      %v345 = vunpack.c.l.b16 %v258
      %v346 = vunpack.c.l.b16 %v259
      %v347 = vunpack.c.l.b16 %v260
      %v348 = vunpack.c.l.b16 %v261
      %v349 = vunpack.c.l.b16 %v262
      %v350 = vpack.c.b16 %v335, %v334
      %v351 = vpack.c.b16 %v337, %v336
      %v352 = vpack.c.b16 %v339, %v338
      %v353 = vpack.c.b16 %v341, %v340
      %v354 = vpack.c.b16 %v343, %v342
      %v355 = vpack.c.b16 %v345, %v344
      %v356 = vpack.c.b16 %v347, %v346
      %v357 = vpack.c.b16 %v349, %v348
      %366 = vmatprep.subr.bf16.mxu0 0
      %367 = vmatpush1.bf16.msra.mxu0 %v350
      %368 = vmatprep.subr.bf16.mxu0 0
      %369 = vmatpush1.bf16.msra.mxu0 %v351
      %370 = vmatprep.subr.bf16.mxu0 0
      %371 = vmatpush1.bf16.msra.mxu0 %v352
      %372 = vmatprep.subr.bf16.mxu0 0
      %373 = vmatpush1.bf16.msra.mxu0 %v353
      %374 = vmatprep.subr.bf16.mxu0 0
      %375 = vmatpush1.bf16.msra.mxu0 %v354
      %376 = vmatprep.subr.bf16.mxu0 0
      %377 = vmatpush1.bf16.msra.mxu0 %v355
      %378 = vmatprep.subr.bf16.mxu0 0
      %379 = vmatpush1.bf16.msra.mxu0 %v356
      %380 = vmatprep.subr.bf16.mxu0 0
      %381 = vmatpush1.bf16.msra.mxu0 %v357
      %382 = vmatprep.subr.bf16.mxu0 0
      %383 = vmatpush1.bf16.msra.mxu0 0
      %384 = vmatprep.subr.bf16.mxu0 0
      %385 = vmatpush1.bf16.msra.mxu0 0
      %386 = vmatprep.subr.bf16.mxu0 0
      %387 = vmatpush1.bf16.msra.mxu0 0
      %388 = vmatprep.subr.bf16.mxu0 0
      %389 = vmatpush1.bf16.msra.mxu0 0
      %390 = vmatprep.subr.bf16.mxu0 0
      %391 = vmatpush1.bf16.msra.mxu0 0
      %392 = vmatprep.subr.bf16.mxu0 0
      %393 = vmatpush1.bf16.msra.mxu0 0
      %394 = vmatprep.subr.bf16.mxu0 0
      %395 = vmatpush1.bf16.msra.mxu0 0
      %396 = vmatprep.subr.bf16.mxu0 0
      %397 = vmatpush1.bf16.msra.mxu0 0
      %398 = vmatprep.mubr.bf16.mxu0 0
      %399 = vmatmul.mubr.bf16.gmra.mrb[0].mxu0 %v302
      %v400 = vpop.f32.mrb[0].mxu0
      %v401 = vadd.f32 %v268, %v400
      %v402 = vpop.f32.mrb[0].mxu0
      %v403 = vpop.f32.mrb[0].mxu0
      %v404 = vadd.f32 %v268, %v403
      %v405 = vpop.f32.mrb[0].mxu0
      %406 = vmatprep.mubr.bf16.mxu0 0
      %407 = vmatmul.mubr.bf16.gmra.mrb[0].mxu0 %v303
      %v408 = vpop.f32.mrb[0].mxu0
      %v409 = vadd.f32 %v268, %v408
      %v410 = vpop.f32.mrb[0].mxu0
      %v411 = vpop.f32.mrb[0].mxu0
      %v412 = vadd.f32 %v268, %v411
      %v413 = vpop.f32.mrb[0].mxu0
      %414 = vmatprep.mubr.bf16.mxu0 0
      %415 = vmatmul.mubr.bf16.gmra.mrb[0].mxu0 %v304
      %v416 = vpop.f32.mrb[0].mxu0
      %v417 = vadd.f32 %v268, %v416
      %v418 = vpop.f32.mrb[0].mxu0
      %v419 = vpop.f32.mrb[0].mxu0
      %v420 = vadd.f32 %v268, %v419
      %v421 = vpop.f32.mrb[0].mxu0
      %422 = vmatprep.mubr.bf16.mxu0 0
      %423 = vmatmul.mubr.bf16.gmra.mrb[0].mxu0 %v305
      %v424 = vpop.f32.mrb[0].mxu0
      %v425 = vadd.f32 %v268, %v424
      %v426 = vpop.f32.mrb[0].mxu0
      %v427 = vpop.f32.mrb[0].mxu0
      %v428 = vadd.f32 %v268, %v427
      %v429 = vpop.f32.mrb[0].mxu0
      %430 = vmatprep.mubr.bf16.mxu0 0
      %431 = vmatmul.mubr.bf16.gmra.mrb[0].mxu0 %v306
      %v432 = vpop.f32.mrb[0].mxu0
      %v433 = vadd.f32 %v268, %v432
      %v434 = vpop.f32.mrb[0].mxu0
      %v435 = vpop.f32.mrb[0].mxu0
      %v436 = vadd.f32 %v268, %v435
      %v437 = vpop.f32.mrb[0].mxu0
      %438 = vmatprep.mubr.bf16.mxu0 0
      %439 = vmatmul.mubr.bf16.gmra.mrb[0].mxu0 %v307
      %v440 = vpop.f32.mrb[0].mxu0
      %v441 = vadd.f32 %v268, %v440
      %v442 = vpop.f32.mrb[0].mxu0
      %v443 = vpop.f32.mrb[0].mxu0
      %v444 = vadd.f32 %v268, %v443
      %v445 = vpop.f32.mrb[0].mxu0
      %446 = vmatprep.mubr.bf16.mxu0 0
      %447 = vmatmul.mubr.bf16.gmra.mrb[0].mxu0 %v308
      %v448 = vpop.f32.mrb[0].mxu0
      %v449 = vadd.f32 %v268, %v448
      %v450 = vpop.f32.mrb[0].mxu0
      %v451 = vpop.f32.mrb[0].mxu0
      %v452 = vadd.f32 %v268, %v451
      %v453 = vpop.f32.mrb[0].mxu0
      %454 = vmatprep.mubr.bf16.mxu0 0
      %455 = vmatmul.mubr.bf16.gmra.mrb[0].mxu0 %v309
      %v456 = vpop.f32.mrb[0].mxu0
      %v457 = vadd.f32 %v268, %v456
      %v458 = vpop.f32.mrb[0].mxu0
      %v459 = vpop.f32.mrb[0].mxu0
      %v460 = vadd.f32 %v268, %v459
      %v461 = vpop.f32.mrb[0].mxu0
      %462 = vdwg.mxu0
      %463 = vst [vmem:[%s228] sm:$0xff] %v401
      %464 = vst [vmem:[%s228 + $0x8] sm:$0xff] %v404
      %465 = vst [vmem:[%s228 + $0x10] sm:$0xff] %v409
      %466 = vst [vmem:[%s228 + $0x18] sm:$0xff] %v412
      %467 = vst [vmem:[%s228 + $0x20] sm:$0xff] %v417
      %468 = vst [vmem:[%s228 + $0x28] sm:$0xff] %v420
      %469 = vst [vmem:[%s228 + $0x30] sm:$0xff] %v425
      %470 = vst [vmem:[%s228 + $0x38] sm:$0xff] %v428
      %471 = vst [vmem:[%s228 + $0x40] sm:$0xff] %v433
      %472 = vst [vmem:[%s228 + $0x48] sm:$0xff] %v436
      %473 = vst [vmem:[%s228 + $0x50] sm:$0xff] %v441
      %474 = vst [vmem:[%s228 + $0x58] sm:$0xff] %v444
      %475 = vst [vmem:[%s228 + $0x60] sm:$0xff] %v449
      %476 = vst [vmem:[%s228 + $0x68] sm:$0xff] %v452
      %477 = vst [vmem:[%s228 + $0x70] sm:$0xff] %v457
      %478 = vst [vmem:[%s228 + $0x78] sm:$0xff] %v460
      %s479 = smul.u32 16, %s19
      %p480 = scmp.lt.s32.totalorder %s18, 3
      %s481 = scalar_select %p480, %s18, 3
      %p482 = scmp.lt.s32.totalorder %s479, 15
      %s483 = scalar_select %p482, %s479, 15
      %s484 = smul.addr %s481, 16
      %s485 = sadd.s32 %s483, %s484
      %s486 = smul.addr %s485, 8
      %s487 = scalar_lea.vmem %s3, %s486
      // Predicated region
      $region33: #{_lambda_.18} parent=31 // pred_check
        %p488 = pneg %p121
      $region34: #{_lambda_.18} parent=31 // pred_check_branch
        %490 = sbr.rel (%p488) target = $region36
      $region35: #{_lambda_.18} parent=31 // pred_region
        %s491 = smul.u32 16, %s19
      $region36: #{_lambda_.18} parent=31 // pred_fallthru
        _
    $region32: #{_lambda_.18} parent=5 // pred_fallthru
      _
    %p492 = scmp.le.s32.totalorder 2, %s9
    // Predicated region
    $region37: #{_lambda_.18} parent=5 // pred_check
      %p493 = pneg %p492
    $region38: #{_lambda_.18} parent=5 // pred_check_branch
      %495 = sbr.rel (%p493) target = $region40
    $region39: #{_lambda_.18} parent=5 // pred_region
      %s496 = ssub.s32 %s9, 2
      // Predicated region
      $region41: #{_lambda_.18} parent=39 // pred_check
        %p497 = pneg %p127
      $region42: #{_lambda_.18} parent=39 // pred_check_branch
        %499 = sbr.rel (%p497) target = $region44
      $region43: #{_lambda_.18} parent=39 // pred_region
        %s500 = smul.u32 16, %s21
        %p501 = scmp.lt.s32.totalorder %s20, 3
        %s502 = scalar_select %p501, %s20, 3
        %p503 = scmp.lt.s32.totalorder %s500, 15
        %s504 = scalar_select %p503, %s500, 15
        %s505 = smul.addr %s502, 16
        %s506 = sadd.s32 %s504, %s505
        %s507 = smul.addr %s506, 8
        %s508 = scalar_lea.vmem %s3, %s507
      $region44: #{_lambda_.18} parent=39 // pred_fallthru
        _
    $region40: #{_lambda_.18} parent=5 // pred_fallthru
      _
  $region6: #{_lambda_.18} parent=0 // loop_footer
    %s13 = sadd.s32 1, %s9
  $region7: #{_lambda_.18} parent=0 // loop_footer_branch
    %8 = sbr.rel target = $region3
  $region8: #{_lambda_.18} parent=0 // loop_exit
    _

// kernel: _lambda_.19
$region0: #{_lambda_.19}
  #allocation0 [shape = 'u32[]', space=smem, size = 0x4, offset = 0x4, fixed_abs, tag = 'smem constant byte address 0x4 - core index']
  #allocation1 [shape = 'u32[144,128]{1,0:T(1,128)}', space=vmem, size = 0x12000, scoped, tag = 'internal scratch']
  %s0 = inlined_call_operand.vmem [shape: bf16[4,512,128], index: 0, kind: input, shape index: {}]
  %s1 = inlined_call_operand.vmem [shape: bf16[4,128,128], index: 1, kind: input, shape index: {}]
  %s2 = inlined_call_operand.vmem [shape: f32[1,128], index: 2, kind: input, shape index: {}]
  %s3 = inlined_call_operand.vmem [shape: f32[4,512,128], index: 3, kind: output, shape index: {}]
  %s4 = sld [smem:[#allocation0]]
  $region45: #{_lambda_.19} parent=0
    _
  %s6 = ssub.s32 1, %s4
  %s7 = scalar_select 0, %s6, %s4
  loop: start=0, step=1, limit=18
  $region2: #{_lambda_.19} parent=0 // loop_pre_header
    _
  $region3: #{_lambda_.19} parent=0 // loop_header
    %s9 = sphi 0, %s13
    %p10 = scmp.ge.s32.totalorder %s9, 18
    %s16 = sphi 0, %s28
    %s17 = sphi 0, %s24
    %s18 = sphi 0, %s16
    %s19 = sphi 0, %s17
    %s20 = sphi 0, %s18
    %s21 = sphi 0, %s19
    %s33 = sphi 0, %s35
    %s36 = sphi 0, %s33
    %s37 = sphi 0, %s36
    %s53 = sphi 0, %s37
    %s59 = sphi 0, %s61
    %s62 = sphi 0, %s59
    %s63 = sphi 0, %s62
    %s79 = sphi 0, %s63
    %s83 = sphi 0, %s83
    %s85 = sphi 0, %s83
    %s86 = sphi 0, %s85
    %s100 = sphi 0, %s86
    %s108 = sphi 0, %s110
    %s111 = sphi 0, %s108
    %s112 = sphi 0, %s111
    %s128 = sphi 0, %s112
  $region4: #{_lambda_.19} parent=0 // loop_header_branch
    %12 = sbr.rel (%p10) target = $region8
  $region5: #{_lambda_.19} parent=0 // loop_body
    %s14 = ssub.s32 %s9, 1
    %s15 = ssub.s32 %s9, 2
    %s22 = sadd.s32 1, %s17
    %p23 = scmp.ge.s32.totalorder %s22, 4
    %s24 = scalar_select %p23, 0, %s22
    %s25 = sadd.s32 1, %s16
    %s26 = scalar_select %p23, %s25, %s16
    %p27 = scmp.ge.s32.totalorder %s26, 4
    %s28 = scalar_select %p27, 0, %s26
    %s29 = ssub.s32 %s16, %s28
    %s30 = ssub.s32 %s17, %s24
    %s31 = sor.u32 %s29, %s30
    %p32 = scmp.eq.s32.totalorder %s31, 0
    %s34 = sadd.s32 %s33, 1
    %s35 = scalar_select %p32, %s33, %s34
    %p38 = pneg %p32
    %p39 = scmp.eq.s32.totalorder %s9, 15
    %p40 = por %p38, %p39
    %p41 = scmp.ne.s32.totalorder %s33, %s36
    %p42 = scmp.eq.s32.totalorder %s9, 0
    %p43 = por %p41, %p42
    %p44 = scmp.ne.s32.totalorder %s33, %s36
    %p45 = scmp.eq.s32.totalorder %s14, 15
    %p46 = por %p44, %p45
    %p47 = scmp.ne.s32.totalorder %s36, %s37
    %p48 = scmp.eq.s32.totalorder %s14, 0
    %p49 = por %p47, %p48
    %p50 = scmp.ne.s32.totalorder %s36, %s37
    %p51 = scmp.eq.s32.totalorder %s15, 15
    %p52 = por %p50, %p51
    %p54 = scmp.ne.s32.totalorder %s37, %s53
    %p55 = scmp.eq.s32.totalorder %s15, 0
    %p56 = por %p54, %p55
    %s57 = ssub.s32 %s16, %s28
    %p58 = scmp.eq.s32.totalorder %s57, 0
    %s60 = sadd.s32 %s59, 1
    %s61 = scalar_select %p58, %s59, %s60
    %p64 = pneg %p58
    %p65 = scmp.eq.s32.totalorder %s9, 15
    %p66 = por %p64, %p65
    %p67 = scmp.ne.s32.totalorder %s59, %s62
    %p68 = scmp.eq.s32.totalorder %s9, 0
    %p69 = por %p67, %p68
    %p70 = scmp.ne.s32.totalorder %s59, %s62
    %p71 = scmp.eq.s32.totalorder %s14, 15
    %p72 = por %p70, %p71
    %p73 = scmp.ne.s32.totalorder %s62, %s63
    %p74 = scmp.eq.s32.totalorder %s14, 0
    %p75 = por %p73, %p74
    %p76 = scmp.ne.s32.totalorder %s62, %s63
    %p77 = scmp.eq.s32.totalorder %s15, 15
    %p78 = por %p76, %p77
    %p80 = scmp.ne.s32.totalorder %s63, %s79
    %p81 = scmp.eq.s32.totalorder %s15, 0
    %p82 = por %p80, %p81
    %s84 = sadd.s32 %s83, 1
    %p87 = scmp.eq.s32.totalorder %s9, 15
    %p88 = scmp.ne.s32.totalorder %s83, %s85
    %p89 = scmp.eq.s32.totalorder %s9, 0
    %p90 = por %p88, %p89
    %p91 = scmp.ne.s32.totalorder %s83, %s85
    %p92 = scmp.eq.s32.totalorder %s14, 15
    %p93 = por %p91, %p92
    %p94 = scmp.ne.s32.totalorder %s85, %s86
    %p95 = scmp.eq.s32.totalorder %s14, 0
    %p96 = por %p94, %p95
    %p97 = scmp.ne.s32.totalorder %s85, %s86
    %p98 = scmp.eq.s32.totalorder %s15, 15
    %p99 = por %p97, %p98
    %p101 = scmp.ne.s32.totalorder %s86, %s100
    %p102 = scmp.eq.s32.totalorder %s15, 0
    %p103 = por %p101, %p102
    %s104 = ssub.s32 %s16, %s28
    %s105 = ssub.s32 %s17, %s24
    %s106 = sor.u32 %s104, %s105
    %p107 = scmp.eq.s32.totalorder %s106, 0
    %s109 = sadd.s32 %s108, 1
    %s110 = scalar_select %p107, %s108, %s109
    %p113 = pneg %p107
    %p114 = scmp.eq.s32.totalorder %s9, 15
    %p115 = por %p113, %p114
    %p116 = scmp.ne.s32.totalorder %s108, %s111
    %p117 = scmp.eq.s32.totalorder %s9, 0
    %p118 = por %p116, %p117
    %p119 = scmp.ne.s32.totalorder %s108, %s111
    %p120 = scmp.eq.s32.totalorder %s14, 15
    %p121 = por %p119, %p120
    %p122 = scmp.ne.s32.totalorder %s111, %s112
    %p123 = scmp.eq.s32.totalorder %s14, 0
    %p124 = por %p122, %p123
    %p125 = scmp.ne.s32.totalorder %s111, %s112
    %p126 = scmp.eq.s32.totalorder %s15, 15
    %p127 = por %p125, %p126
    %p129 = scmp.ne.s32.totalorder %s112, %s128
    %p130 = scmp.eq.s32.totalorder %s15, 0
    %p131 = por %p129, %p130
    %p132 = scmp.le.s32.totalorder 1, %s9
    %p133 = scmp.lt.s32.totalorder %s9, 17
    %p134 = pnand %p132, %p133
    %p135 = pneg %p134
    // Predicated region
    $region9: #{_lambda_.19} parent=5 // pred_check
      _
    $region10: #{_lambda_.19} parent=5 // pred_check_branch
      %137 = sbr.rel (%p134) target = $region12
    $region11: #{_lambda_.19} parent=5 // pred_region
      %s138 = ssub.s32 %s9, 1
      // Predicated region
      $region13: #{_lambda_.19} parent=11 // pred_check
        %p139 = pneg %p96
      $region14: #{_lambda_.19} parent=11 // pred_check_branch
        %141 = sbr.rel (%p139) target = $region16
      $region15: #{_lambda_.19} parent=11 // pred_region
        _
      $region16: #{_lambda_.19} parent=11 // pred_fallthru
        _
    $region12: #{_lambda_.19} parent=5 // pred_fallthru
      _
    %p142 = scmp.lt.s32.totalorder %s9, 16
    // Predicated region
    $region17: #{_lambda_.19} parent=5 // pred_check
      %p143 = pneg %p142
    $region18: #{_lambda_.19} parent=5 // pred_check_branch
      %145 = sbr.rel (%p143) target = $region20
    $region19: #{_lambda_.19} parent=5 // pred_region
      // Predicated region
      $region21: #{_lambda_.19} parent=19 // pred_check
        %p146 = pneg %p43
      $region22: #{_lambda_.19} parent=19 // pred_check_branch
        %148 = sbr.rel (%p146) target = $region24
      $region23: #{_lambda_.19} parent=19 // pred_region
        %s149 = smul.u32 16, %s17
        %p150 = scmp.lt.s32.totalorder %s16, 3
        %s151 = scalar_select %p150, %s16, 3
        %p152 = scmp.lt.s32.totalorder %s149, 63
        %s153 = scalar_select %p152, %s149, 63
        %s154 = smul.addr %s151, 64
        %s155 = sadd.s32 %s153, %s154
        %s156 = smul.addr %s155, 4
        %s157 = scalar_lea.vmem %s0, %s156
        %s158 = smul.u32 16, %s17
      $region24: #{_lambda_.19} parent=19 // pred_fallthru
        _
      // Predicated region
      $region25: #{_lambda_.19} parent=19 // pred_check
        %p159 = pneg %p69
      $region26: #{_lambda_.19} parent=19 // pred_check_branch
        %161 = sbr.rel (%p159) target = $region28
      $region27: #{_lambda_.19} parent=19 // pred_region
        %p162 = scmp.lt.s32.totalorder %s16, 3
        %s163 = scalar_select %p162, %s16, 3
        %s164 = smul.addr %s163, 16
        %s165 = smul.addr %s164, 4
        %s166 = scalar_lea.vmem %s1, %s165
      $region28: #{_lambda_.19} parent=19 // pred_fallthru
        _
    $region20: #{_lambda_.19} parent=5 // pred_fallthru
      _
    %p167 = scmp.le.s32.totalorder 1, %s9
    %p168 = scmp.lt.s32.totalorder %s9, 17
    %p169 = pnand %p167, %p168
    %p170 = pneg %p169
    // Predicated region
    $region29: #{_lambda_.19} parent=5 // pred_check
      _
    $region30: #{_lambda_.19} parent=5 // pred_check_branch
      %172 = sbr.rel (%p169) target = $region32
    $region31: #{_lambda_.19} parent=5 // pred_region
      %s173 = ssub.s32 %s9, 1
      %s174 = smul.u32 16, %s19
      %p175 = scmp.lt.s32.totalorder %s18, 3
      %s176 = scalar_select %p175, %s18, 3
      %p177 = scmp.lt.s32.totalorder %s174, 63
      %s178 = scalar_select %p177, %s174, 63
      %s179 = smul.addr %s176, 64
      %s180 = sadd.s32 %s178, %s179
      %s181 = smul.addr %s180, 4
      %s182 = scalar_lea.vmem %s0, %s181
      %p183 = pneg %p49
      %p184 = pneg %p46
      %p185 = scmp.lt.s32.totalorder %s18, 3
      %s186 = scalar_select %p185, %s18, 3
      %s187 = smul.addr %s186, 16
      %s188 = smul.addr %s187, 4
      %s189 = scalar_lea.vmem %s1, %s188
      %p190 = pneg %p75
      %p191 = pneg %p72
      %p192 = pneg %p96
      %p193 = pneg %p93
      %p194 = pneg %p124
      %p195 = pneg %p121
      %s196 = smul.u32 16, %s19
      %p197 = scmp.lt.s32.totalorder %s18, 3
      %s198 = scalar_select %p197, %s18, 3
      %p199 = scmp.lt.s32.totalorder %s196, 63
      %s200 = scalar_select %p199, %s196, 63
      %s201 = smul.addr %s198, 64
      %s202 = sadd.s32 %s200, %s201
      %s203 = smul.addr %s202, 8
      %s204 = scalar_lea.vmem %s3, %s203
      %s205 = smul.u32 16, %s19
      %p206 = scmp.lt.s32.totalorder %s18, 3
      %s207 = scalar_select %p206, %s18, 3
      %p208 = scmp.lt.s32.totalorder %s205, 63
      %s209 = scalar_select %p208, %s205, 63
      %s210 = smul.addr %s207, 64
      %s211 = sadd.s32 %s209, %s210
      %s212 = smul.addr %s211, 4
      %s213 = scalar_lea.vmem %s0, %s212
      %s214 = smul.u32 16, %s19
      %p215 = scmp.lt.s32.totalorder %s18, 3
      %s216 = scalar_select %p215, %s18, 3
      %s217 = smul.addr %s216, 16
      %s218 = smul.addr %s217, 4
      %s219 = scalar_lea.vmem %s1, %s218
      %s220 = smul.u32 16, %s19
      %p221 = scmp.lt.s32.totalorder %s18, 3
      %s222 = scalar_select %p221, %s18, 3
      %p223 = scmp.lt.s32.totalorder %s220, 63
      %s224 = scalar_select %p223, %s220, 63
      %s225 = smul.addr %s222, 64
      %s226 = sadd.s32 %s224, %s225
      %s227 = smul.addr %s226, 8
      %s228 = scalar_lea.vmem %s3, %s227
      %s229 = smul.u32 16, %s19
      %v231 = vld [vmem:[%s213] sm:$0xf]
      %v232 = vld [vmem:[%s213 + $0x4] sm:$0xf]
      %v233 = vld [vmem:[%s213 + $0x8] sm:$0xf]
      %v234 = vld [vmem:[%s213 + $0xc] sm:$0xf]
      %v235 = vld [vmem:[%s213 + $0x10] sm:$0xf]
      %v236 = vld [vmem:[%s213 + $0x14] sm:$0xf]
      %v237 = vld [vmem:[%s213 + $0x18] sm:$0xf]
      %v238 = vld [vmem:[%s213 + $0x1c] sm:$0xf]
      %v239 = vld [vmem:[%s213 + $0x20] sm:$0xf]
      %v240 = vld [vmem:[%s213 + $0x24] sm:$0xf]
      %v241 = vld [vmem:[%s213 + $0x28] sm:$0xf]
      %v242 = vld [vmem:[%s213 + $0x2c] sm:$0xf]
      %v243 = vld [vmem:[%s213 + $0x30] sm:$0xf]
      %v244 = vld [vmem:[%s213 + $0x34] sm:$0xf]
      %v245 = vld [vmem:[%s213 + $0x38] sm:$0xf]
      %v246 = vld [vmem:[%s213 + $0x3c] sm:$0xf]
      %v247 = vld [vmem:[%s219] sm:$0xf]
      %v248 = vld [vmem:[%s219 + $0x4] sm:$0xf]
      %v249 = vld [vmem:[%s219 + $0x8] sm:$0xf]
      %v250 = vld [vmem:[%s219 + $0xc] sm:$0xf]
      %v251 = vld [vmem:[%s219 + $0x10] sm:$0xf]
      %v252 = vld [vmem:[%s219 + $0x14] sm:$0xf]
      %v253 = vld [vmem:[%s219 + $0x18] sm:$0xf]
      %v254 = vld [vmem:[%s219 + $0x1c] sm:$0xf]
      %v255 = vld [vmem:[%s219 + $0x20] sm:$0xf]
      %v256 = vld [vmem:[%s219 + $0x24] sm:$0xf]
      %v257 = vld [vmem:[%s219 + $0x28] sm:$0xf]
      %v258 = vld [vmem:[%s219 + $0x2c] sm:$0xf]
      %v259 = vld [vmem:[%s219 + $0x30] sm:$0xf]
      %v260 = vld [vmem:[%s219 + $0x34] sm:$0xf]
      %v261 = vld [vmem:[%s219 + $0x38] sm:$0xf]
      %v262 = vld [vmem:[%s219 + $0x3c] sm:$0xf]
      %v263 = vld [vmem:[%s2] sm:$0x1]
      %v265 = vlaneseq
      %v266 = vshrl.u32 %v265, 7
      %v267 = vsub.s32 0, %v266
      %v268 = vrot.slane %v263, %v267
      %v286 = vunpack.c.l.b16 %v231
      %v287 = vunpack.c.l.b16 %v232
      %v288 = vunpack.c.l.b16 %v233
      %v289 = vunpack.c.l.b16 %v234
      %v290 = vunpack.c.l.b16 %v235
      %v291 = vunpack.c.l.b16 %v236
      %v292 = vunpack.c.l.b16 %v237
      %v293 = vunpack.c.l.b16 %v238
      %v294 = vunpack.c.l.b16 %v239
      %v295 = vunpack.c.l.b16 %v240
      %v296 = vunpack.c.l.b16 %v241
      %v297 = vunpack.c.l.b16 %v242
      %v298 = vunpack.c.l.b16 %v243
      %v299 = vunpack.c.l.b16 %v244
      %v300 = vunpack.c.l.b16 %v245
      %v301 = vunpack.c.l.b16 %v246
      %v302 = vpack.c.b16 %v287, %v286
      %v303 = vpack.c.b16 %v289, %v288
      %v304 = vpack.c.b16 %v291, %v290
      %v305 = vpack.c.b16 %v293, %v292
      %v306 = vpack.c.b16 %v295, %v294
      %v307 = vpack.c.b16 %v297, %v296
      %v308 = vpack.c.b16 %v299, %v298
      %v309 = vpack.c.b16 %v301, %v300
      %v334 = vunpack.c.l.b16 %v247
      %v335 = vunpack.c.l.b16 %v248
      %v336 = vunpack.c.l.b16 %v249
      %v337 = vunpack.c.l.b16 %v250
      %v338 = vunpack.c.l.b16 %v251
      %v339 = vunpack.c.l.b16 %v252
      %v340 = vunpack.c.l.b16 %v253
      %v341 = vunpack.c.l.b16 %v254
      %v342 = vunpack.c.l.b16 %v255
      %v343 = vunpack.c.l.b16 %v256
      %v344 = vunpack.c.l.b16 %v257
      %v345 = vunpack.c.l.b16 %v258
      %v346 = vunpack.c.l.b16 %v259
      %v347 = vunpack.c.l.b16 %v260
      %v348 = vunpack.c.l.b16 %v261
      %v349 = vunpack.c.l.b16 %v262
      %v350 = vpack.c.b16 %v335, %v334
      %v351 = vpack.c.b16 %v337, %v336
      %v352 = vpack.c.b16 %v339, %v338
      %v353 = vpack.c.b16 %v341, %v340
      %v354 = vpack.c.b16 %v343, %v342
      %v355 = vpack.c.b16 %v345, %v344
      %v356 = vpack.c.b16 %v347, %v346
      %v357 = vpack.c.b16 %v349, %v348
      %366 = vmatprep.subr.bf16.mxu0 0
      %367 = vmatpush1.bf16.msra.mxu0 %v350
      %368 = vmatprep.subr.bf16.mxu0 0
      %369 = vmatpush1.bf16.msra.mxu0 %v351
      %370 = vmatprep.subr.bf16.mxu0 0
      %371 = vmatpush1.bf16.msra.mxu0 %v352
      %372 = vmatprep.subr.bf16.mxu0 0
      %373 = vmatpush1.bf16.msra.mxu0 %v353
      %374 = vmatprep.subr.bf16.mxu0 0
      %375 = vmatpush1.bf16.msra.mxu0 %v354
      %376 = vmatprep.subr.bf16.mxu0 0
      %377 = vmatpush1.bf16.msra.mxu0 %v355
      %378 = vmatprep.subr.bf16.mxu0 0
      %379 = vmatpush1.bf16.msra.mxu0 %v356
      %380 = vmatprep.subr.bf16.mxu0 0
      %381 = vmatpush1.bf16.msra.mxu0 %v357
      %382 = vmatprep.subr.bf16.mxu0 0
      %383 = vmatpush1.bf16.msra.mxu0 0
      %384 = vmatprep.subr.bf16.mxu0 0
      %385 = vmatpush1.bf16.msra.mxu0 0
      %386 = vmatprep.subr.bf16.mxu0 0
      %387 = vmatpush1.bf16.msra.mxu0 0
      %388 = vmatprep.subr.bf16.mxu0 0
      %389 = vmatpush1.bf16.msra.mxu0 0
      %390 = vmatprep.subr.bf16.mxu0 0
      %391 = vmatpush1.bf16.msra.mxu0 0
      %392 = vmatprep.subr.bf16.mxu0 0
      %393 = vmatpush1.bf16.msra.mxu0 0
      %394 = vmatprep.subr.bf16.mxu0 0
      %395 = vmatpush1.bf16.msra.mxu0 0
      %396 = vmatprep.subr.bf16.mxu0 0
      %397 = vmatpush1.bf16.msra.mxu0 0
      %398 = vmatprep.mubr.bf16.mxu0 0
      %399 = vmatmul.mubr.bf16.gmra.mrb[0].mxu0 %v302
      %v400 = vpop.f32.mrb[0].mxu0
      %v401 = vadd.f32 %v268, %v400
      %v402 = vpop.f32.mrb[0].mxu0
      %v403 = vpop.f32.mrb[0].mxu0
      %v404 = vadd.f32 %v268, %v403
      %v405 = vpop.f32.mrb[0].mxu0
      %406 = vmatprep.mubr.bf16.mxu0 0
      %407 = vmatmul.mubr.bf16.gmra.mrb[0].mxu0 %v303
      %v408 = vpop.f32.mrb[0].mxu0
      %v409 = vadd.f32 %v268, %v408
      %v410 = vpop.f32.mrb[0].mxu0
      %v411 = vpop.f32.mrb[0].mxu0
      %v412 = vadd.f32 %v268, %v411
      %v413 = vpop.f32.mrb[0].mxu0
      %414 = vmatprep.mubr.bf16.mxu0 0
      %415 = vmatmul.mubr.bf16.gmra.mrb[0].mxu0 %v304
      %v416 = vpop.f32.mrb[0].mxu0
      %v417 = vadd.f32 %v268, %v416
      %v418 = vpop.f32.mrb[0].mxu0
      %v419 = vpop.f32.mrb[0].mxu0
      %v420 = vadd.f32 %v268, %v419
      %v421 = vpop.f32.mrb[0].mxu0
      %422 = vmatprep.mubr.bf16.mxu0 0
      %423 = vmatmul.mubr.bf16.gmra.mrb[0].mxu0 %v305
      %v424 = vpop.f32.mrb[0].mxu0
      %v425 = vadd.f32 %v268, %v424
      %v426 = vpop.f32.mrb[0].mxu0
      %v427 = vpop.f32.mrb[0].mxu0
      %v428 = vadd.f32 %v268, %v427
      %v429 = vpop.f32.mrb[0].mxu0
      %430 = vmatprep.mubr.bf16.mxu0 0
      %431 = vmatmul.mubr.bf16.gmra.mrb[0].mxu0 %v306
      %v432 = vpop.f32.mrb[0].mxu0
      %v433 = vadd.f32 %v268, %v432
      %v434 = vpop.f32.mrb[0].mxu0
      %v435 = vpop.f32.mrb[0].mxu0
      %v436 = vadd.f32 %v268, %v435
      %v437 = vpop.f32.mrb[0].mxu0
      %438 = vmatprep.mubr.bf16.mxu0 0
      %439 = vmatmul.mubr.bf16.gmra.mrb[0].mxu0 %v307
      %v440 = vpop.f32.mrb[0].mxu0
      %v441 = vadd.f32 %v268, %v440
      %v442 = vpop.f32.mrb[0].mxu0
      %v443 = vpop.f32.mrb[0].mxu0
      %v444 = vadd.f32 %v268, %v443
      %v445 = vpop.f32.mrb[0].mxu0
      %446 = vmatprep.mubr.bf16.mxu0 0
      %447 = vmatmul.mubr.bf16.gmra.mrb[0].mxu0 %v308
      %v448 = vpop.f32.mrb[0].mxu0
      %v449 = vadd.f32 %v268, %v448
      %v450 = vpop.f32.mrb[0].mxu0
      %v451 = vpop.f32.mrb[0].mxu0
      %v452 = vadd.f32 %v268, %v451
      %v453 = vpop.f32.mrb[0].mxu0
      %454 = vmatprep.mubr.bf16.mxu0 0
      %455 = vmatmul.mubr.bf16.gmra.mrb[0].mxu0 %v309
      %v456 = vpop.f32.mrb[0].mxu0
      %v457 = vadd.f32 %v268, %v456
      %v458 = vpop.f32.mrb[0].mxu0
      %v459 = vpop.f32.mrb[0].mxu0
      %v460 = vadd.f32 %v268, %v459
      %v461 = vpop.f32.mrb[0].mxu0
      %462 = vdwg.mxu0
      %v463 = vxor.u32 %v401, 2147483648
      %v464 = vxor.u32 %v404, 2147483648
      %v465 = vxor.u32 %v409, 2147483648
      %v466 = vxor.u32 %v412, 2147483648
      %v467 = vxor.u32 %v417, 2147483648
      %v468 = vxor.u32 %v420, 2147483648
      %v469 = vxor.u32 %v425, 2147483648
      %v470 = vxor.u32 %v428, 2147483648
      %v471 = vxor.u32 %v433, 2147483648
      %v472 = vxor.u32 %v436, 2147483648
      %v473 = vxor.u32 %v441, 2147483648
      %v474 = vxor.u32 %v444, 2147483648
      %v475 = vxor.u32 %v449, 2147483648
      %v476 = vxor.u32 %v452, 2147483648
      %v477 = vxor.u32 %v457, 2147483648
      %v478 = vxor.u32 %v460, 2147483648
      %v479 = vmul.f32 %v463, 1.442695
      %v480 = vpow.pop %v479
      %v481 = vmul.f32 %v464, 1.442695
      %v482 = vpow.pop %v481
      %v483 = vmul.f32 %v465, 1.442695
      %v484 = vpow.pop %v483
      %v485 = vmul.f32 %v466, 1.442695
      %v486 = vpow.pop %v485
      %v487 = vmul.f32 %v467, 1.442695
      %v488 = vpow.pop %v487
      %v489 = vmul.f32 %v468, 1.442695
      %v490 = vpow.pop %v489
      %v491 = vmul.f32 %v469, 1.442695
      %v492 = vpow.pop %v491
      %v493 = vmul.f32 %v470, 1.442695
      %v494 = vpow.pop %v493
      %v495 = vmul.f32 %v471, 1.442695
      %v496 = vpow.pop %v495
      %v497 = vmul.f32 %v472, 1.442695
      %v498 = vpow.pop %v497
      %v499 = vmul.f32 %v473, 1.442695
      %v500 = vpow.pop %v499
      %v501 = vmul.f32 %v474, 1.442695
      %v502 = vpow.pop %v501
      %v503 = vmul.f32 %v475, 1.442695
      %v504 = vpow.pop %v503
      %v505 = vmul.f32 %v476, 1.442695
      %v506 = vpow.pop %v505
      %v507 = vmul.f32 %v477, 1.442695
      %v508 = vpow.pop %v507
      %v509 = vmul.f32 %v478, 1.442695
      %v510 = vpow.pop %v509
      %v511 = vadd.f32 %v480, 1.0
      %v512 = vadd.f32 %v482, 1.0
      %v513 = vadd.f32 %v484, 1.0
      %v514 = vadd.f32 %v486, 1.0
      %v515 = vadd.f32 %v488, 1.0
      %v516 = vadd.f32 %v490, 1.0
      %v517 = vadd.f32 %v492, 1.0
      %v518 = vadd.f32 %v494, 1.0
      %v519 = vadd.f32 %v496, 1.0
      %v520 = vadd.f32 %v498, 1.0
      %v521 = vadd.f32 %v500, 1.0
      %v522 = vadd.f32 %v502, 1.0
      %v523 = vadd.f32 %v504, 1.0
      %v524 = vadd.f32 %v506, 1.0
      %v525 = vadd.f32 %v508, 1.0
      %v526 = vadd.f32 %v510, 1.0
      %v527 = vrcp.pop %v511
      %v528 = vmul.f32 1.0, %v527
      %v529 = vrcp.pop %v512
      %v530 = vmul.f32 1.0, %v529
      %v531 = vrcp.pop %v513
      %v532 = vmul.f32 1.0, %v531
      %v533 = vrcp.pop %v514
      %v534 = vmul.f32 1.0, %v533
      %v535 = vrcp.pop %v515
      %v536 = vmul.f32 1.0, %v535
      %v537 = vrcp.pop %v516
      %v538 = vmul.f32 1.0, %v537
      %v539 = vrcp.pop %v517
      %v540 = vmul.f32 1.0, %v539
      %v541 = vrcp.pop %v518
      %v542 = vmul.f32 1.0, %v541
      %v543 = vrcp.pop %v519
      %v544 = vmul.f32 1.0, %v543
      %v545 = vrcp.pop %v520
      %v546 = vmul.f32 1.0, %v545
      %v547 = vrcp.pop %v521
      %v548 = vmul.f32 1.0, %v547
      %v549 = vrcp.pop %v522
      %v550 = vmul.f32 1.0, %v549
      %v551 = vrcp.pop %v523
      %v552 = vmul.f32 1.0, %v551
      %v553 = vrcp.pop %v524
      %v554 = vmul.f32 1.0, %v553
      %v555 = vrcp.pop %v525
      %v556 = vmul.f32 1.0, %v555
      %v557 = vrcp.pop %v526
      %v558 = vmul.f32 1.0, %v557
      %559 = vst [vmem:[%s228] sm:$0xff] %v528
      %560 = vst [vmem:[%s228 + $0x8] sm:$0xff] %v530
      %561 = vst [vmem:[%s228 + $0x10] sm:$0xff] %v532
      %562 = vst [vmem:[%s228 + $0x18] sm:$0xff] %v534
      %563 = vst [vmem:[%s228 + $0x20] sm:$0xff] %v536
      %564 = vst [vmem:[%s228 + $0x28] sm:$0xff] %v538
      %565 = vst [vmem:[%s228 + $0x30] sm:$0xff] %v540
      %566 = vst [vmem:[%s228 + $0x38] sm:$0xff] %v542
      %567 = vst [vmem:[%s228 + $0x40] sm:$0xff] %v544
      %568 = vst [vmem:[%s228 + $0x48] sm:$0xff] %v546
      %569 = vst [vmem:[%s228 + $0x50] sm:$0xff] %v548
      %570 = vst [vmem:[%s228 + $0x58] sm:$0xff] %v550
      %571 = vst [vmem:[%s228 + $0x60] sm:$0xff] %v552
      %572 = vst [vmem:[%s228 + $0x68] sm:$0xff] %v554
      %573 = vst [vmem:[%s228 + $0x70] sm:$0xff] %v556
      %574 = vst [vmem:[%s228 + $0x78] sm:$0xff] %v558
      %s575 = smul.u32 16, %s19
      %p576 = scmp.lt.s32.totalorder %s18, 3
      %s577 = scalar_select %p576, %s18, 3
      %p578 = scmp.lt.s32.totalorder %s575, 63
      %s579 = scalar_select %p578, %s575, 63
      %s580 = smul.addr %s577, 64
      %s581 = sadd.s32 %s579, %s580
      %s582 = smul.addr %s581, 8
      %s583 = scalar_lea.vmem %s3, %s582
      // Predicated region
      $region33: #{_lambda_.19} parent=31 // pred_check
        %p584 = pneg %p121
      $region34: #{_lambda_.19} parent=31 // pred_check_branch
        %586 = sbr.rel (%p584) target = $region36
      $region35: #{_lambda_.19} parent=31 // pred_region
        %s587 = smul.u32 16, %s19
      $region36: #{_lambda_.19} parent=31 // pred_fallthru
        _
    $region32: #{_lambda_.19} parent=5 // pred_fallthru
      _
    %p588 = scmp.le.s32.totalorder 2, %s9
    // Predicated region
    $region37: #{_lambda_.19} parent=5 // pred_check
      %p589 = pneg %p588
    $region38: #{_lambda_.19} parent=5 // pred_check_branch
      %591 = sbr.rel (%p589) target = $region40
    $region39: #{_lambda_.19} parent=5 // pred_region
      %s592 = ssub.s32 %s9, 2
      // Predicated region
      $region41: #{_lambda_.19} parent=39 // pred_check
        %p593 = pneg %p127
      $region42: #{_lambda_.19} parent=39 // pred_check_branch
        %595 = sbr.rel (%p593) target = $region44
      $region43: #{_lambda_.19} parent=39 // pred_region
        %s596 = smul.u32 16, %s21
        %p597 = scmp.lt.s32.totalorder %s20, 3
        %s598 = scalar_select %p597, %s20, 3
        %p599 = scmp.lt.s32.totalorder %s596, 63
        %s600 = scalar_select %p599, %s596, 63
        %s601 = smul.addr %s598, 64
        %s602 = sadd.s32 %s600, %s601
        %s603 = smul.addr %s602, 8
        %s604 = scalar_lea.vmem %s3, %s603
      $region44: #{_lambda_.19} parent=39 // pred_fallthru
        _
    $region40: #{_lambda_.19} parent=5 // pred_fallthru
      _
  $region6: #{_lambda_.19} parent=0 // loop_footer
    %s13 = sadd.s32 1, %s9
  $region7: #{_lambda_.19} parent=0 // loop_footer_branch
    %8 = sbr.rel target = $region3
  $region8: #{_lambda_.19} parent=0 // loop_exit
    _

</llo_original>
